<compile_context>
chip_gen: v7x
topology: tpu7x:2x2x1
jax: 0.10.0
libtpu: 0.0.40
codegen_flags: <defaults>
</compile_context>

<pallas_src>
from functools import partial

import jax
import jax.numpy as jnp
import numpy as np
from jax.experimental import pallas as pl
from jax.experimental.pallas import tpu as pltpu


# ----------------------------------------------------------------------------
# Weight packing (host/XLA side, tiny).
#
# Sub-pixel identity for ConvTranspose2d(K=6, stride=2, pad=2):
#   y[2m+ph, 2n+pw, co] = b[co]
#     + sum_{j,k in 0..2} sum_ci xpad[m+j, n+k, ci] * w[ci, co, ph+4-2j, pw+4-2k]
# where xpad is the input zero-padded by 1 pixel.
# ----------------------------------------------------------------------------
def pack_deconv1_taps(w, bias):
    """Layer-1 params -> per-tap weights (9, C0, 4*C1) and bias (1, 4*C1).

    Output columns are ordered (ph, pw, c1): column = (2*ph + pw)*C1 + c1,
    matching the lane layout of the in-kernel phase scratch."""
    assert w.shape[2:] == (6, 6), "packing assumes K=6, stride=2, padding=2"
    C0, C1 = w.shape[0], w.shape[1]
    taps = []
    for j in range(3):
        for k in range(3):
            blk = w[:, :, 4 - 2 * j:6 - 2 * j, 4 - 2 * k:6 - 2 * k]  # (c0,c1,ph,pw)
            blk = jnp.transpose(blk, (0, 2, 3, 1)).reshape(C0, 4 * C1)
            taps.append(blk)
    w_taps = jnp.stack(taps, axis=0).astype(jnp.float32)             # (9, C0, 4*C1)
    b_packed = jnp.tile(bias, 4).reshape(1, 4 * C1).astype(jnp.float32)
    return w_taps, b_packed


def pack_deconv2_window(w, bias):
    """Layer-2 params -> one (9*4*C1, 16*C2) matrix over a 3x3 window of the
    64-lane phase scratch, plus bias (1, 16*C2).

    Slab rows  : (R, S, phase_r, phase_s, c1)   R,S = window offset in scratch
    Out columns: (a, b, ph2, pw2, co)           a,b = layer-2 input parity,
                                                ph2,pw2 = layer-2 output phase
    Rows whose (window offset, phase) combination is not used by a column's
    (a, b) group are left zero."""
    assert w.shape[2:] == (6, 6), "packing assumes K=6, stride=2, padding=2"
    C1, C2 = w.shape[0], w.shape[1]
    Wb = jnp.zeros((3, 3, 2, 2, C1, 2, 2, 2, 2, C2), jnp.float32)
    for a in range(2):
        for j in range(3):
            r = a + j - 1
            R, fr = r // 2 + 1, r % 2
            for g in range(2):
                for k in range(3):
                    s = g + k - 1
                    S, fs = s // 2 + 1, s % 2
                    blk = w[:, :, 4 - 2 * j:6 - 2 * j, 4 - 2 * k:6 - 2 * k]
                    blk = jnp.transpose(blk, (0, 2, 3, 1))      # (c1, ph2, pw2, co)
                    Wb = Wb.at[R, S, fr, fs, :, a, g, :, :, :].set(
                        blk.astype(jnp.float32))
    Wb = Wb.reshape(9 * 4 * C1, 16 * C2)
    b_packed = jnp.tile(bias, 16).reshape(1, 16 * C2).astype(jnp.float32)
    return Wb, b_packed


# ----------------------------------------------------------------------------
# Fused decoder kernel (N_blk batch elements per grid step).
#   x_ref  : (N_blk, H, W, C0)        unpadded NHWC input block
#   w1_ref : (9, C0, 4*C1), b1_ref: (1, 4*C1)
#   w2_ref : (36*C1, 16*C2), b2_ref: (1, 16*C2)
#   out_ref: (16*C2, N_blk*H*W)       lane-dense result block
#   xs_ref : (N_blk, H+2, W+2, C0)    zero-bordered input scratch (VMEM)
#   ph_ref : (N_blk, H+2, W+2, 4*C1)  zero-bordered phase-packed layer-1 output
# ----------------------------------------------------------------------------
def _decoder_kernel(x_ref, w1_ref, b1_ref, w2_ref, b2_ref, out_ref,
                    xs_ref, ph_ref):
    Nb, H, W, C0 = x_ref.shape
    C4 = ph_ref.shape[-1]            # 4 * C1 (layer-1 phases packed on lanes)
    NHW = Nb * H * W

    # stage input into a zero-bordered VMEM tile (no HBM-side padding)
    xs_ref[...] = jnp.zeros_like(xs_ref)
    xs_ref[:, 1:1 + H, 1:1 + W, :] = x_ref[...]

    # ---- layer 1: ConvTranspose2d(C0 -> C1), 9 accumulated tap matmuls -----
    # (no im2col lane-concat; each tap is a (NHW, C0) @ (C0, 4*C1) MXU op)
    acc = None
    for j in range(3):
        for k in range(3):
            piece = xs_ref[:, j:j + H, k:k + W, :].reshape(NHW, C0)
            d = jnp.dot(piece, w1_ref[3 * j + k],
                        preferred_element_type=jnp.float32)
            acc = d if acc is None else acc + d
    out1 = acc + b1_ref[...]                                   # (NHW, 4*C1)

    # phase-packed, zero-bordered intermediate (never touches HBM)
    ph_ref[...] = jnp.zeros_like(ph_ref)
    ph_ref[:, 1:1 + H, 1:1 + W, :] = out1.reshape(Nb, H, W, C4)

    # ---- layer 2: ConvTranspose2d(C1 -> C2), ONE fused matmul --------------
    # 3x3 window over the full 64-lane phase scratch; all 4 parity groups and
    # all 4 output phases live in the 16*C2 output columns.
    slab = jnp.concatenate(
        [ph_ref[:, R:R + H, S:S + W, :] for R in range(3) for S in range(3)],
        axis=-1).reshape(NHW, 9 * C4)
    y2 = jnp.dot(slab, w2_ref[...],
                 preferred_element_type=jnp.float32) + b2_ref[...]  # (NHW, 16*C2)

    # lane-dense store: (16*C2, NHW) = 256 lanes, unmasked full-lane vst
    out_ref[...] = y2.T


# ----------------------------------------------------------------------------
# Wrapper: full decoder forward, NCHW in -> NCHW out.
# ----------------------------------------------------------------------------
@partial(jax.jit, static_argnames=("n_blk",))
def decoder_forward(x, params, *, n_blk=4):
    N, C0, H, W = x.shape
    C1 = params["w1"].shape[1]
    C2 = params["w2"].shape[1]
    HW = H * W

    nb = max(1, min(n_blk, N))
    n_pad = -(-N // nb) * nb
    num_blocks = n_pad // nb

    # boundary glue only: NCHW -> NHWC (+ optional batch pad to a multiple of nb)
    x_nhwc = jnp.transpose(x, (0, 2, 3, 1)).astype(jnp.float32)
    if n_pad != N:
        x_nhwc = jnp.pad(x_nhwc, ((0, n_pad - N), (0, 0), (0, 0), (0, 0)))

    w1p, b1p = pack_deconv1_taps(params["w1"], params["b1"])
    w2p, b2p = pack_deconv2_window(params["w2"], params["b2"])

    ok = pl.pallas_call(
        _decoder_kernel,
        out_shape=jax.ShapeDtypeStruct((num_blocks, 16 * C2, nb * HW),
                                       jnp.float32),
        grid=(num_blocks,),
        in_specs=[
            pl.BlockSpec((nb, H, W, C0), lambda n: (n, 0, 0, 0)),
            pl.BlockSpec((9, C0, 4 * C1), lambda n: (0, 0, 0)),
            pl.BlockSpec((1, 4 * C1), lambda n: (0, 0)),
            pl.BlockSpec((36 * C1, 16 * C2), lambda n: (0, 0)),
            pl.BlockSpec((1, 16 * C2), lambda n: (0, 0)),
        ],
        out_specs=pl.BlockSpec((None, 16 * C2, nb * HW), lambda n: (n, 0, 0)),
        scratch_shapes=[
            pltpu.VMEM((nb, H + 2, W + 2, C0), jnp.float32),
            pltpu.VMEM((nb, H + 2, W + 2, 4 * C1), jnp.float32),
        ],
        compiler_params=pltpu.CompilerParams(
            dimension_semantics=("parallel",)),
    )(x_nhwc, w1p, b1p, w2p, b2p)

    # tiny boundary pixel-shuffle: decode the 16 output phases in XLA
    # ok rows  : (a, b, ph2, pw2, co);  ok cols: (n_local, u, v) per block
    t = ok.reshape(num_blocks, 2, 2, 2, 2, C2, nb, H, W)
    t = jnp.transpose(t, (0, 6, 5, 7, 1, 3, 8, 2, 4))   # (g,nl,co,u,a,ph2,v,b,pw2)
    return t.reshape(n_pad, C2, 4 * H, 4 * W)[:N]


# ----------------------------------------------------------------------------
# Pure-JAX reference (scatter formulation of ConvTranspose2d) for verification.
# ----------------------------------------------------------------------------
def conv_transpose2d_ref(x, w, b, *, stride, padding):
    N, Cin, H, W = x.shape
    Cout, K = w.shape[1], w.shape[2]
    s, p = stride, padding
    Hfull, Wfull = (H - 1) * s + K, (W - 1) * s + K
    full = jnp.zeros((N, Cout, Hfull, Wfull), jnp.float32)
    for kh in range(K):
        for kw in range(K):
            t = jnp.einsum("nchw,co->nohw", x, w[:, :, kh, kw])
            full = full.at[:, :, kh:kh + (H - 1) * s + 1:s,
                                 kw:kw + (W - 1) * s + 1:s].add(t)
    Hout, Wout = (H - 1) * s - 2 * p + K, (W - 1) * s - 2 * p + K
    return full[:, :, p:p + Hout, p:p + Wout] + b.reshape(1, Cout, 1, 1)


if __name__ == "__main__":
    key = jax.random.PRNGKey(0)
    k_x, k_w1, k_b1, k_w2, k_b2 = jax.random.split(key, 5)

    # small, shape-consistent example: x is (N, 32, 8, 8) -> output (N, 1, 32, 32)
    N, H, W = 8, 8, 8
    x = jax.random.normal(k_x, (N, 32, H, W), dtype=jnp.float32)

    # torch ConvTranspose2d weight layout: (Cin, Cout, K, K)
    fan1 = 32 * 6 * 6
    fan2 = 16 * 6 * 6
    params = {
        "w1": jax.random.uniform(k_w1, (32, 16, 6, 6), jnp.float32,
                                 -1.0 / np.sqrt(fan1), 1.0 / np.sqrt(fan1)),
        "b1": jax.random.uniform(k_b1, (16,), jnp.float32,
                                 -1.0 / np.sqrt(fan1), 1.0 / np.sqrt(fan1)),
        "w2": jax.random.uniform(k_w2, (16, 1, 6, 6), jnp.float32,
                                 -1.0 / np.sqrt(fan2), 1.0 / np.sqrt(fan2)),
        "b2": jax.random.uniform(k_b2, (1,), jnp.float32,
                                 -1.0 / np.sqrt(fan2), 1.0 / np.sqrt(fan2)),
    }

    out = decoder_forward(x, params)
    out = jax.block_until_ready(out)
    assert out.shape == (N, 1, 4 * H, 4 * W), out.shape

    # verify against a pure-JAX reference
    ref1 = conv_transpose2d_ref(x, params["w1"], params["b1"], stride=2, padding=2)
    ref = conv_transpose2d_ref(ref1, params["w2"], params["b2"], stride=2, padding=2)
    max_err = float(jnp.max(jnp.abs(out - ref)))
    assert max_err < 2e-4, f"max abs error {max_err}"

    print("KERNEL_OK")
</pallas_src>

<mosaic_0001>
module attributes {stable_mosaic.version = 11 : i64} {
  func.func @_decoder_kernel(%arg0: i32, %arg1: memref<4x8x8x32xf32, #tpu.memory_space<vmem>>, %arg2: memref<9x32x64xf32, #tpu.memory_space<vmem>>, %arg3: memref<1x64xf32, #tpu.memory_space<vmem>>, %arg4: memref<576x16xf32, #tpu.memory_space<vmem>>, %arg5: memref<1x16xf32, #tpu.memory_space<vmem>>, %arg6: memref<1x16x256xf32, #tpu.memory_space<vmem>>, %arg7: memref<4x10x10x32xf32, #tpu.memory_space<vmem>>, %arg8: memref<4x10x10x64xf32, #tpu.memory_space<vmem>>) attributes {dimension_semantics = [#tpu.dimension_semantics<parallel>], iteration_bounds = array<i64: 2>, scalar_prefetch = 0 : i64, scratch_operands = 2 : i64, tpu.core_type = #tpu.core_type<tc>, window_params = [{transform_indices = @transform_0, window_bounds = array<i64: 4, 8, 8, 32>}, {pipeline_mode = #tpu.pipeline_mode<synchronous>, transform_indices = @transform_1, window_bounds = array<i64: 9, 32, 64>}, {pipeline_mode = #tpu.pipeline_mode<synchronous>, transform_indices = @transform_2, window_bounds = array<i64: 1, 64>}, {pipeline_mode = #tpu.pipeline_mode<synchronous>, transform_indices = @transform_3, window_bounds = array<i64: 576, 16>}, {pipeline_mode = #tpu.pipeline_mode<synchronous>, transform_indices = @transform_4, window_bounds = array<i64: 1, 16>}, {transform_indices = @transform_5, window_bounds = array<i64: 1, 16, 256>}]} {
    %cst = arith.constant 0.000000e+00 : f32
    %0 = vector.broadcast %cst : f32 to vector<4x10x10x32xf32>
    %c0 = arith.constant 0 : index
    %c0_0 = arith.constant 0 : index
    %c0_1 = arith.constant 0 : index
    %c0_2 = arith.constant 0 : index
    %1 = vector.load %arg7[%c0, %c0_0, %c0_1, %c0_2] : memref<4x10x10x32xf32, #tpu.memory_space<vmem>>, vector<4x10x10x32xf32>
    tpu.vector_store %arg7[%c0, %c0_0, %c0_1, %c0_2], %0 {strides = array<i32>} : memref<4x10x10x32xf32, #tpu.memory_space<vmem>>, vector<4x10x10x32xf32>,
    %c0_3 = arith.constant 0 : index
    %c0_4 = arith.constant 0 : index
    %c0_5 = arith.constant 0 : index
    %c0_6 = arith.constant 0 : index
    %2 = vector.load %arg1[%c0_3, %c0_4, %c0_5, %c0_6] : memref<4x8x8x32xf32, #tpu.memory_space<vmem>>, vector<4x8x8x32xf32>
    %c0_7 = arith.constant 0 : index
    %c1 = arith.constant 1 : index
    %c1_8 = arith.constant 1 : index
    %c0_9 = arith.constant 0 : index
    %3 = vector.load %arg7[%c0_7, %c1, %c1_8, %c0_9] : memref<4x10x10x32xf32, #tpu.memory_space<vmem>>, vector<4x8x8x32xf32>
    tpu.vector_store %arg7[%c0_7, %c1, %c1_8, %c0_9], %2 {strides = array<i32>} : memref<4x10x10x32xf32, #tpu.memory_space<vmem>>, vector<4x8x8x32xf32>,
    %c0_10 = arith.constant 0 : index
    %c0_11 = arith.constant 0 : index
    %c0_12 = arith.constant 0 : index
    %c0_13 = arith.constant 0 : index
    %4 = vector.load %arg7[%c0_10, %c0_11, %c0_12, %c0_13] : memref<4x10x10x32xf32, #tpu.memory_space<vmem>>, vector<4x8x8x32xf32>
    %5 = vector.shape_cast %4 : vector<4x8x8x32xf32> to vector<256x32xf32>
    %c0_14 = arith.constant 0 : index
    %c0_15 = arith.constant 0 : index
    %c0_16 = arith.constant 0 : index
    %6 = vector.load %arg2[%c0_14, %c0_15, %c0_16] : memref<9x32x64xf32, #tpu.memory_space<vmem>>, vector<1x32x64xf32>
    %7 = vector.shape_cast %6 : vector<1x32x64xf32> to vector<32x64xf32>
    %cst_17 = arith.constant dense<0.000000e+00> : vector<256x64xf32>
    %8 = tpu.matmul %5, %7, %cst_17 {dimension_numbers = #tpu.dot_dimension_numbers<[1], [0], [0], [1], [0, 0, 1, 1], [], []>} : vector<256x32xf32>, vector<32x64xf32>, vector<256x64xf32> -> vector<256x64xf32>
    %c0_18 = arith.constant 0 : index
    %c0_19 = arith.constant 0 : index
    %c1_20 = arith.constant 1 : index
    %c0_21 = arith.constant 0 : index
    %9 = vector.load %arg7[%c0_18, %c0_19, %c1_20, %c0_21] : memref<4x10x10x32xf32, #tpu.memory_space<vmem>>, vector<4x8x8x32xf32>
    %10 = vector.shape_cast %9 : vector<4x8x8x32xf32> to vector<256x32xf32>
    %c1_22 = arith.constant 1 : index
    %c0_23 = arith.constant 0 : index
    %c0_24 = arith.constant 0 : index
    %11 = vector.load %arg2[%c1_22, %c0_23, %c0_24] : memref<9x32x64xf32, #tpu.memory_space<vmem>>, vector<1x32x64xf32>
    %12 = vector.shape_cast %11 : vector<1x32x64xf32> to vector<32x64xf32>
    %cst_25 = arith.constant dense<0.000000e+00> : vector<256x64xf32>
    %13 = tpu.matmul %10, %12, %cst_25 {dimension_numbers = #tpu.dot_dimension_numbers<[1], [0], [0], [1], [0, 0, 1, 1], [], []>} : vector<256x32xf32>, vector<32x64xf32>, vector<256x64xf32> -> vector<256x64xf32>
    %14 = arith.addf %8, %13 : vector<256x64xf32>
    %c0_26 = arith.constant 0 : index
    %c0_27 = arith.constant 0 : index
    %c2 = arith.constant 2 : index
    %c0_28 = arith.constant 0 : index
    %15 = vector.load %arg7[%c0_26, %c0_27, %c2, %c0_28] : memref<4x10x10x32xf32, #tpu.memory_space<vmem>>, vector<4x8x8x32xf32>
    %16 = vector.shape_cast %15 : vector<4x8x8x32xf32> to vector<256x32xf32>
    %c2_29 = arith.constant 2 : index
    %c0_30 = arith.constant 0 : index
    %c0_31 = arith.constant 0 : index
    %17 = vector.load %arg2[%c2_29, %c0_30, %c0_31] : memref<9x32x64xf32, #tpu.memory_space<vmem>>, vector<1x32x64xf32>
    %18 = vector.shape_cast %17 : vector<1x32x64xf32> to vector<32x64xf32>
    %cst_32 = arith.constant dense<0.000000e+00> : vector<256x64xf32>
    %19 = tpu.matmul %16, %18, %cst_32 {dimension_numbers = #tpu.dot_dimension_numbers<[1], [0], [0], [1], [0, 0, 1, 1], [], []>} : vector<256x32xf32>, vector<32x64xf32>, vector<256x64xf32> -> vector<256x64xf32>
    %20 = arith.addf %14, %19 : vector<256x64xf32>
    %c0_33 = arith.constant 0 : index
    %c1_34 = arith.constant 1 : index
    %c0_35 = arith.constant 0 : index
    %c0_36 = arith.constant 0 : index
    %21 = vector.load %arg7[%c0_33, %c1_34, %c0_35, %c0_36] : memref<4x10x10x32xf32, #tpu.memory_space<vmem>>, vector<4x8x8x32xf32>
    %22 = vector.shape_cast %21 : vector<4x8x8x32xf32> to vector<256x32xf32>
    %c3 = arith.constant 3 : index
    %c0_37 = arith.constant 0 : index
    %c0_38 = arith.constant 0 : index
    %23 = vector.load %arg2[%c3, %c0_37, %c0_38] : memref<9x32x64xf32, #tpu.memory_space<vmem>>, vector<1x32x64xf32>
    %24 = vector.shape_cast %23 : vector<1x32x64xf32> to vector<32x64xf32>
    %cst_39 = arith.constant dense<0.000000e+00> : vector<256x64xf32>
    %25 = tpu.matmul %22, %24, %cst_39 {dimension_numbers = #tpu.dot_dimension_numbers<[1], [0], [0], [1], [0, 0, 1, 1], [], []>} : vector<256x32xf32>, vector<32x64xf32>, vector<256x64xf32> -> vector<256x64xf32>
    %26 = arith.addf %20, %25 : vector<256x64xf32>
    %c0_40 = arith.constant 0 : index
    %c1_41 = arith.constant 1 : index
    %c1_42 = arith.constant 1 : index
    %c0_43 = arith.constant 0 : index
    %27 = vector.load %arg7[%c0_40, %c1_41, %c1_42, %c0_43] : memref<4x10x10x32xf32, #tpu.memory_space<vmem>>, vector<4x8x8x32xf32>
    %28 = vector.shape_cast %27 : vector<4x8x8x32xf32> to vector<256x32xf32>
    %c4 = arith.constant 4 : index
    %c0_44 = arith.constant 0 : index
    %c0_45 = arith.constant 0 : index
    %29 = vector.load %arg2[%c4, %c0_44, %c0_45] : memref<9x32x64xf32, #tpu.memory_space<vmem>>, vector<1x32x64xf32>
    %30 = vector.shape_cast %29 : vector<1x32x64xf32> to vector<32x64xf32>
    %cst_46 = arith.constant dense<0.000000e+00> : vector<256x64xf32>
    %31 = tpu.matmul %28, %30, %cst_46 {dimension_numbers = #tpu.dot_dimension_numbers<[1], [0], [0], [1], [0, 0, 1, 1], [], []>} : vector<256x32xf32>, vector<32x64xf32>, vector<256x64xf32> -> vector<256x64xf32>
    %32 = arith.addf %26, %31 : vector<256x64xf32>
    %c0_47 = arith.constant 0 : index
    %c1_48 = arith.constant 1 : index
    %c2_49 = arith.constant 2 : index
    %c0_50 = arith.constant 0 : index
    %33 = vector.load %arg7[%c0_47, %c1_48, %c2_49, %c0_50] : memref<4x10x10x32xf32, #tpu.memory_space<vmem>>, vector<4x8x8x32xf32>
    %34 = vector.shape_cast %33 : vector<4x8x8x32xf32> to vector<256x32xf32>
    %c5 = arith.constant 5 : index
    %c0_51 = arith.constant 0 : index
    %c0_52 = arith.constant 0 : index
    %35 = vector.load %arg2[%c5, %c0_51, %c0_52] : memref<9x32x64xf32, #tpu.memory_space<vmem>>, vector<1x32x64xf32>
    %36 = vector.shape_cast %35 : vector<1x32x64xf32> to vector<32x64xf32>
    %cst_53 = arith.constant dense<0.000000e+00> : vector<256x64xf32>
    %37 = tpu.matmul %34, %36, %cst_53 {dimension_numbers = #tpu.dot_dimension_numbers<[1], [0], [0], [1], [0, 0, 1, 1], [], []>} : vector<256x32xf32>, vector<32x64xf32>, vector<256x64xf32> -> vector<256x64xf32>
    %38 = arith.addf %32, %37 : vector<256x64xf32>
    %c0_54 = arith.constant 0 : index
    %c2_55 = arith.constant 2 : index
    %c0_56 = arith.constant 0 : index
    %c0_57 = arith.constant 0 : index
    %39 = vector.load %arg7[%c0_54, %c2_55, %c0_56, %c0_57] : memref<4x10x10x32xf32, #tpu.memory_space<vmem>>, vector<4x8x8x32xf32>
    %40 = vector.shape_cast %39 : vector<4x8x8x32xf32> to vector<256x32xf32>
    %c6 = arith.constant 6 : index
    %c0_58 = arith.constant 0 : index
    %c0_59 = arith.constant 0 : index
    %41 = vector.load %arg2[%c6, %c0_58, %c0_59] : memref<9x32x64xf32, #tpu.memory_space<vmem>>, vector<1x32x64xf32>
    %42 = vector.shape_cast %41 : vector<1x32x64xf32> to vector<32x64xf32>
    %cst_60 = arith.constant dense<0.000000e+00> : vector<256x64xf32>
    %43 = tpu.matmul %40, %42, %cst_60 {dimension_numbers = #tpu.dot_dimension_numbers<[1], [0], [0], [1], [0, 0, 1, 1], [], []>} : vector<256x32xf32>, vector<32x64xf32>, vector<256x64xf32> -> vector<256x64xf32>
    %44 = arith.addf %38, %43 : vector<256x64xf32>
    %c0_61 = arith.constant 0 : index
    %c2_62 = arith.constant 2 : index
    %c1_63 = arith.constant 1 : index
    %c0_64 = arith.constant 0 : index
    %45 = vector.load %arg7[%c0_61, %c2_62, %c1_63, %c0_64] : memref<4x10x10x32xf32, #tpu.memory_space<vmem>>, vector<4x8x8x32xf32>
    %46 = vector.shape_cast %45 : vector<4x8x8x32xf32> to vector<256x32xf32>
    %c7 = arith.constant 7 : index
    %c0_65 = arith.constant 0 : index
    %c0_66 = arith.constant 0 : index
    %47 = vector.load %arg2[%c7, %c0_65, %c0_66] : memref<9x32x64xf32, #tpu.memory_space<vmem>>, vector<1x32x64xf32>
    %48 = vector.shape_cast %47 : vector<1x32x64xf32> to vector<32x64xf32>
    %cst_67 = arith.constant dense<0.000000e+00> : vector<256x64xf32>
    %49 = tpu.matmul %46, %48, %cst_67 {dimension_numbers = #tpu.dot_dimension_numbers<[1], [0], [0], [1], [0, 0, 1, 1], [], []>} : vector<256x32xf32>, vector<32x64xf32>, vector<256x64xf32> -> vector<256x64xf32>
    %50 = arith.addf %44, %49 : vector<256x64xf32>
    %c0_68 = arith.constant 0 : index
    %c2_69 = arith.constant 2 : index
    %c2_70 = arith.constant 2 : index
    %c0_71 = arith.constant 0 : index
    %51 = vector.load %arg7[%c0_68, %c2_69, %c2_70, %c0_71] : memref<4x10x10x32xf32, #tpu.memory_space<vmem>>, vector<4x8x8x32xf32>
    %52 = vector.shape_cast %51 : vector<4x8x8x32xf32> to vector<256x32xf32>
    %c8 = arith.constant 8 : index
    %c0_72 = arith.constant 0 : index
    %c0_73 = arith.constant 0 : index
    %53 = vector.load %arg2[%c8, %c0_72, %c0_73] : memref<9x32x64xf32, #tpu.memory_space<vmem>>, vector<1x32x64xf32>
    %54 = vector.shape_cast %53 : vector<1x32x64xf32> to vector<32x64xf32>
    %cst_74 = arith.constant dense<0.000000e+00> : vector<256x64xf32>
    %55 = tpu.matmul %52, %54, %cst_74 {dimension_numbers = #tpu.dot_dimension_numbers<[1], [0], [0], [1], [0, 0, 1, 1], [], []>} : vector<256x32xf32>, vector<32x64xf32>, vector<256x64xf32> -> vector<256x64xf32>
    %56 = arith.addf %50, %55 : vector<256x64xf32>
    %c0_75 = arith.constant 0 : index
    %c0_76 = arith.constant 0 : index
    %57 = vector.load %arg3[%c0_75, %c0_76] : memref<1x64xf32, #tpu.memory_space<vmem>>, vector<1x64xf32>
    %58 = vector.broadcast %57 : vector<1x64xf32> to vector<256x64xf32>
    %59 = arith.addf %56, %58 : vector<256x64xf32>
    %cst_77 = arith.constant 0.000000e+00 : f32
    %60 = vector.broadcast %cst_77 : f32 to vector<4x10x10x64xf32>
    %c0_78 = arith.constant 0 : index
    %c0_79 = arith.constant 0 : index
    %c0_80 = arith.constant 0 : index
    %c0_81 = arith.constant 0 : index
    %61 = vector.load %arg8[%c0_78, %c0_79, %c0_80, %c0_81] : memref<4x10x10x64xf32, #tpu.memory_space<vmem>>, vector<4x10x10x64xf32>
    tpu.vector_store %arg8[%c0_78, %c0_79, %c0_80, %c0_81], %60 {strides = array<i32>} : memref<4x10x10x64xf32, #tpu.memory_space<vmem>>, vector<4x10x10x64xf32>,
    %62 = vector.shape_cast %59 : vector<256x64xf32> to vector<4x8x8x64xf32>
    %c0_82 = arith.constant 0 : index
    %c1_83 = arith.constant 1 : index
    %c1_84 = arith.constant 1 : index
    %c0_85 = arith.constant 0 : index
    %63 = vector.load %arg8[%c0_82, %c1_83, %c1_84, %c0_85] : memref<4x10x10x64xf32, #tpu.memory_space<vmem>>, vector<4x8x8x64xf32>
    tpu.vector_store %arg8[%c0_82, %c1_83, %c1_84, %c0_85], %62 {strides = array<i32>} : memref<4x10x10x64xf32, #tpu.memory_space<vmem>>, vector<4x8x8x64xf32>,
    %c0_86 = arith.constant 0 : index
    %c0_87 = arith.constant 0 : index
    %c0_88 = arith.constant 0 : index
    %c0_89 = arith.constant 0 : index
    %64 = vector.load %arg8[%c0_86, %c0_87, %c0_88, %c0_89] : memref<4x10x10x64xf32, #tpu.memory_space<vmem>>, vector<4x8x8x64xf32>
    %c0_90 = arith.constant 0 : index
    %c0_91 = arith.constant 0 : index
    %c1_92 = arith.constant 1 : index
    %c0_93 = arith.constant 0 : index
    %65 = vector.load %arg8[%c0_90, %c0_91, %c1_92, %c0_93] : memref<4x10x10x64xf32, #tpu.memory_space<vmem>>, vector<4x8x8x64xf32>
    %c0_94 = arith.constant 0 : index
    %c0_95 = arith.constant 0 : index
    %c2_96 = arith.constant 2 : index
    %c0_97 = arith.constant 0 : index
    %66 = vector.load %arg8[%c0_94, %c0_95, %c2_96, %c0_97] : memref<4x10x10x64xf32, #tpu.memory_space<vmem>>, vector<4x8x8x64xf32>
    %c0_98 = arith.constant 0 : index
    %c1_99 = arith.constant 1 : index
    %c0_100 = arith.constant 0 : index
    %c0_101 = arith.constant 0 : index
    %67 = vector.load %arg8[%c0_98, %c1_99, %c0_100, %c0_101] : memref<4x10x10x64xf32, #tpu.memory_space<vmem>>, vector<4x8x8x64xf32>
    %c0_102 = arith.constant 0 : index
    %c1_103 = arith.constant 1 : index
    %c1_104 = arith.constant 1 : index
    %c0_105 = arith.constant 0 : index
    %68 = vector.load %arg8[%c0_102, %c1_103, %c1_104, %c0_105] : memref<4x10x10x64xf32, #tpu.memory_space<vmem>>, vector<4x8x8x64xf32>
    %c0_106 = arith.constant 0 : index
    %c1_107 = arith.constant 1 : index
    %c2_108 = arith.constant 2 : index
    %c0_109 = arith.constant 0 : index
    %69 = vector.load %arg8[%c0_106, %c1_107, %c2_108, %c0_109] : memref<4x10x10x64xf32, #tpu.memory_space<vmem>>, vector<4x8x8x64xf32>
    %c0_110 = arith.constant 0 : index
    %c2_111 = arith.constant 2 : index
    %c0_112 = arith.constant 0 : index
    %c0_113 = arith.constant 0 : index
    %70 = vector.load %arg8[%c0_110, %c2_111, %c0_112, %c0_113] : memref<4x10x10x64xf32, #tpu.memory_space<vmem>>, vector<4x8x8x64xf32>
    %c0_114 = arith.constant 0 : index
    %c2_115 = arith.constant 2 : index
    %c1_116 = arith.constant 1 : index
    %c0_117 = arith.constant 0 : index
    %71 = vector.load %arg8[%c0_114, %c2_115, %c1_116, %c0_117] : memref<4x10x10x64xf32, #tpu.memory_space<vmem>>, vector<4x8x8x64xf32>
    %c0_118 = arith.constant 0 : index
    %c2_119 = arith.constant 2 : index
    %c2_120 = arith.constant 2 : index
    %c0_121 = arith.constant 0 : index
    %72 = vector.load %arg8[%c0_118, %c2_119, %c2_120, %c0_121] : memref<4x10x10x64xf32, #tpu.memory_space<vmem>>, vector<4x8x8x64xf32>
    %73 = tpu.concatenate %64, %65, %66, %67, %68, %69, %70, %71, %72 in 3 : vector<4x8x8x64xf32>, vector<4x8x8x64xf32>, vector<4x8x8x64xf32>, vector<4x8x8x64xf32>, vector<4x8x8x64xf32>, vector<4x8x8x64xf32>, vector<4x8x8x64xf32>, vector<4x8x8x64xf32>, vector<4x8x8x64xf32> -> vector<4x8x8x576xf32>
    %74 = vector.shape_cast %73 : vector<4x8x8x576xf32> to vector<256x576xf32>
    %c0_122 = arith.constant 0 : index
    %c0_123 = arith.constant 0 : index
    %75 = vector.load %arg4[%c0_122, %c0_123] : memref<576x16xf32, #tpu.memory_space<vmem>>, vector<576x16xf32>
    %cst_124 = arith.constant dense<0.000000e+00> : vector<256x16xf32>
    %76 = tpu.matmul %74, %75, %cst_124 {dimension_numbers = #tpu.dot_dimension_numbers<[1], [0], [0], [1], [0, 0, 1, 1], [], []>} : vector<256x576xf32>, vector<576x16xf32>, vector<256x16xf32> -> vector<256x16xf32>
    %c0_125 = arith.constant 0 : index
    %c0_126 = arith.constant 0 : index
    %77 = vector.load %arg5[%c0_125, %c0_126] : memref<1x16xf32, #tpu.memory_space<vmem>>, vector<1x16xf32>
    %78 = vector.broadcast %77 : vector<1x16xf32> to vector<256x16xf32>
    %79 = arith.addf %76, %78 : vector<256x16xf32>
    %80 = tpu.transpose %79, [1, 0] : vector<256x16xf32> -> vector<16x256xf32>
    %c0_127 = arith.constant 0 : index
    %c0_128 = arith.constant 0 : index
    %c0_129 = arith.constant 0 : index
    %81 = vector.load %arg6[%c0_127, %c0_128, %c0_129] : memref<1x16x256xf32, #tpu.memory_space<vmem>>, vector<1x16x256xf32>
    %82 = vector.shape_cast %81 : vector<1x16x256xf32> to vector<16x256xf32>
    %83 = vector.shape_cast %80 : vector<16x256xf32> to vector<1x16x256xf32>
    tpu.vector_store %arg6[%c0_127, %c0_128, %c0_129], %83 {strides = array<i32>} : memref<1x16x256xf32, #tpu.memory_space<vmem>>, vector<1x16x256xf32>,
    return
  }
  func.func @transform_0(%arg0: i32) -> (i32, i32, i32, i32) {
    %c0_i32 = arith.constant 0 : i32
    %c0_i32_0 = arith.constant 0 : i32
    %c0_i32_1 = arith.constant 0 : i32
    %c0_i32_2 = arith.constant 0 : i32
    return %arg0, %c0_i32, %c0_i32_0, %c0_i32_1 : i32, i32, i32, i32
  }
  func.func @transform_1(%arg0: i32) -> (i32, i32, i32) {
    %c0_i32 = arith.constant 0 : i32
    %c0_i32_0 = arith.constant 0 : i32
    %c0_i32_1 = arith.constant 0 : i32
    %c0_i32_2 = arith.constant 0 : i32
    return %c0_i32, %c0_i32_0, %c0_i32_1 : i32, i32, i32
  }
  func.func @transform_2(%arg0: i32) -> (i32, i32) {
    %c0_i32 = arith.constant 0 : i32
    %c0_i32_0 = arith.constant 0 : i32
    %c0_i32_1 = arith.constant 0 : i32
    return %c0_i32, %c0_i32_0 : i32, i32
  }
  func.func @transform_3(%arg0: i32) -> (i32, i32) {
    %c0_i32 = arith.constant 0 : i32
    %c0_i32_0 = arith.constant 0 : i32
    %c0_i32_1 = arith.constant 0 : i32
    return %c0_i32, %c0_i32_0 : i32, i32
  }
  func.func @transform_4(%arg0: i32) -> (i32, i32) {
    %c0_i32 = arith.constant 0 : i32
    %c0_i32_0 = arith.constant 0 : i32
    %c0_i32_1 = arith.constant 0 : i32
    return %c0_i32, %c0_i32_0 : i32, i32
  }
  func.func @transform_5(%arg0: i32) -> (i32, i32, i32) {
    %c0_i32 = arith.constant 0 : i32
    %c0_i32_0 = arith.constant 0 : i32
    %c0_i32_1 = arith.constant 0 : i32
    return %arg0, %c0_i32, %c0_i32_0 : i32, i32, i32
  }
}

</mosaic_0001>

<llo_original>
// kernel: tile.13
$region0: #{tile.13}
  #allocation2 [shape = 's32[1]{0}', space=sflag, size = 0x4, scoped, tag = 'scoped memory for tile.13']
  %s0 = inlined_call_operand.hbm [shape: f32[16], index: 0, kind: input, shape index: {}]
  %s1 = inlined_call_operand.vmem [shape: f32[4,16], index: 1, kind: output, shape index: {}]
  $region1: #{tile.13} parent=0
    #allocation0 [shape = 'u8[512]{0}', space=vmem, size = 0x400, scoped, tag = 'operand span for operand 0']
    #allocation1 [shape = 's32[1]{0}', space=sflag, size = 0x4, scoped, tag = 'scoped memory for tile.13']
    %2 = vsyncpa [#allocation1], 0
    // Predicated region
    $region2: #{tile.13} parent=1 // pred_check
      _
    $region3: #{tile.13} parent=1 // pred_check_branch
      %4 = sbr.rel (0) target = $region5
    $region4: #{tile.13} parent=1 // pred_region
      %s6 = ssub.s32 16, 16
      %7 = vsyncadd [#allocation1], %s6
      %s9 = sshll.u32 [#allocation0], 4
      %s10 = int_to_ptr.vmem [resolvable:$true] %s9
      %12 = dma.hbm_to_vmem [thread:$0]  %s0, 16, %s10, [#allocation1]
    $region5: #{tile.13} parent=1 // pred_fallthru
      _
    // Predicated region
    $region6: #{tile.13} parent=1 // pred_check
      _
    $region7: #{tile.13} parent=1 // pred_check_branch
      %14 = sbr.rel (0) target = $region9
    $region8: #{tile.13} parent=1 // pred_region
      %15 = dma.done [#allocation1], 16
    $region9: #{tile.13} parent=1 // pred_fallthru
      _
    %v16 = vld [vmem:[#allocation0] ss:$0 sm:$0xff]
    %17 = vst [vmem:[%s1] sm:$0xf] %v16
    %18 = vsyncpa [#allocation1], 1

// kernel: tile.14
$region0: #{tile.14}
  %s0 = inlined_call_operand.vmem [shape: f32[4,16], index: 0, kind: input, shape index: {}]
  %s1 = inlined_call_operand.vmem [shape: f32[1,64], index: 1, kind: output, shape index: {}]
  $region1: #{tile.14} parent=0
    #allocation0 [shape = 'u8[4096]{0}', space=vmem, size = 0x1000, scoped, tag = 'scoped mem for output reshape']
    #allocation1 [shape = 'u8[4096]{0}', space=vmem, size = 0x1000, scoped, tag = 'scoped mem for input reshape']
    %s3 = sshllo.u32 0, 4
    %v4 = vld [vmem:[%s0] sm:%s3]
    %5 = vst [vmem:[#allocation1] sm:%s3] %v4
    %v6 = vld [vmem:[#allocation1] sm:$0x1]
    %vm7 = vcmask 130048
    %8 = vst.msk [vmem:[#allocation0] sm:$0x1] %vm7, %v6
    %s9 = scalar_lea.vmem [#allocation1], 3
    %v10 = vld [vmem:[%s9] sm:$0x1]
    %11 = vrot.lane.b32.xlu0 %v10, 48
    %v12 = vpop.permute.xlu0 %11
    %vm13 = vcmask 523648
    %14 = vst.msk [vmem:[#allocation0] sm:$0x1] %vm13, %v12
    %s15 = scalar_lea.vmem [#allocation1], 2
    %v16 = vld [vmem:[%s15] sm:$0x1]
    %17 = vrot.lane.b32.xlu0 %v16, 32
    %v18 = vpop.permute.xlu0 %17
    %vm19 = vcmask 392448
    %20 = vst.msk [vmem:[#allocation0] sm:$0x1] %vm19, %v18
    %s21 = scalar_lea.vmem [#allocation1], 1
    %v22 = vld [vmem:[%s21] sm:$0x1]
    %23 = vrot.lane.b32.xlu0 %v22, 16
    %v24 = vpop.permute.xlu0 %23
    %vm25 = vcmask 261248
    %26 = vst.msk [vmem:[#allocation0] sm:$0x1] %vm25, %v24
    %s28 = sshllo.u32 0, 1
    %v30 = vld [vmem:[#allocation0] sm:%s28]
    %s31 = sshllo.u32 0, 1
    %32 = vst [vmem:[%s1] sm:%s31] %v30

// kernel: decoder_forward.1
$region0: #{decoder_forward.1}
  #allocation0 [shape = 'u32[]', space=smem, size = 0x4, offset = 0x4, fixed_abs, tag = 'smem constant byte address 0x4 - core index']
  #allocation1 [shape = 'u32[144,128]{1,0:T(1,128)}', space=vmem, size = 0x12000, scoped, tag = 'internal scratch']
  #allocation2 [shape = 'f32[4,10,10,32]{3,2,1,0:T(8,128)}', space=vmem, size = 0x50000, scoped, tag = 'scratch operand']
  #allocation3 [shape = 'f32[4,10,10,64]{3,2,1,0:T(8,128)}', space=vmem, size = 0x50000, scoped, tag = 'scratch operand']
  %s0 = inlined_call_operand.vmem [shape: f32[8,8,8,32], index: 0, kind: input, shape index: {}]
  %s1 = inlined_call_operand.vmem [shape: f32[9,32,64], index: 1, kind: input, shape index: {}]
  %s2 = inlined_call_operand.vmem [shape: f32[1,64], index: 2, kind: input, shape index: {}]
  %s3 = inlined_call_operand.vmem [shape: f32[576,16], index: 3, kind: input, shape index: {}]
  %s4 = inlined_call_operand.vmem [shape: f32[1,16], index: 4, kind: input, shape index: {}]
  %s5 = inlined_call_operand.vmem [shape: f32[2,16,256], index: 5, kind: output, shape index: {}]
  %s6 = sld [smem:[#allocation0]]
  $region53: #{decoder_forward.1} parent=0
    _
  %s8 = ssub.s32 1, %s6
  %s9 = scalar_select 0, %s8, %s6
  loop: start=0, step=1, limit=4
  $region2: #{decoder_forward.1} parent=0 // loop_pre_header
    _
  $region3: #{decoder_forward.1} parent=0 // loop_header
    %s11 = sphi 0, %s15
    %p12 = scmp.ge.s32.totalorder %s11, 4
    %s21 = sphi 0, %s23
    %s24 = sphi 0, %s21
    %s25 = sphi 0, %s24
    %s41 = sphi 0, %s25
    %s45 = sphi 0, %s45
    %s47 = sphi 0, %s45
    %s48 = sphi 0, %s47
    %s62 = sphi 0, %s48
    %s66 = sphi 0, %s66
    %s68 = sphi 0, %s66
    %s69 = sphi 0, %s68
    %s83 = sphi 0, %s69
    %s87 = sphi 0, %s87
    %s89 = sphi 0, %s87
    %s90 = sphi 0, %s89
    %s104 = sphi 0, %s90
    %s108 = sphi 0, %s108
    %s110 = sphi 0, %s108
    %s111 = sphi 0, %s110
    %s125 = sphi 0, %s111
    %s131 = sphi 0, %s133
    %s134 = sphi 0, %s131
    %s135 = sphi 0, %s134
    %s151 = sphi 0, %s135
  $region4: #{decoder_forward.1} parent=0 // loop_header_branch
    %14 = sbr.rel (%p12) target = $region8
  $region5: #{decoder_forward.1} parent=0 // loop_body
    %s16 = ssub.s32 %s11, 1
    %s17 = ssub.s32 %s11, 2
    %s18 = sadd.s32 %s11, 1
    %s19 = ssub.s32 %s11, %s18
    %p20 = scmp.eq.s32.totalorder %s19, 0
    %s22 = sadd.s32 %s21, 1
    %s23 = scalar_select %p20, %s21, %s22
    %p26 = pneg %p20
    %p27 = scmp.eq.s32.totalorder %s11, 1
    %p28 = por %p26, %p27
    %p29 = scmp.ne.s32.totalorder %s21, %s24
    %p30 = scmp.eq.s32.totalorder %s11, 0
    %p31 = por %p29, %p30
    %p32 = scmp.ne.s32.totalorder %s21, %s24
    %p33 = scmp.eq.s32.totalorder %s16, 1
    %p34 = por %p32, %p33
    %p35 = scmp.ne.s32.totalorder %s24, %s25
    %p36 = scmp.eq.s32.totalorder %s16, 0
    %p37 = por %p35, %p36
    %p38 = scmp.ne.s32.totalorder %s24, %s25
    %p39 = scmp.eq.s32.totalorder %s17, 1
    %p40 = por %p38, %p39
    %p42 = scmp.ne.s32.totalorder %s25, %s41
    %p43 = scmp.eq.s32.totalorder %s17, 0
    %p44 = por %p42, %p43
    %s46 = sadd.s32 %s45, 1
    %p49 = scmp.eq.s32.totalorder %s11, 1
    %p50 = scmp.ne.s32.totalorder %s45, %s47
    %p51 = scmp.eq.s32.totalorder %s11, 0
    %p52 = por %p50, %p51
    %p53 = scmp.ne.s32.totalorder %s45, %s47
    %p54 = scmp.eq.s32.totalorder %s16, 1
    %p55 = por %p53, %p54
    %p56 = scmp.ne.s32.totalorder %s47, %s48
    %p57 = scmp.eq.s32.totalorder %s16, 0
    %p58 = por %p56, %p57
    %p59 = scmp.ne.s32.totalorder %s47, %s48
    %p60 = scmp.eq.s32.totalorder %s17, 1
    %p61 = por %p59, %p60
    %p63 = scmp.ne.s32.totalorder %s48, %s62
    %p64 = scmp.eq.s32.totalorder %s17, 0
    %p65 = por %p63, %p64
    %s67 = sadd.s32 %s66, 1
    %p70 = scmp.eq.s32.totalorder %s11, 1
    %p71 = scmp.ne.s32.totalorder %s66, %s68
    %p72 = scmp.eq.s32.totalorder %s11, 0
    %p73 = por %p71, %p72
    %p74 = scmp.ne.s32.totalorder %s66, %s68
    %p75 = scmp.eq.s32.totalorder %s16, 1
    %p76 = por %p74, %p75
    %p77 = scmp.ne.s32.totalorder %s68, %s69
    %p78 = scmp.eq.s32.totalorder %s16, 0
    %p79 = por %p77, %p78
    %p80 = scmp.ne.s32.totalorder %s68, %s69
    %p81 = scmp.eq.s32.totalorder %s17, 1
    %p82 = por %p80, %p81
    %p84 = scmp.ne.s32.totalorder %s69, %s83
    %p85 = scmp.eq.s32.totalorder %s17, 0
    %p86 = por %p84, %p85
    %s88 = sadd.s32 %s87, 1
    %p91 = scmp.eq.s32.totalorder %s11, 1
    %p92 = scmp.ne.s32.totalorder %s87, %s89
    %p93 = scmp.eq.s32.totalorder %s11, 0
    %p94 = por %p92, %p93
    %p95 = scmp.ne.s32.totalorder %s87, %s89
    %p96 = scmp.eq.s32.totalorder %s16, 1
    %p97 = por %p95, %p96
    %p98 = scmp.ne.s32.totalorder %s89, %s90
    %p99 = scmp.eq.s32.totalorder %s16, 0
    %p100 = por %p98, %p99
    %p101 = scmp.ne.s32.totalorder %s89, %s90
    %p102 = scmp.eq.s32.totalorder %s17, 1
    %p103 = por %p101, %p102
    %p105 = scmp.ne.s32.totalorder %s90, %s104
    %p106 = scmp.eq.s32.totalorder %s17, 0
    %p107 = por %p105, %p106
    %s109 = sadd.s32 %s108, 1
    %p112 = scmp.eq.s32.totalorder %s11, 1
    %p113 = scmp.ne.s32.totalorder %s108, %s110
    %p114 = scmp.eq.s32.totalorder %s11, 0
    %p115 = por %p113, %p114
    %p116 = scmp.ne.s32.totalorder %s108, %s110
    %p117 = scmp.eq.s32.totalorder %s16, 1
    %p118 = por %p116, %p117
    %p119 = scmp.ne.s32.totalorder %s110, %s111
    %p120 = scmp.eq.s32.totalorder %s16, 0
    %p121 = por %p119, %p120
    %p122 = scmp.ne.s32.totalorder %s110, %s111
    %p123 = scmp.eq.s32.totalorder %s17, 1
    %p124 = por %p122, %p123
    %p126 = scmp.ne.s32.totalorder %s111, %s125
    %p127 = scmp.eq.s32.totalorder %s17, 0
    %p128 = por %p126, %p127
    %s129 = ssub.s32 %s11, %s18
    %p130 = scmp.eq.s32.totalorder %s129, 0
    %s132 = sadd.s32 %s131, 1
    %s133 = scalar_select %p130, %s131, %s132
    %p136 = pneg %p130
    %p137 = scmp.eq.s32.totalorder %s11, 1
    %p138 = por %p136, %p137
    %p139 = scmp.ne.s32.totalorder %s131, %s134
    %p140 = scmp.eq.s32.totalorder %s11, 0
    %p141 = por %p139, %p140
    %p142 = scmp.ne.s32.totalorder %s131, %s134
    %p143 = scmp.eq.s32.totalorder %s16, 1
    %p144 = por %p142, %p143
    %p145 = scmp.ne.s32.totalorder %s134, %s135
    %p146 = scmp.eq.s32.totalorder %s16, 0
    %p147 = por %p145, %p146
    %p148 = scmp.ne.s32.totalorder %s134, %s135
    %p149 = scmp.eq.s32.totalorder %s17, 1
    %p150 = por %p148, %p149
    %p152 = scmp.ne.s32.totalorder %s135, %s151
    %p153 = scmp.eq.s32.totalorder %s17, 0
    %p154 = por %p152, %p153
    %p155 = scmp.le.s32.totalorder 1, %s11
    %p156 = scmp.lt.s32.totalorder %s11, 3
    %p157 = pnand %p155, %p156
    %p158 = pneg %p157
    // Predicated region
    $region9: #{decoder_forward.1} parent=5 // pred_check
      _
    $region10: #{decoder_forward.1} parent=5 // pred_check_branch
      %160 = sbr.rel (%p157) target = $region12
    $region11: #{decoder_forward.1} parent=5 // pred_region
      %s161 = ssub.s32 %s11, 1
      // Predicated region
      $region13: #{decoder_forward.1} parent=11 // pred_check
        %p162 = pneg %p58
      $region14: #{decoder_forward.1} parent=11 // pred_check_branch
        %164 = sbr.rel (%p162) target = $region16
      $region15: #{decoder_forward.1} parent=11 // pred_region
        _
      $region16: #{decoder_forward.1} parent=11 // pred_fallthru
        _
      // Predicated region
      $region17: #{decoder_forward.1} parent=11 // pred_check
        %p165 = pneg %p79
      $region18: #{decoder_forward.1} parent=11 // pred_check_branch
        %167 = sbr.rel (%p165) target = $region20
      $region19: #{decoder_forward.1} parent=11 // pred_region
        _
      $region20: #{decoder_forward.1} parent=11 // pred_fallthru
        _
      // Predicated region
      $region21: #{decoder_forward.1} parent=11 // pred_check
        %p168 = pneg %p100
      $region22: #{decoder_forward.1} parent=11 // pred_check_branch
        %170 = sbr.rel (%p168) target = $region24
      $region23: #{decoder_forward.1} parent=11 // pred_region
        _
      $region24: #{decoder_forward.1} parent=11 // pred_fallthru
        _
      // Predicated region
      $region25: #{decoder_forward.1} parent=11 // pred_check
        %p171 = pneg %p121
      $region26: #{decoder_forward.1} parent=11 // pred_check_branch
        %173 = sbr.rel (%p171) target = $region28
      $region27: #{decoder_forward.1} parent=11 // pred_region
        _
      $region28: #{decoder_forward.1} parent=11 // pred_fallthru
        _
    $region12: #{decoder_forward.1} parent=5 // pred_fallthru
      _
    %p174 = scmp.lt.s32.totalorder %s11, 2
    // Predicated region
    $region29: #{decoder_forward.1} parent=5 // pred_check
      %p175 = pneg %p174
    $region30: #{decoder_forward.1} parent=5 // pred_check_branch
      %177 = sbr.rel (%p175) target = $region32
    $region31: #{decoder_forward.1} parent=5 // pred_region
      // Predicated region
      $region33: #{decoder_forward.1} parent=31 // pred_check
        %p178 = pneg %p31
      $region34: #{decoder_forward.1} parent=31 // pred_check_branch
        %180 = sbr.rel (%p178) target = $region36
      $region35: #{decoder_forward.1} parent=31 // pred_region
        %s181 = smul.u32 4, %s11
        %p182 = scmp.lt.s32.totalorder %s181, 7
        %s183 = scalar_select %p182, %s181, 7
        %s184 = smul.addr %s183, 8
        %s185 = smul.addr %s184, 8
        %s186 = scalar_lea.vmem %s0, %s185
        %s187 = smul.u32 4, %s11
      $region36: #{decoder_forward.1} parent=31 // pred_fallthru
        _
    $region32: #{decoder_forward.1} parent=5 // pred_fallthru
      _
    %p188 = scmp.le.s32.totalorder 1, %s11
    %p189 = scmp.lt.s32.totalorder %s11, 3
    %p190 = pnand %p188, %p189
    %p191 = pneg %p190
    // Predicated region
    $region37: #{decoder_forward.1} parent=5 // pred_check
      _
    $region38: #{decoder_forward.1} parent=5 // pred_check_branch
      %193 = sbr.rel (%p190) target = $region40
    $region39: #{decoder_forward.1} parent=5 // pred_region
      %s194 = ssub.s32 %s11, 1
      %s195 = smul.u32 4, %s16
      %p196 = scmp.lt.s32.totalorder %s195, 7
      %s197 = scalar_select %p196, %s195, 7
      %s198 = smul.addr %s197, 8
      %s199 = smul.addr %s198, 8
      %s200 = scalar_lea.vmem %s0, %s199
      %p201 = pneg %p37
      %p202 = pneg %p34
      %p203 = pneg %p58
      %p204 = pneg %p55
      %p205 = pneg %p79
      %p206 = pneg %p76
      %p207 = pneg %p100
      %p208 = pneg %p97
      %p209 = pneg %p121
      %p210 = pneg %p118
      %p211 = pneg %p147
      %p212 = pneg %p144
      %p213 = scmp.lt.s32.totalorder %s16, 1
      %s214 = scalar_select %p213, %s16, 1
      %s215 = smul.addr %s214, 4
      %s216 = smul.addr %s215, 8
      %s217 = scalar_lea.vmem %s5, %s216
      %s218 = smul.u32 4, %s16
      %p219 = scmp.lt.s32.totalorder %s218, 7
      %s220 = scalar_select %p219, %s218, 7
      %s221 = smul.addr %s220, 8
      %s222 = smul.addr %s221, 8
      %s223 = scalar_lea.vmem %s0, %s222
      %s224 = smul.u32 4, %s16
      %p225 = scmp.lt.s32.totalorder %s16, 1
      %s226 = scalar_select %p225, %s16, 1
      %s227 = smul.addr %s226, 4
      %s228 = smul.addr %s227, 8
      %s229 = scalar_lea.vmem %s5, %s228
      %vm230 = vcmask 261120
      %231 = vst.msk [vmem:[#allocation2] sm:$0xff] %vm230, 0.0
      %vm232 = vcmask 254976
      %233 = vst.msk [vmem:[#allocation2 + $0x8] sm:$0x3] %vm232, 0.0
      %234 = vst.msk [vmem:[#allocation2 + $0x10] sm:$0xff] %vm230, 0.0
      %235 = vst.msk [vmem:[#allocation2 + $0x18] sm:$0x3] %vm232, 0.0
      %236 = vst.msk [vmem:[#allocation2 + $0x20] sm:$0xff] %vm230, 0.0
      %237 = vst.msk [vmem:[#allocation2 + $0x28] sm:$0x3] %vm232, 0.0
      %238 = vst.msk [vmem:[#allocation2 + $0x30] sm:$0xff] %vm230, 0.0
      %239 = vst.msk [vmem:[#allocation2 + $0x38] sm:$0x3] %vm232, 0.0
      %240 = vst.msk [vmem:[#allocation2 + $0x40] sm:$0xff] %vm230, 0.0
      %241 = vst.msk [vmem:[#allocation2 + $0x48] sm:$0x3] %vm232, 0.0
      %242 = vst.msk [vmem:[#allocation2 + $0x50] sm:$0xff] %vm230, 0.0
      %243 = vst.msk [vmem:[#allocation2 + $0x58] sm:$0x3] %vm232, 0.0
      %244 = vst.msk [vmem:[#allocation2 + $0x60] sm:$0xff] %vm230, 0.0
      %245 = vst.msk [vmem:[#allocation2 + $0x68] sm:$0x3] %vm232, 0.0
      %246 = vst.msk [vmem:[#allocation2 + $0x70] sm:$0xff] %vm230, 0.0
      %247 = vst.msk [vmem:[#allocation2 + $0x78] sm:$0x3] %vm232, 0.0
      %248 = vst.msk [vmem:[#allocation2 + $0x80] sm:$0xff] %vm230, 0.0
      %249 = vst.msk [vmem:[#allocation2 + $0x88] sm:$0x3] %vm232, 0.0
      %250 = vst.msk [vmem:[#allocation2 + $0x90] sm:$0xff] %vm230, 0.0
      %251 = vst.msk [vmem:[#allocation2 + $0x98] sm:$0x3] %vm232, 0.0
      %252 = vst.msk [vmem:[#allocation2 + $0xa0] sm:$0xff] %vm230, 0.0
      %253 = vst.msk [vmem:[#allocation2 + $0xa8] sm:$0x3] %vm232, 0.0
      %254 = vst.msk [vmem:[#allocation2 + $0xb0] sm:$0xff] %vm230, 0.0
      %255 = vst.msk [vmem:[#allocation2 + $0xb8] sm:$0x3] %vm232, 0.0
      %256 = vst.msk [vmem:[#allocation2 + $0xc0] sm:$0xff] %vm230, 0.0
      %257 = vst.msk [vmem:[#allocation2 + $0xc8] sm:$0x3] %vm232, 0.0
      %258 = vst.msk [vmem:[#allocation2 + $0xd0] sm:$0xff] %vm230, 0.0
      %259 = vst.msk [vmem:[#allocation2 + $0xd8] sm:$0x3] %vm232, 0.0
      %260 = vst.msk [vmem:[#allocation2 + $0xe0] sm:$0xff] %vm230, 0.0
      %261 = vst.msk [vmem:[#allocation2 + $0xe8] sm:$0x3] %vm232, 0.0
      %262 = vst.msk [vmem:[#allocation2 + $0xf0] sm:$0xff] %vm230, 0.0
      %263 = vst.msk [vmem:[#allocation2 + $0xf8] sm:$0x3] %vm232, 0.0
      %264 = vst.msk [vmem:[#allocation2 + $0x100] sm:$0xff] %vm230, 0.0
      %265 = vst.msk [vmem:[#allocation2 + $0x108] sm:$0x3] %vm232, 0.0
      %266 = vst.msk [vmem:[#allocation2 + $0x110] sm:$0xff] %vm230, 0.0
      %267 = vst.msk [vmem:[#allocation2 + $0x118] sm:$0x3] %vm232, 0.0
      %268 = vst.msk [vmem:[#allocation2 + $0x120] sm:$0xff] %vm230, 0.0
      %269 = vst.msk [vmem:[#allocation2 + $0x128] sm:$0x3] %vm232, 0.0
      %270 = vst.msk [vmem:[#allocation2 + $0x130] sm:$0xff] %vm230, 0.0
      %271 = vst.msk [vmem:[#allocation2 + $0x138] sm:$0x3] %vm232, 0.0
      %272 = vst.msk [vmem:[#allocation2 + $0x140] sm:$0xff] %vm230, 0.0
      %273 = vst.msk [vmem:[#allocation2 + $0x148] sm:$0x3] %vm232, 0.0
      %274 = vst.msk [vmem:[#allocation2 + $0x150] sm:$0xff] %vm230, 0.0
      %275 = vst.msk [vmem:[#allocation2 + $0x158] sm:$0x3] %vm232, 0.0
      %276 = vst.msk [vmem:[#allocation2 + $0x160] sm:$0xff] %vm230, 0.0
      %277 = vst.msk [vmem:[#allocation2 + $0x168] sm:$0x3] %vm232, 0.0
      %278 = vst.msk [vmem:[#allocation2 + $0x170] sm:$0xff] %vm230, 0.0
      %279 = vst.msk [vmem:[#allocation2 + $0x178] sm:$0x3] %vm232, 0.0
      %280 = vst.msk [vmem:[#allocation2 + $0x180] sm:$0xff] %vm230, 0.0
      %281 = vst.msk [vmem:[#allocation2 + $0x188] sm:$0x3] %vm232, 0.0
      %282 = vst.msk [vmem:[#allocation2 + $0x190] sm:$0xff] %vm230, 0.0
      %283 = vst.msk [vmem:[#allocation2 + $0x198] sm:$0x3] %vm232, 0.0
      %284 = vst.msk [vmem:[#allocation2 + $0x1a0] sm:$0xff] %vm230, 0.0
      %285 = vst.msk [vmem:[#allocation2 + $0x1a8] sm:$0x3] %vm232, 0.0
      %286 = vst.msk [vmem:[#allocation2 + $0x1b0] sm:$0xff] %vm230, 0.0
      %287 = vst.msk [vmem:[#allocation2 + $0x1b8] sm:$0x3] %vm232, 0.0
      %288 = vst.msk [vmem:[#allocation2 + $0x1c0] sm:$0xff] %vm230, 0.0
      %289 = vst.msk [vmem:[#allocation2 + $0x1c8] sm:$0x3] %vm232, 0.0
      %290 = vst.msk [vmem:[#allocation2 + $0x1d0] sm:$0xff] %vm230, 0.0
      %291 = vst.msk [vmem:[#allocation2 + $0x1d8] sm:$0x3] %vm232, 0.0
      %292 = vst.msk [vmem:[#allocation2 + $0x1e0] sm:$0xff] %vm230, 0.0
      %293 = vst.msk [vmem:[#allocation2 + $0x1e8] sm:$0x3] %vm232, 0.0
      %294 = vst.msk [vmem:[#allocation2 + $0x1f0] sm:$0xff] %vm230, 0.0
      %295 = vst.msk [vmem:[#allocation2 + $0x1f8] sm:$0x3] %vm232, 0.0
      %296 = vst.msk [vmem:[#allocation2 + $0x200] sm:$0xff] %vm230, 0.0
      %297 = vst.msk [vmem:[#allocation2 + $0x208] sm:$0x3] %vm232, 0.0
      %298 = vst.msk [vmem:[#allocation2 + $0x210] sm:$0xff] %vm230, 0.0
      %299 = vst.msk [vmem:[#allocation2 + $0x218] sm:$0x3] %vm232, 0.0
      %300 = vst.msk [vmem:[#allocation2 + $0x220] sm:$0xff] %vm230, 0.0
      %301 = vst.msk [vmem:[#allocation2 + $0x228] sm:$0x3] %vm232, 0.0
      %302 = vst.msk [vmem:[#allocation2 + $0x230] sm:$0xff] %vm230, 0.0
      %303 = vst.msk [vmem:[#allocation2 + $0x238] sm:$0x3] %vm232, 0.0
      %304 = vst.msk [vmem:[#allocation2 + $0x240] sm:$0xff] %vm230, 0.0
      %305 = vst.msk [vmem:[#allocation2 + $0x248] sm:$0x3] %vm232, 0.0
      %306 = vst.msk [vmem:[#allocation2 + $0x250] sm:$0xff] %vm230, 0.0
      %307 = vst.msk [vmem:[#allocation2 + $0x258] sm:$0x3] %vm232, 0.0
      %308 = vst.msk [vmem:[#allocation2 + $0x260] sm:$0xff] %vm230, 0.0
      %309 = vst.msk [vmem:[#allocation2 + $0x268] sm:$0x3] %vm232, 0.0
      %310 = vst.msk [vmem:[#allocation2 + $0x270] sm:$0xff] %vm230, 0.0
      %311 = vst.msk [vmem:[#allocation2 + $0x278] sm:$0x3] %vm232, 0.0
      %v312 = vld [vmem:[%s223] sm:$0xff]
      %v313 = vld [vmem:[%s223 + $0x8] sm:$0xff]
      %v314 = vld [vmem:[%s223 + $0x10] sm:$0xff]
      %v315 = vld [vmem:[%s223 + $0x18] sm:$0xff]
      %v316 = vld [vmem:[%s223 + $0x20] sm:$0xff]
      %v317 = vld [vmem:[%s223 + $0x28] sm:$0xff]
      %v318 = vld [vmem:[%s223 + $0x30] sm:$0xff]
      %v319 = vld [vmem:[%s223 + $0x38] sm:$0xff]
      %v320 = vld [vmem:[%s223 + $0x40] sm:$0xff]
      %v321 = vld [vmem:[%s223 + $0x48] sm:$0xff]
      %v322 = vld [vmem:[%s223 + $0x50] sm:$0xff]
      %v323 = vld [vmem:[%s223 + $0x58] sm:$0xff]
      %v324 = vld [vmem:[%s223 + $0x60] sm:$0xff]
      %v325 = vld [vmem:[%s223 + $0x68] sm:$0xff]
      %v326 = vld [vmem:[%s223 + $0x70] sm:$0xff]
      %v327 = vld [vmem:[%s223 + $0x78] sm:$0xff]
      %v328 = vld [vmem:[%s223 + $0x80] sm:$0xff]
      %v329 = vld [vmem:[%s223 + $0x88] sm:$0xff]
      %v330 = vld [vmem:[%s223 + $0x90] sm:$0xff]
      %v331 = vld [vmem:[%s223 + $0x98] sm:$0xff]
      %v332 = vld [vmem:[%s223 + $0xa0] sm:$0xff]
      %v333 = vld [vmem:[%s223 + $0xa8] sm:$0xff]
      %v334 = vld [vmem:[%s223 + $0xb0] sm:$0xff]
      %v335 = vld [vmem:[%s223 + $0xb8] sm:$0xff]
      %v336 = vld [vmem:[%s223 + $0xc0] sm:$0xff]
      %v337 = vld [vmem:[%s223 + $0xc8] sm:$0xff]
      %v338 = vld [vmem:[%s223 + $0xd0] sm:$0xff]
      %v339 = vld [vmem:[%s223 + $0xd8] sm:$0xff]
      %v340 = vld [vmem:[%s223 + $0xe0] sm:$0xff]
      %v341 = vld [vmem:[%s223 + $0xe8] sm:$0xff]
      %v342 = vld [vmem:[%s223 + $0xf0] sm:$0xff]
      %v343 = vld [vmem:[%s223 + $0xf8] sm:$0xff]
      %s344 = scalar_lea.vmem [#allocation2], 16
      %345 = vst.msk [vmem:[%s344 + $0x1] sm:$0xff] %vm230, %v312
      %346 = vst.msk [vmem:[%s344 + $0x11] sm:$0xff] %vm230, %v313
      %347 = vst.msk [vmem:[%s344 + $0x21] sm:$0xff] %vm230, %v314
      %348 = vst.msk [vmem:[%s344 + $0x31] sm:$0xff] %vm230, %v315
      %349 = vst.msk [vmem:[%s344 + $0x41] sm:$0xff] %vm230, %v316
      %350 = vst.msk [vmem:[%s344 + $0x51] sm:$0xff] %vm230, %v317
      %351 = vst.msk [vmem:[%s344 + $0x61] sm:$0xff] %vm230, %v318
      %352 = vst.msk [vmem:[%s344 + $0x71] sm:$0xff] %vm230, %v319
      %353 = vst.msk [vmem:[%s344 + $0xa1] sm:$0xff] %vm230, %v320
      %354 = vst.msk [vmem:[%s344 + $0xb1] sm:$0xff] %vm230, %v321
      %355 = vst.msk [vmem:[%s344 + $0xc1] sm:$0xff] %vm230, %v322
      %356 = vst.msk [vmem:[%s344 + $0xd1] sm:$0xff] %vm230, %v323
      %357 = vst.msk [vmem:[%s344 + $0xe1] sm:$0xff] %vm230, %v324
      %358 = vst.msk [vmem:[%s344 + $0xf1] sm:$0xff] %vm230, %v325
      %359 = vst.msk [vmem:[%s344 + $0x101] sm:$0xff] %vm230, %v326
      %360 = vst.msk [vmem:[%s344 + $0x111] sm:$0xff] %vm230, %v327
      %361 = vst.msk [vmem:[%s344 + $0x141] sm:$0xff] %vm230, %v328
      %362 = vst.msk [vmem:[%s344 + $0x151] sm:$0xff] %vm230, %v329
      %363 = vst.msk [vmem:[%s344 + $0x161] sm:$0xff] %vm230, %v330
      %364 = vst.msk [vmem:[%s344 + $0x171] sm:$0xff] %vm230, %v331
      %365 = vst.msk [vmem:[%s344 + $0x181] sm:$0xff] %vm230, %v332
      %366 = vst.msk [vmem:[%s344 + $0x191] sm:$0xff] %vm230, %v333
      %367 = vst.msk [vmem:[%s344 + $0x1a1] sm:$0xff] %vm230, %v334
      %368 = vst.msk [vmem:[%s344 + $0x1b1] sm:$0xff] %vm230, %v335
      %369 = vst.msk [vmem:[%s344 + $0x1e1] sm:$0xff] %vm230, %v336
      %370 = vst.msk [vmem:[%s344 + $0x1f1] sm:$0xff] %vm230, %v337
      %371 = vst.msk [vmem:[%s344 + $0x201] sm:$0xff] %vm230, %v338
      %372 = vst.msk [vmem:[%s344 + $0x211] sm:$0xff] %vm230, %v339
      %373 = vst.msk [vmem:[%s344 + $0x221] sm:$0xff] %vm230, %v340
      %374 = vst.msk [vmem:[%s344 + $0x231] sm:$0xff] %vm230, %v341
      %375 = vst.msk [vmem:[%s344 + $0x241] sm:$0xff] %vm230, %v342
      %376 = vst.msk [vmem:[%s344 + $0x251] sm:$0xff] %vm230, %v343
      %v377 = vld [vmem:[#allocation2] sm:$0xff]
      %v378 = vld [vmem:[#allocation2 + $0x10] sm:$0xff]
      %v379 = vld [vmem:[#allocation2 + $0x20] sm:$0xff]
      %v380 = vld [vmem:[#allocation2 + $0x30] sm:$0xff]
      %v381 = vld [vmem:[#allocation2 + $0x40] sm:$0xff]
      %v382 = vld [vmem:[#allocation2 + $0x50] sm:$0xff]
      %v383 = vld [vmem:[#allocation2 + $0x60] sm:$0xff]
      %v384 = vld [vmem:[#allocation2 + $0x70] sm:$0xff]
      %v385 = vld [vmem:[#allocation2 + $0xa0] sm:$0xff]
      %v386 = vld [vmem:[#allocation2 + $0xb0] sm:$0xff]
      %v387 = vld [vmem:[#allocation2 + $0xc0] sm:$0xff]
      %v388 = vld [vmem:[#allocation2 + $0xd0] sm:$0xff]
      %v389 = vld [vmem:[#allocation2 + $0xe0] sm:$0xff]
      %v390 = vld [vmem:[#allocation2 + $0xf0] sm:$0xff]
      %v391 = vld [vmem:[#allocation2 + $0x100] sm:$0xff]
      %v392 = vld [vmem:[#allocation2 + $0x110] sm:$0xff]
      %v393 = vld [vmem:[#allocation2 + $0x140] sm:$0xff]
      %v394 = vld [vmem:[#allocation2 + $0x150] sm:$0xff]
      %v395 = vld [vmem:[#allocation2 + $0x160] sm:$0xff]
      %v396 = vld [vmem:[#allocation2 + $0x170] sm:$0xff]
      %v397 = vld [vmem:[#allocation2 + $0x180] sm:$0xff]
      %v398 = vld [vmem:[#allocation2 + $0x190] sm:$0xff]
      %v399 = vld [vmem:[#allocation2 + $0x1a0] sm:$0xff]
      %v400 = vld [vmem:[#allocation2 + $0x1b0] sm:$0xff]
      %v401 = vld [vmem:[#allocation2 + $0x1e0] sm:$0xff]
      %v402 = vld [vmem:[#allocation2 + $0x1f0] sm:$0xff]
      %v403 = vld [vmem:[#allocation2 + $0x200] sm:$0xff]
      %v404 = vld [vmem:[#allocation2 + $0x210] sm:$0xff]
      %v405 = vld [vmem:[#allocation2 + $0x220] sm:$0xff]
      %v406 = vld [vmem:[#allocation2 + $0x230] sm:$0xff]
      %v407 = vld [vmem:[#allocation2 + $0x240] sm:$0xff]
      %v408 = vld [vmem:[#allocation2 + $0x250] sm:$0xff]
      %v409 = vld [vmem:[%s1] sm:$0xff]
      %v410 = vld [vmem:[%s1 + $0x8] sm:$0xff]
      %v411 = vld [vmem:[%s1 + $0x10] sm:$0xff]
      %v412 = vld [vmem:[%s1 + $0x18] sm:$0xff]
      %v413 = vld [vmem:[#allocation2 + $0x1] sm:$0xff]
      %v414 = vld [vmem:[#allocation2 + $0x11] sm:$0xff]
      %v415 = vld [vmem:[#allocation2 + $0x21] sm:$0xff]
      %v416 = vld [vmem:[#allocation2 + $0x31] sm:$0xff]
      %v417 = vld [vmem:[#allocation2 + $0x41] sm:$0xff]
      %v418 = vld [vmem:[#allocation2 + $0x51] sm:$0xff]
      %v419 = vld [vmem:[#allocation2 + $0x61] sm:$0xff]
      %v420 = vld [vmem:[#allocation2 + $0x71] sm:$0xff]
      %v421 = vld [vmem:[#allocation2 + $0xa1] sm:$0xff]
      %v422 = vld [vmem:[#allocation2 + $0xb1] sm:$0xff]
      %v423 = vld [vmem:[#allocation2 + $0xc1] sm:$0xff]
      %v424 = vld [vmem:[#allocation2 + $0xd1] sm:$0xff]
      %v425 = vld [vmem:[#allocation2 + $0xe1] sm:$0xff]
      %v426 = vld [vmem:[#allocation2 + $0xf1] sm:$0xff]
      %v427 = vld [vmem:[#allocation2 + $0x101] sm:$0xff]
      %v428 = vld [vmem:[#allocation2 + $0x111] sm:$0xff]
      %v429 = vld [vmem:[#allocation2 + $0x141] sm:$0xff]
      %v430 = vld [vmem:[#allocation2 + $0x151] sm:$0xff]
      %v431 = vld [vmem:[#allocation2 + $0x161] sm:$0xff]
      %v432 = vld [vmem:[#allocation2 + $0x171] sm:$0xff]
      %v433 = vld [vmem:[#allocation2 + $0x181] sm:$0xff]
      %v434 = vld [vmem:[#allocation2 + $0x191] sm:$0xff]
      %v435 = vld [vmem:[#allocation2 + $0x1a1] sm:$0xff]
      %v436 = vld [vmem:[#allocation2 + $0x1b1] sm:$0xff]
      %v437 = vld [vmem:[#allocation2 + $0x1e1] sm:$0xff]
      %v438 = vld [vmem:[#allocation2 + $0x1f1] sm:$0xff]
      %v439 = vld [vmem:[#allocation2 + $0x201] sm:$0xff]
      %v440 = vld [vmem:[#allocation2 + $0x211] sm:$0xff]
      %v441 = vld [vmem:[#allocation2 + $0x221] sm:$0xff]
      %v442 = vld [vmem:[#allocation2 + $0x231] sm:$0xff]
      %v443 = vld [vmem:[#allocation2 + $0x241] sm:$0xff]
      %v444 = vld [vmem:[#allocation2 + $0x251] sm:$0xff]
      %s445 = scalar_lea.vmem %s1, 32
      %v446 = vld [vmem:[%s445] sm:$0xff]
      %v447 = vld [vmem:[%s445 + $0x8] sm:$0xff]
      %v448 = vld [vmem:[%s445 + $0x10] sm:$0xff]
      %v449 = vld [vmem:[%s445 + $0x18] sm:$0xff]
      %v451 = vsel %vm230, %v413, 0
      %v454 = vsel %vm230, %v414, 0
      %v457 = vsel %vm230, %v415, 0
      %v460 = vsel %vm230, %v416, 0
      %v463 = vsel %vm230, %v417, 0
      %v466 = vsel %vm230, %v418, 0
      %v469 = vsel %vm230, %v419, 0
      %v472 = vsel %vm230, %v420, 0
      %v475 = vsel %vm230, %v421, 0
      %v478 = vsel %vm230, %v422, 0
      %v481 = vsel %vm230, %v423, 0
      %v484 = vsel %vm230, %v424, 0
      %v487 = vsel %vm230, %v425, 0
      %v490 = vsel %vm230, %v426, 0
      %v493 = vsel %vm230, %v427, 0
      %v496 = vsel %vm230, %v428, 0
      %v499 = vsel %vm230, %v429, 0
      %v502 = vsel %vm230, %v430, 0
      %v505 = vsel %vm230, %v431, 0
      %v508 = vsel %vm230, %v432, 0
      %v511 = vsel %vm230, %v433, 0
      %v514 = vsel %vm230, %v434, 0
      %v517 = vsel %vm230, %v435, 0
      %v520 = vsel %vm230, %v436, 0
      %v523 = vsel %vm230, %v437, 0
      %v526 = vsel %vm230, %v438, 0
      %v529 = vsel %vm230, %v439, 0
      %v532 = vsel %vm230, %v440, 0
      %v535 = vsel %vm230, %v441, 0
      %v538 = vsel %vm230, %v442, 0
      %v541 = vsel %vm230, %v443, 0
      %v544 = vsel %vm230, %v444, 0
      %546 = vmatprep.subr.mxu0 0.0
      %547 = vmatpush1.msra.mxu0 %v446
      %548 = vmatprep.subr.mxu0 0.0
      %549 = vmatpush1.msra.mxu0 %v447
      %550 = vmatprep.subr.mxu0 0.0
      %551 = vmatpush1.msra.mxu0 %v448
      %552 = vmatprep.subr.mxu0 0.0
      %553 = vmatpush1.msra.mxu0 %v449
      %554 = vmatprep.subr.mxu0 0.0
      %555 = vmatpush1.msra.mxu0 0.0
      %556 = vmatprep.subr.mxu0 0.0
      %557 = vmatpush1.msra.mxu0 0.0
      %558 = vmatprep.subr.mxu0 0.0
      %559 = vmatpush1.msra.mxu0 0.0
      %560 = vmatprep.subr.mxu0 0.0
      %561 = vmatpush1.msra.mxu0 0.0
      %562 = vmatprep.subr.mxu0 0.0
      %563 = vmatpush1.msra.mxu0 0.0
      %564 = vmatprep.subr.mxu0 0.0
      %565 = vmatpush1.msra.mxu0 0.0
      %566 = vmatprep.subr.mxu0 0.0
      %567 = vmatpush1.msra.mxu0 0.0
      %568 = vmatprep.subr.mxu0 0.0
      %569 = vmatpush1.msra.mxu0 0.0
      %570 = vmatprep.subr.mxu0 0.0
      %571 = vmatpush1.msra.mxu0 0.0
      %572 = vmatprep.subr.mxu0 0.0
      %573 = vmatpush1.msra.mxu0 0.0
      %574 = vmatprep.subr.mxu0 0.0
      %575 = vmatpush1.msra.mxu0 0.0
      %576 = vmatprep.subr.mxu0 0.0
      %577 = vmatpush1.msra.mxu0 0.0
      %578 = vmatprep.subr.mxu0 0.0
      %579 = vmatpush1.msra.mxu0 0.0
      %580 = vmatprep.subr.mxu0 0.0
      %581 = vmatpush1.msra.mxu0 0.0
      %582 = vmatprep.subr.mxu0 0.0
      %583 = vmatpush1.msra.mxu0 0.0
      %584 = vmatprep.subr.mxu0 0.0
      %585 = vmatpush1.msra.mxu0 0.0
      %586 = vmatprep.subr.mxu0 0.0
      %587 = vmatpush1.msra.mxu0 0.0
      %588 = vmatprep.subr.mxu0 0.0
      %589 = vmatpush1.msra.mxu0 0.0
      %590 = vmatprep.subr.mxu0 0.0
      %591 = vmatpush1.msra.mxu0 0.0
      %592 = vmatprep.subr.mxu0 0.0
      %593 = vmatpush1.msra.mxu0 0.0
      %594 = vmatprep.subr.mxu0 0.0
      %595 = vmatpush1.msra.mxu0 0.0
      %596 = vmatprep.subr.mxu0 0.0
      %597 = vmatpush1.msra.mxu0 0.0
      %598 = vmatprep.subr.mxu0 0.0
      %599 = vmatpush1.msra.mxu0 0.0
      %600 = vmatprep.subr.mxu0 0.0
      %601 = vmatpush1.msra.mxu0 0.0
      %602 = vmatprep.subr.mxu0 0.0
      %603 = vmatpush1.msra.mxu0 0.0
      %604 = vmatprep.subr.mxu0 0.0
      %605 = vmatpush1.msra.mxu0 0.0
      %606 = vmatprep.subr.mxu0 0.0
      %607 = vmatpush1.msra.mxu0 0.0
      %608 = vmatprep.subr.mxu0 0.0
      %609 = vmatpush1.msra.mxu0 0.0
      %610 = vmatprep.mubr.f32.mxu0 0.0
      %611 = vmatmul.mubr.f32.gmra.mrb[0].mxu0 %v451
      %v612 = vpop.f32.mrb[0].mxu0
      %v613 = vadd.f32 0.0, %v612
      %v614 = vpop.f32.mrb[0].mxu0
      %615 = vmatprep.mubr.f32.mxu0 0.0
      %616 = vmatmul.mubr.f32.gmra.mrb[0].mxu0 %v454
      %v617 = vpop.f32.mrb[0].mxu0
      %v618 = vadd.f32 0.0, %v617
      %v619 = vpop.f32.mrb[0].mxu0
      %620 = vmatprep.mubr.f32.mxu0 0.0
      %621 = vmatmul.mubr.f32.gmra.mrb[0].mxu0 %v457
      %v622 = vpop.f32.mrb[0].mxu0
      %v623 = vadd.f32 0.0, %v622
      %v624 = vpop.f32.mrb[0].mxu0
      %625 = vmatprep.mubr.f32.mxu0 0.0
      %626 = vmatmul.mubr.f32.gmra.mrb[0].mxu0 %v460
      %v627 = vpop.f32.mrb[0].mxu0
      %v628 = vadd.f32 0.0, %v627
      %v629 = vpop.f32.mrb[0].mxu0
      %630 = vmatprep.mubr.f32.mxu0 0.0
      %631 = vmatmul.mubr.f32.gmra.mrb[0].mxu0 %v463
      %v632 = vpop.f32.mrb[0].mxu0
      %v633 = vadd.f32 0.0, %v632
      %v634 = vpop.f32.mrb[0].mxu0
      %635 = vmatprep.mubr.f32.mxu0 0.0
      %636 = vmatmul.mubr.f32.gmra.mrb[0].mxu0 %v466
      %v637 = vpop.f32.mrb[0].mxu0
      %v638 = vadd.f32 0.0, %v637
      %v639 = vpop.f32.mrb[0].mxu0
      %640 = vmatprep.mubr.f32.mxu0 0.0
      %641 = vmatmul.mubr.f32.gmra.mrb[0].mxu0 %v469
      %v642 = vpop.f32.mrb[0].mxu0
      %v643 = vadd.f32 0.0, %v642
      %v644 = vpop.f32.mrb[0].mxu0
      %645 = vmatprep.mubr.f32.mxu0 0.0
      %646 = vmatmul.mubr.f32.gmra.mrb[0].mxu0 %v472
      %v647 = vpop.f32.mrb[0].mxu0
      %v648 = vadd.f32 0.0, %v647
      %v649 = vpop.f32.mrb[0].mxu0
      %650 = vmatprep.mubr.f32.mxu0 0.0
      %651 = vmatmul.mubr.f32.gmra.mrb[0].mxu0 %v475
      %v652 = vpop.f32.mrb[0].mxu0
      %v653 = vadd.f32 0.0, %v652
      %v654 = vpop.f32.mrb[0].mxu0
      %655 = vmatprep.mubr.f32.mxu0 0.0
      %656 = vmatmul.mubr.f32.gmra.mrb[0].mxu0 %v478
      %v657 = vpop.f32.mrb[0].mxu0
      %v658 = vadd.f32 0.0, %v657
      %v659 = vpop.f32.mrb[0].mxu0
      %660 = vmatprep.mubr.f32.mxu0 0.0
      %661 = vmatmul.mubr.f32.gmra.mrb[0].mxu0 %v481
      %v662 = vpop.f32.mrb[0].mxu0
      %v663 = vadd.f32 0.0, %v662
      %v664 = vpop.f32.mrb[0].mxu0
      %665 = vmatprep.mubr.f32.mxu0 0.0
      %666 = vmatmul.mubr.f32.gmra.mrb[0].mxu0 %v484
      %v667 = vpop.f32.mrb[0].mxu0
      %v668 = vadd.f32 0.0, %v667
      %v669 = vpop.f32.mrb[0].mxu0
      %670 = vmatprep.mubr.f32.mxu0 0.0
      %671 = vmatmul.mubr.f32.gmra.mrb[0].mxu0 %v487
      %v672 = vpop.f32.mrb[0].mxu0
      %v673 = vadd.f32 0.0, %v672
      %v674 = vpop.f32.mrb[0].mxu0
      %675 = vmatprep.mubr.f32.mxu0 0.0
      %676 = vmatmul.mubr.f32.gmra.mrb[0].mxu0 %v490
      %v677 = vpop.f32.mrb[0].mxu0
      %v678 = vadd.f32 0.0, %v677
      %v679 = vpop.f32.mrb[0].mxu0
      %680 = vmatprep.mubr.f32.mxu0 0.0
      %681 = vmatmul.mubr.f32.gmra.mrb[0].mxu0 %v493
      %v682 = vpop.f32.mrb[0].mxu0
      %v683 = vadd.f32 0.0, %v682
      %v684 = vpop.f32.mrb[0].mxu0
      %685 = vmatprep.mubr.f32.mxu0 0.0
      %686 = vmatmul.mubr.f32.gmra.mrb[0].mxu0 %v496
      %v687 = vpop.f32.mrb[0].mxu0
      %v688 = vadd.f32 0.0, %v687
      %v689 = vpop.f32.mrb[0].mxu0
      %690 = vmatprep.mubr.f32.mxu0 0.0
      %691 = vmatmul.mubr.f32.gmra.mrb[0].mxu0 %v499
      %v692 = vpop.f32.mrb[0].mxu0
      %v693 = vadd.f32 0.0, %v692
      %v694 = vpop.f32.mrb[0].mxu0
      %695 = vmatprep.mubr.f32.mxu0 0.0
      %696 = vmatmul.mubr.f32.gmra.mrb[0].mxu0 %v502
      %v697 = vpop.f32.mrb[0].mxu0
      %v698 = vadd.f32 0.0, %v697
      %v699 = vpop.f32.mrb[0].mxu0
      %700 = vmatprep.mubr.f32.mxu0 0.0
      %701 = vmatmul.mubr.f32.gmra.mrb[0].mxu0 %v505
      %v702 = vpop.f32.mrb[0].mxu0
      %v703 = vadd.f32 0.0, %v702
      %v704 = vpop.f32.mrb[0].mxu0
      %705 = vmatprep.mubr.f32.mxu0 0.0
      %706 = vmatmul.mubr.f32.gmra.mrb[0].mxu0 %v508
      %v707 = vpop.f32.mrb[0].mxu0
      %v708 = vadd.f32 0.0, %v707
      %v709 = vpop.f32.mrb[0].mxu0
      %710 = vmatprep.mubr.f32.mxu0 0.0
      %711 = vmatmul.mubr.f32.gmra.mrb[0].mxu0 %v511
      %v712 = vpop.f32.mrb[0].mxu0
      %v713 = vadd.f32 0.0, %v712
      %v714 = vpop.f32.mrb[0].mxu0
      %715 = vmatprep.mubr.f32.mxu0 0.0
      %716 = vmatmul.mubr.f32.gmra.mrb[0].mxu0 %v514
      %v717 = vpop.f32.mrb[0].mxu0
      %v718 = vadd.f32 0.0, %v717
      %v719 = vpop.f32.mrb[0].mxu0
      %720 = vmatprep.mubr.f32.mxu0 0.0
      %721 = vmatmul.mubr.f32.gmra.mrb[0].mxu0 %v517
      %v722 = vpop.f32.mrb[0].mxu0
      %v723 = vadd.f32 0.0, %v722
      %v724 = vpop.f32.mrb[0].mxu0
      %725 = vmatprep.mubr.f32.mxu0 0.0
      %726 = vmatmul.mubr.f32.gmra.mrb[0].mxu0 %v520
      %v727 = vpop.f32.mrb[0].mxu0
      %v728 = vadd.f32 0.0, %v727
      %v729 = vpop.f32.mrb[0].mxu0
      %730 = vmatprep.mubr.f32.mxu0 0.0
      %731 = vmatmul.mubr.f32.gmra.mrb[0].mxu0 %v523
      %v732 = vpop.f32.mrb[0].mxu0
      %v733 = vadd.f32 0.0, %v732
      %v734 = vpop.f32.mrb[0].mxu0
      %735 = vmatprep.mubr.f32.mxu0 0.0
      %736 = vmatmul.mubr.f32.gmra.mrb[0].mxu0 %v526
      %v737 = vpop.f32.mrb[0].mxu0
      %v738 = vadd.f32 0.0, %v737
      %v739 = vpop.f32.mrb[0].mxu0
      %740 = vmatprep.mubr.f32.mxu0 0.0
      %741 = vmatmul.mubr.f32.gmra.mrb[0].mxu0 %v529
      %v742 = vpop.f32.mrb[0].mxu0
      %v743 = vadd.f32 0.0, %v742
      %v744 = vpop.f32.mrb[0].mxu0
      %745 = vmatprep.mubr.f32.mxu0 0.0
      %746 = vmatmul.mubr.f32.gmra.mrb[0].mxu0 %v532
      %v747 = vpop.f32.mrb[0].mxu0
      %v748 = vadd.f32 0.0, %v747
      %v749 = vpop.f32.mrb[0].mxu0
      %750 = vmatprep.mubr.f32.mxu0 0.0
      %751 = vmatmul.mubr.f32.gmra.mrb[0].mxu0 %v535
      %v752 = vpop.f32.mrb[0].mxu0
      %v753 = vadd.f32 0.0, %v752
      %v754 = vpop.f32.mrb[0].mxu0
      %755 = vmatprep.mubr.f32.mxu0 0.0
      %756 = vmatmul.mubr.f32.gmra.mrb[0].mxu0 %v538
      %v757 = vpop.f32.mrb[0].mxu0
      %v758 = vadd.f32 0.0, %v757
      %v759 = vpop.f32.mrb[0].mxu0
      %760 = vmatprep.mubr.f32.mxu0 0.0
      %761 = vmatmul.mubr.f32.gmra.mrb[0].mxu0 %v541
      %v762 = vpop.f32.mrb[0].mxu0
      %v763 = vadd.f32 0.0, %v762
      %v764 = vpop.f32.mrb[0].mxu0
      %765 = vmatprep.mubr.f32.mxu0 0.0
      %766 = vmatmul.mubr.f32.gmra.mrb[0].mxu0 %v544
      %v767 = vpop.f32.mrb[0].mxu0
      %v768 = vadd.f32 0.0, %v767
      %v769 = vpop.f32.mrb[0].mxu0
      %770 = vdwg.mxu0
      %v772 = vsel %vm230, %v377, 0
      %v775 = vsel %vm230, %v378, 0
      %v778 = vsel %vm230, %v379, 0
      %v781 = vsel %vm230, %v380, 0
      %v784 = vsel %vm230, %v381, 0
      %v787 = vsel %vm230, %v382, 0
      %v790 = vsel %vm230, %v383, 0
      %v793 = vsel %vm230, %v384, 0
      %v796 = vsel %vm230, %v385, 0
      %v799 = vsel %vm230, %v386, 0
      %v802 = vsel %vm230, %v387, 0
      %v805 = vsel %vm230, %v388, 0
      %v808 = vsel %vm230, %v389, 0
      %v811 = vsel %vm230, %v390, 0
      %v814 = vsel %vm230, %v391, 0
      %v817 = vsel %vm230, %v392, 0
      %v820 = vsel %vm230, %v393, 0
      %v823 = vsel %vm230, %v394, 0
      %v826 = vsel %vm230, %v395, 0
      %v829 = vsel %vm230, %v396, 0
      %v832 = vsel %vm230, %v397, 0
      %v835 = vsel %vm230, %v398, 0
      %v838 = vsel %vm230, %v399, 0
      %v841 = vsel %vm230, %v400, 0
      %v844 = vsel %vm230, %v401, 0
      %v847 = vsel %vm230, %v402, 0
      %v850 = vsel %vm230, %v403, 0
      %v853 = vsel %vm230, %v404, 0
      %v856 = vsel %vm230, %v405, 0
      %v859 = vsel %vm230, %v406, 0
      %v862 = vsel %vm230, %v407, 0
      %v865 = vsel %vm230, %v408, 0
      %867 = vmatprep.subr.mxu0 0.0
      %868 = vmatpush1.msra.mxu0 %v409
      %869 = vmatprep.subr.mxu0 0.0
      %870 = vmatpush1.msra.mxu0 %v410
      %871 = vmatprep.subr.mxu0 0.0
      %872 = vmatpush1.msra.mxu0 %v411
      %873 = vmatprep.subr.mxu0 0.0
      %874 = vmatpush1.msra.mxu0 %v412
      %875 = vmatprep.subr.mxu0 0.0
      %876 = vmatpush1.msra.mxu0 0.0
      %877 = vmatprep.subr.mxu0 0.0
      %878 = vmatpush1.msra.mxu0 0.0
      %879 = vmatprep.subr.mxu0 0.0
      %880 = vmatpush1.msra.mxu0 0.0
      %881 = vmatprep.subr.mxu0 0.0
      %882 = vmatpush1.msra.mxu0 0.0
      %883 = vmatprep.subr.mxu0 0.0
      %884 = vmatpush1.msra.mxu0 0.0
      %885 = vmatprep.subr.mxu0 0.0
      %886 = vmatpush1.msra.mxu0 0.0
      %887 = vmatprep.subr.mxu0 0.0
      %888 = vmatpush1.msra.mxu0 0.0
      %889 = vmatprep.subr.mxu0 0.0
      %890 = vmatpush1.msra.mxu0 0.0
      %891 = vmatprep.subr.mxu0 0.0
      %892 = vmatpush1.msra.mxu0 0.0
      %893 = vmatprep.subr.mxu0 0.0
      %894 = vmatpush1.msra.mxu0 0.0
      %895 = vmatprep.subr.mxu0 0.0
      %896 = vmatpush1.msra.mxu0 0.0
      %897 = vmatprep.subr.mxu0 0.0
      %898 = vmatpush1.msra.mxu0 0.0
      %899 = vmatprep.subr.mxu0 0.0
      %900 = vmatpush1.msra.mxu0 0.0
      %901 = vmatprep.subr.mxu0 0.0
      %902 = vmatpush1.msra.mxu0 0.0
      %903 = vmatprep.subr.mxu0 0.0
      %904 = vmatpush1.msra.mxu0 0.0
      %905 = vmatprep.subr.mxu0 0.0
      %906 = vmatpush1.msra.mxu0 0.0
      %907 = vmatprep.subr.mxu0 0.0
      %908 = vmatpush1.msra.mxu0 0.0
      %909 = vmatprep.subr.mxu0 0.0
      %910 = vmatpush1.msra.mxu0 0.0
      %911 = vmatprep.subr.mxu0 0.0
      %912 = vmatpush1.msra.mxu0 0.0
      %913 = vmatprep.subr.mxu0 0.0
      %914 = vmatpush1.msra.mxu0 0.0
      %915 = vmatprep.subr.mxu0 0.0
      %916 = vmatpush1.msra.mxu0 0.0
      %917 = vmatprep.subr.mxu0 0.0
      %918 = vmatpush1.msra.mxu0 0.0
      %919 = vmatprep.subr.mxu0 0.0
      %920 = vmatpush1.msra.mxu0 0.0
      %921 = vmatprep.subr.mxu0 0.0
      %922 = vmatpush1.msra.mxu0 0.0
      %923 = vmatprep.subr.mxu0 0.0
      %924 = vmatpush1.msra.mxu0 0.0
      %925 = vmatprep.subr.mxu0 0.0
      %926 = vmatpush1.msra.mxu0 0.0
      %927 = vmatprep.subr.mxu0 0.0
      %928 = vmatpush1.msra.mxu0 0.0
      %929 = vmatprep.subr.mxu0 0.0
      %930 = vmatpush1.msra.mxu0 0.0
      %931 = vmatprep.mubr.f32.mxu0 0.0
      %932 = vmatmul.mubr.f32.gmra.mrb[0].mxu0 %v772
      %v933 = vpop.f32.mrb[0].mxu0
      %v934 = vadd.f32 %v613, %v933
      %v935 = vpop.f32.mrb[0].mxu0
      %936 = vmatprep.mubr.f32.mxu0 0.0
      %937 = vmatmul.mubr.f32.gmra.mrb[0].mxu0 %v775
      %v938 = vpop.f32.mrb[0].mxu0
      %v939 = vadd.f32 %v618, %v938
      %v940 = vpop.f32.mrb[0].mxu0
      %941 = vmatprep.mubr.f32.mxu0 0.0
      %942 = vmatmul.mubr.f32.gmra.mrb[0].mxu0 %v778
      %v943 = vpop.f32.mrb[0].mxu0
      %v944 = vadd.f32 %v623, %v943
      %v945 = vpop.f32.mrb[0].mxu0
      %946 = vmatprep.mubr.f32.mxu0 0.0
      %947 = vmatmul.mubr.f32.gmra.mrb[0].mxu0 %v781
      %v948 = vpop.f32.mrb[0].mxu0
      %v949 = vadd.f32 %v628, %v948
      %v950 = vpop.f32.mrb[0].mxu0
      %951 = vmatprep.mubr.f32.mxu0 0.0
      %952 = vmatmul.mubr.f32.gmra.mrb[0].mxu0 %v784
      %v953 = vpop.f32.mrb[0].mxu0
      %v954 = vadd.f32 %v633, %v953
      %v955 = vpop.f32.mrb[0].mxu0
      %956 = vmatprep.mubr.f32.mxu0 0.0
      %957 = vmatmul.mubr.f32.gmra.mrb[0].mxu0 %v787
      %v958 = vpop.f32.mrb[0].mxu0
      %v959 = vadd.f32 %v638, %v958
      %v960 = vpop.f32.mrb[0].mxu0
      %961 = vmatprep.mubr.f32.mxu0 0.0
      %962 = vmatmul.mubr.f32.gmra.mrb[0].mxu0 %v790
      %v963 = vpop.f32.mrb[0].mxu0
      %v964 = vadd.f32 %v643, %v963
      %v965 = vpop.f32.mrb[0].mxu0
      %966 = vmatprep.mubr.f32.mxu0 0.0
      %967 = vmatmul.mubr.f32.gmra.mrb[0].mxu0 %v793
      %v968 = vpop.f32.mrb[0].mxu0
      %v969 = vadd.f32 %v648, %v968
      %v970 = vpop.f32.mrb[0].mxu0
      %971 = vmatprep.mubr.f32.mxu0 0.0
      %972 = vmatmul.mubr.f32.gmra.mrb[0].mxu0 %v796
      %v973 = vpop.f32.mrb[0].mxu0
      %v974 = vadd.f32 %v653, %v973
      %v975 = vpop.f32.mrb[0].mxu0
      %976 = vmatprep.mubr.f32.mxu0 0.0
      %977 = vmatmul.mubr.f32.gmra.mrb[0].mxu0 %v799
      %v978 = vpop.f32.mrb[0].mxu0
      %v979 = vadd.f32 %v658, %v978
      %v980 = vpop.f32.mrb[0].mxu0
      %981 = vmatprep.mubr.f32.mxu0 0.0
      %982 = vmatmul.mubr.f32.gmra.mrb[0].mxu0 %v802
      %v983 = vpop.f32.mrb[0].mxu0
      %v984 = vadd.f32 %v663, %v983
      %v985 = vpop.f32.mrb[0].mxu0
      %986 = vmatprep.mubr.f32.mxu0 0.0
      %987 = vmatmul.mubr.f32.gmra.mrb[0].mxu0 %v805
      %v988 = vpop.f32.mrb[0].mxu0
      %v989 = vadd.f32 %v668, %v988
      %v990 = vpop.f32.mrb[0].mxu0
      %991 = vmatprep.mubr.f32.mxu0 0.0
      %992 = vmatmul.mubr.f32.gmra.mrb[0].mxu0 %v808
      %v993 = vpop.f32.mrb[0].mxu0
      %v994 = vadd.f32 %v673, %v993
      %v995 = vpop.f32.mrb[0].mxu0
      %996 = vmatprep.mubr.f32.mxu0 0.0
      %997 = vmatmul.mubr.f32.gmra.mrb[0].mxu0 %v811
      %v998 = vpop.f32.mrb[0].mxu0
      %v999 = vadd.f32 %v678, %v998
      %v1000 = vpop.f32.mrb[0].mxu0
      %1001 = vmatprep.mubr.f32.mxu0 0.0
      %1002 = vmatmul.mubr.f32.gmra.mrb[0].mxu0 %v814
      %v1003 = vpop.f32.mrb[0].mxu0
      %v1004 = vadd.f32 %v683, %v1003
      %v1005 = vpop.f32.mrb[0].mxu0
      %1006 = vmatprep.mubr.f32.mxu0 0.0
      %1007 = vmatmul.mubr.f32.gmra.mrb[0].mxu0 %v817
      %v1008 = vpop.f32.mrb[0].mxu0
      %v1009 = vadd.f32 %v688, %v1008
      %v1010 = vpop.f32.mrb[0].mxu0
      %1011 = vmatprep.mubr.f32.mxu0 0.0
      %1012 = vmatmul.mubr.f32.gmra.mrb[0].mxu0 %v820
      %v1013 = vpop.f32.mrb[0].mxu0
      %v1014 = vadd.f32 %v693, %v1013
      %v1015 = vpop.f32.mrb[0].mxu0
      %1016 = vmatprep.mubr.f32.mxu0 0.0
      %1017 = vmatmul.mubr.f32.gmra.mrb[0].mxu0 %v823
      %v1018 = vpop.f32.mrb[0].mxu0
      %v1019 = vadd.f32 %v698, %v1018
      %v1020 = vpop.f32.mrb[0].mxu0
      %1021 = vmatprep.mubr.f32.mxu0 0.0
      %1022 = vmatmul.mubr.f32.gmra.mrb[0].mxu0 %v826
      %v1023 = vpop.f32.mrb[0].mxu0
      %v1024 = vadd.f32 %v703, %v1023
      %v1025 = vpop.f32.mrb[0].mxu0
      %1026 = vmatprep.mubr.f32.mxu0 0.0
      %1027 = vmatmul.mubr.f32.gmra.mrb[0].mxu0 %v829
      %v1028 = vpop.f32.mrb[0].mxu0
      %v1029 = vadd.f32 %v708, %v1028
      %v1030 = vpop.f32.mrb[0].mxu0
      %1031 = vmatprep.mubr.f32.mxu0 0.0
      %1032 = vmatmul.mubr.f32.gmra.mrb[0].mxu0 %v832
      %v1033 = vpop.f32.mrb[0].mxu0
      %v1034 = vadd.f32 %v713, %v1033
      %v1035 = vpop.f32.mrb[0].mxu0
      %1036 = vmatprep.mubr.f32.mxu0 0.0
      %1037 = vmatmul.mubr.f32.gmra.mrb[0].mxu0 %v835
      %v1038 = vpop.f32.mrb[0].mxu0
      %v1039 = vadd.f32 %v718, %v1038
      %v1040 = vpop.f32.mrb[0].mxu0
      %1041 = vmatprep.mubr.f32.mxu0 0.0
      %1042 = vmatmul.mubr.f32.gmra.mrb[0].mxu0 %v838
      %v1043 = vpop.f32.mrb[0].mxu0
      %v1044 = vadd.f32 %v723, %v1043
      %v1045 = vpop.f32.mrb[0].mxu0
      %1046 = vmatprep.mubr.f32.mxu0 0.0
      %1047 = vmatmul.mubr.f32.gmra.mrb[0].mxu0 %v841
      %v1048 = vpop.f32.mrb[0].mxu0
      %v1049 = vadd.f32 %v728, %v1048
      %v1050 = vpop.f32.mrb[0].mxu0
      %1051 = vmatprep.mubr.f32.mxu0 0.0
      %1052 = vmatmul.mubr.f32.gmra.mrb[0].mxu0 %v844
      %v1053 = vpop.f32.mrb[0].mxu0
      %v1054 = vadd.f32 %v733, %v1053
      %v1055 = vpop.f32.mrb[0].mxu0
      %1056 = vmatprep.mubr.f32.mxu0 0.0
      %1057 = vmatmul.mubr.f32.gmra.mrb[0].mxu0 %v847
      %v1058 = vpop.f32.mrb[0].mxu0
      %v1059 = vadd.f32 %v738, %v1058
      %v1060 = vpop.f32.mrb[0].mxu0
      %1061 = vmatprep.mubr.f32.mxu0 0.0
      %1062 = vmatmul.mubr.f32.gmra.mrb[0].mxu0 %v850
      %v1063 = vpop.f32.mrb[0].mxu0
      %v1064 = vadd.f32 %v743, %v1063
      %v1065 = vpop.f32.mrb[0].mxu0
      %1066 = vmatprep.mubr.f32.mxu0 0.0
      %1067 = vmatmul.mubr.f32.gmra.mrb[0].mxu0 %v853
      %v1068 = vpop.f32.mrb[0].mxu0
      %v1069 = vadd.f32 %v748, %v1068
      %v1070 = vpop.f32.mrb[0].mxu0
      %1071 = vmatprep.mubr.f32.mxu0 0.0
      %1072 = vmatmul.mubr.f32.gmra.mrb[0].mxu0 %v856
      %v1073 = vpop.f32.mrb[0].mxu0
      %v1074 = vadd.f32 %v753, %v1073
      %v1075 = vpop.f32.mrb[0].mxu0
      %1076 = vmatprep.mubr.f32.mxu0 0.0
      %1077 = vmatmul.mubr.f32.gmra.mrb[0].mxu0 %v859
      %v1078 = vpop.f32.mrb[0].mxu0
      %v1079 = vadd.f32 %v758, %v1078
      %v1080 = vpop.f32.mrb[0].mxu0
      %1081 = vmatprep.mubr.f32.mxu0 0.0
      %1082 = vmatmul.mubr.f32.gmra.mrb[0].mxu0 %v862
      %v1083 = vpop.f32.mrb[0].mxu0
      %v1084 = vadd.f32 %v763, %v1083
      %v1085 = vpop.f32.mrb[0].mxu0
      %1086 = vmatprep.mubr.f32.mxu0 0.0
      %1087 = vmatmul.mubr.f32.gmra.mrb[0].mxu0 %v865
      %v1088 = vpop.f32.mrb[0].mxu0
      %v1089 = vadd.f32 %v768, %v1088
      %v1090 = vpop.f32.mrb[0].mxu0
      %1091 = vdwg.mxu0
      %v1092 = vld [vmem:[#allocation2 + $0x2] sm:$0xff]
      %v1093 = vld [vmem:[#allocation2 + $0x12] sm:$0xff]
      %v1094 = vld [vmem:[#allocation2 + $0x22] sm:$0xff]
      %v1095 = vld [vmem:[#allocation2 + $0x32] sm:$0xff]
      %v1096 = vld [vmem:[#allocation2 + $0x42] sm:$0xff]
      %v1097 = vld [vmem:[#allocation2 + $0x52] sm:$0xff]
      %v1098 = vld [vmem:[#allocation2 + $0x62] sm:$0xff]
      %v1099 = vld [vmem:[#allocation2 + $0x72] sm:$0xff]
      %v1100 = vld [vmem:[#allocation2 + $0xa2] sm:$0xff]
      %v1101 = vld [vmem:[#allocation2 + $0xb2] sm:$0xff]
      %v1102 = vld [vmem:[#allocation2 + $0xc2] sm:$0xff]
      %v1103 = vld [vmem:[#allocation2 + $0xd2] sm:$0xff]
      %v1104 = vld [vmem:[#allocation2 + $0xe2] sm:$0xff]
      %v1105 = vld [vmem:[#allocation2 + $0xf2] sm:$0xff]
      %v1106 = vld [vmem:[#allocation2 + $0x102] sm:$0xff]
      %v1107 = vld [vmem:[#allocation2 + $0x112] sm:$0xff]
      %v1108 = vld [vmem:[#allocation2 + $0x142] sm:$0xff]
      %v1109 = vld [vmem:[#allocation2 + $0x152] sm:$0xff]
      %v1110 = vld [vmem:[#allocation2 + $0x162] sm:$0xff]
      %v1111 = vld [vmem:[#allocation2 + $0x172] sm:$0xff]
      %v1112 = vld [vmem:[#allocation2 + $0x182] sm:$0xff]
      %v1113 = vld [vmem:[#allocation2 + $0x192] sm:$0xff]
      %v1114 = vld [vmem:[#allocation2 + $0x1a2] sm:$0xff]
      %v1115 = vld [vmem:[#allocation2 + $0x1b2] sm:$0xff]
      %v1116 = vld [vmem:[#allocation2 + $0x1e2] sm:$0xff]
      %v1117 = vld [vmem:[#allocation2 + $0x1f2] sm:$0xff]
      %v1118 = vld [vmem:[#allocation2 + $0x202] sm:$0xff]
      %v1119 = vld [vmem:[#allocation2 + $0x212] sm:$0xff]
      %v1120 = vld [vmem:[#allocation2 + $0x222] sm:$0xff]
      %v1121 = vld [vmem:[#allocation2 + $0x232] sm:$0xff]
      %v1122 = vld [vmem:[#allocation2 + $0x242] sm:$0xff]
      %v1123 = vld [vmem:[#allocation2 + $0x252] sm:$0xff]
      %s1124 = scalar_lea.vmem %s1, 64
      %v1125 = vld [vmem:[%s1124] sm:$0xff]
      %v1126 = vld [vmem:[%s1124 + $0x8] sm:$0xff]
      %v1127 = vld [vmem:[%s1124 + $0x10] sm:$0xff]
      %v1128 = vld [vmem:[%s1124 + $0x18] sm:$0xff]
      %v1130 = vsel %vm230, %v1092, 0
      %v1133 = vsel %vm230, %v1093, 0
      %v1136 = vsel %vm230, %v1094, 0
      %v1139 = vsel %vm230, %v1095, 0
      %v1142 = vsel %vm230, %v1096, 0
      %v1145 = vsel %vm230, %v1097, 0
      %v1148 = vsel %vm230, %v1098, 0
      %v1151 = vsel %vm230, %v1099, 0
      %v1154 = vsel %vm230, %v1100, 0
      %v1157 = vsel %vm230, %v1101, 0
      %v1160 = vsel %vm230, %v1102, 0
      %v1163 = vsel %vm230, %v1103, 0
      %v1166 = vsel %vm230, %v1104, 0
      %v1169 = vsel %vm230, %v1105, 0
      %v1172 = vsel %vm230, %v1106, 0
      %v1175 = vsel %vm230, %v1107, 0
      %v1178 = vsel %vm230, %v1108, 0
      %v1181 = vsel %vm230, %v1109, 0
      %v1184 = vsel %vm230, %v1110, 0
      %v1187 = vsel %vm230, %v1111, 0
      %v1190 = vsel %vm230, %v1112, 0
      %v1193 = vsel %vm230, %v1113, 0
      %v1196 = vsel %vm230, %v1114, 0
      %v1199 = vsel %vm230, %v1115, 0
      %v1202 = vsel %vm230, %v1116, 0
      %v1205 = vsel %vm230, %v1117, 0
      %v1208 = vsel %vm230, %v1118, 0
      %v1211 = vsel %vm230, %v1119, 0
      %v1214 = vsel %vm230, %v1120, 0
      %v1217 = vsel %vm230, %v1121, 0
      %v1220 = vsel %vm230, %v1122, 0
      %v1223 = vsel %vm230, %v1123, 0
      %1225 = vmatprep.subr.mxu0 0.0
      %1226 = vmatpush1.msra.mxu0 %v1125
      %1227 = vmatprep.subr.mxu0 0.0
      %1228 = vmatpush1.msra.mxu0 %v1126
      %1229 = vmatprep.subr.mxu0 0.0
      %1230 = vmatpush1.msra.mxu0 %v1127
      %1231 = vmatprep.subr.mxu0 0.0
      %1232 = vmatpush1.msra.mxu0 %v1128
      %1233 = vmatprep.subr.mxu0 0.0
      %1234 = vmatpush1.msra.mxu0 0.0
      %1235 = vmatprep.subr.mxu0 0.0
      %1236 = vmatpush1.msra.mxu0 0.0
      %1237 = vmatprep.subr.mxu0 0.0
      %1238 = vmatpush1.msra.mxu0 0.0
      %1239 = vmatprep.subr.mxu0 0.0
      %1240 = vmatpush1.msra.mxu0 0.0
      %1241 = vmatprep.subr.mxu0 0.0
      %1242 = vmatpush1.msra.mxu0 0.0
      %1243 = vmatprep.subr.mxu0 0.0
      %1244 = vmatpush1.msra.mxu0 0.0
      %1245 = vmatprep.subr.mxu0 0.0
      %1246 = vmatpush1.msra.mxu0 0.0
      %1247 = vmatprep.subr.mxu0 0.0
      %1248 = vmatpush1.msra.mxu0 0.0
      %1249 = vmatprep.subr.mxu0 0.0
      %1250 = vmatpush1.msra.mxu0 0.0
      %1251 = vmatprep.subr.mxu0 0.0
      %1252 = vmatpush1.msra.mxu0 0.0
      %1253 = vmatprep.subr.mxu0 0.0
      %1254 = vmatpush1.msra.mxu0 0.0
      %1255 = vmatprep.subr.mxu0 0.0
      %1256 = vmatpush1.msra.mxu0 0.0
      %1257 = vmatprep.subr.mxu0 0.0
      %1258 = vmatpush1.msra.mxu0 0.0
      %1259 = vmatprep.subr.mxu0 0.0
      %1260 = vmatpush1.msra.mxu0 0.0
      %1261 = vmatprep.subr.mxu0 0.0
      %1262 = vmatpush1.msra.mxu0 0.0
      %1263 = vmatprep.subr.mxu0 0.0
      %1264 = vmatpush1.msra.mxu0 0.0
      %1265 = vmatprep.subr.mxu0 0.0
      %1266 = vmatpush1.msra.mxu0 0.0
      %1267 = vmatprep.subr.mxu0 0.0
      %1268 = vmatpush1.msra.mxu0 0.0
      %1269 = vmatprep.subr.mxu0 0.0
      %1270 = vmatpush1.msra.mxu0 0.0
      %1271 = vmatprep.subr.mxu0 0.0
      %1272 = vmatpush1.msra.mxu0 0.0
      %1273 = vmatprep.subr.mxu0 0.0
      %1274 = vmatpush1.msra.mxu0 0.0
      %1275 = vmatprep.subr.mxu0 0.0
      %1276 = vmatpush1.msra.mxu0 0.0
      %1277 = vmatprep.subr.mxu0 0.0
      %1278 = vmatpush1.msra.mxu0 0.0
      %1279 = vmatprep.subr.mxu0 0.0
      %1280 = vmatpush1.msra.mxu0 0.0
      %1281 = vmatprep.subr.mxu0 0.0
      %1282 = vmatpush1.msra.mxu0 0.0
      %1283 = vmatprep.subr.mxu0 0.0
      %1284 = vmatpush1.msra.mxu0 0.0
      %1285 = vmatprep.subr.mxu0 0.0
      %1286 = vmatpush1.msra.mxu0 0.0
      %1287 = vmatprep.subr.mxu0 0.0
      %1288 = vmatpush1.msra.mxu0 0.0
      %1289 = vmatprep.mubr.f32.mxu0 0.0
      %1290 = vmatmul.mubr.f32.gmra.mrb[0].mxu0 %v1130
      %v1291 = vpop.f32.mrb[0].mxu0
      %v1292 = vadd.f32 0.0, %v1291
      %v1293 = vpop.f32.mrb[0].mxu0
      %1294 = vmatprep.mubr.f32.mxu0 0.0
      %1295 = vmatmul.mubr.f32.gmra.mrb[0].mxu0 %v1133
      %v1296 = vpop.f32.mrb[0].mxu0
      %v1297 = vadd.f32 0.0, %v1296
      %v1298 = vpop.f32.mrb[0].mxu0
      %1299 = vmatprep.mubr.f32.mxu0 0.0
      %1300 = vmatmul.mubr.f32.gmra.mrb[0].mxu0 %v1136
      %v1301 = vpop.f32.mrb[0].mxu0
      %v1302 = vadd.f32 0.0, %v1301
      %v1303 = vpop.f32.mrb[0].mxu0
      %1304 = vmatprep.mubr.f32.mxu0 0.0
      %1305 = vmatmul.mubr.f32.gmra.mrb[0].mxu0 %v1139
      %v1306 = vpop.f32.mrb[0].mxu0
      %v1307 = vadd.f32 0.0, %v1306
      %v1308 = vpop.f32.mrb[0].mxu0
      %1309 = vmatprep.mubr.f32.mxu0 0.0
      %1310 = vmatmul.mubr.f32.gmra.mrb[0].mxu0 %v1142
      %v1311 = vpop.f32.mrb[0].mxu0
      %v1312 = vadd.f32 0.0, %v1311
      %v1313 = vpop.f32.mrb[0].mxu0
      %1314 = vmatprep.mubr.f32.mxu0 0.0
      %1315 = vmatmul.mubr.f32.gmra.mrb[0].mxu0 %v1145
      %v1316 = vpop.f32.mrb[0].mxu0
      %v1317 = vadd.f32 0.0, %v1316
      %v1318 = vpop.f32.mrb[0].mxu0
      %1319 = vmatprep.mubr.f32.mxu0 0.0
      %1320 = vmatmul.mubr.f32.gmra.mrb[0].mxu0 %v1148
      %v1321 = vpop.f32.mrb[0].mxu0
      %v1322 = vadd.f32 0.0, %v1321
      %v1323 = vpop.f32.mrb[0].mxu0
      %1324 = vmatprep.mubr.f32.mxu0 0.0
      %1325 = vmatmul.mubr.f32.gmra.mrb[0].mxu0 %v1151
      %v1326 = vpop.f32.mrb[0].mxu0
      %v1327 = vadd.f32 0.0, %v1326
      %v1328 = vpop.f32.mrb[0].mxu0
      %1329 = vmatprep.mubr.f32.mxu0 0.0
      %1330 = vmatmul.mubr.f32.gmra.mrb[0].mxu0 %v1154
      %v1331 = vpop.f32.mrb[0].mxu0
      %v1332 = vadd.f32 0.0, %v1331
      %v1333 = vpop.f32.mrb[0].mxu0
      %1334 = vmatprep.mubr.f32.mxu0 0.0
      %1335 = vmatmul.mubr.f32.gmra.mrb[0].mxu0 %v1157
      %v1336 = vpop.f32.mrb[0].mxu0
      %v1337 = vadd.f32 0.0, %v1336
      %v1338 = vpop.f32.mrb[0].mxu0
      %1339 = vmatprep.mubr.f32.mxu0 0.0
      %1340 = vmatmul.mubr.f32.gmra.mrb[0].mxu0 %v1160
      %v1341 = vpop.f32.mrb[0].mxu0
      %v1342 = vadd.f32 0.0, %v1341
      %v1343 = vpop.f32.mrb[0].mxu0
      %1344 = vmatprep.mubr.f32.mxu0 0.0
      %1345 = vmatmul.mubr.f32.gmra.mrb[0].mxu0 %v1163
      %v1346 = vpop.f32.mrb[0].mxu0
      %v1347 = vadd.f32 0.0, %v1346
      %v1348 = vpop.f32.mrb[0].mxu0
      %1349 = vmatprep.mubr.f32.mxu0 0.0
      %1350 = vmatmul.mubr.f32.gmra.mrb[0].mxu0 %v1166
      %v1351 = vpop.f32.mrb[0].mxu0
      %v1352 = vadd.f32 0.0, %v1351
      %v1353 = vpop.f32.mrb[0].mxu0
      %1354 = vmatprep.mubr.f32.mxu0 0.0
      %1355 = vmatmul.mubr.f32.gmra.mrb[0].mxu0 %v1169
      %v1356 = vpop.f32.mrb[0].mxu0
      %v1357 = vadd.f32 0.0, %v1356
      %v1358 = vpop.f32.mrb[0].mxu0
      %1359 = vmatprep.mubr.f32.mxu0 0.0
      %1360 = vmatmul.mubr.f32.gmra.mrb[0].mxu0 %v1172
      %v1361 = vpop.f32.mrb[0].mxu0
      %v1362 = vadd.f32 0.0, %v1361
      %v1363 = vpop.f32.mrb[0].mxu0
      %1364 = vmatprep.mubr.f32.mxu0 0.0
      %1365 = vmatmul.mubr.f32.gmra.mrb[0].mxu0 %v1175
      %v1366 = vpop.f32.mrb[0].mxu0
      %v1367 = vadd.f32 0.0, %v1366
      %v1368 = vpop.f32.mrb[0].mxu0
      %1369 = vmatprep.mubr.f32.mxu0 0.0
      %1370 = vmatmul.mubr.f32.gmra.mrb[0].mxu0 %v1178
      %v1371 = vpop.f32.mrb[0].mxu0
      %v1372 = vadd.f32 0.0, %v1371
      %v1373 = vpop.f32.mrb[0].mxu0
      %1374 = vmatprep.mubr.f32.mxu0 0.0
      %1375 = vmatmul.mubr.f32.gmra.mrb[0].mxu0 %v1181
      %v1376 = vpop.f32.mrb[0].mxu0
      %v1377 = vadd.f32 0.0, %v1376
      %v1378 = vpop.f32.mrb[0].mxu0
      %1379 = vmatprep.mubr.f32.mxu0 0.0
      %1380 = vmatmul.mubr.f32.gmra.mrb[0].mxu0 %v1184
      %v1381 = vpop.f32.mrb[0].mxu0
      %v1382 = vadd.f32 0.0, %v1381
      %v1383 = vpop.f32.mrb[0].mxu0
      %1384 = vmatprep.mubr.f32.mxu0 0.0
      %1385 = vmatmul.mubr.f32.gmra.mrb[0].mxu0 %v1187
      %v1386 = vpop.f32.mrb[0].mxu0
      %v1387 = vadd.f32 0.0, %v1386
      %v1388 = vpop.f32.mrb[0].mxu0
      %1389 = vmatprep.mubr.f32.mxu0 0.0
      %1390 = vmatmul.mubr.f32.gmra.mrb[0].mxu0 %v1190
      %v1391 = vpop.f32.mrb[0].mxu0
      %v1392 = vadd.f32 0.0, %v1391
      %v1393 = vpop.f32.mrb[0].mxu0
      %1394 = vmatprep.mubr.f32.mxu0 0.0
      %1395 = vmatmul.mubr.f32.gmra.mrb[0].mxu0 %v1193
      %v1396 = vpop.f32.mrb[0].mxu0
      %v1397 = vadd.f32 0.0, %v1396
      %v1398 = vpop.f32.mrb[0].mxu0
      %1399 = vmatprep.mubr.f32.mxu0 0.0
      %1400 = vmatmul.mubr.f32.gmra.mrb[0].mxu0 %v1196
      %v1401 = vpop.f32.mrb[0].mxu0
      %v1402 = vadd.f32 0.0, %v1401
      %v1403 = vpop.f32.mrb[0].mxu0
      %1404 = vmatprep.mubr.f32.mxu0 0.0
      %1405 = vmatmul.mubr.f32.gmra.mrb[0].mxu0 %v1199
      %v1406 = vpop.f32.mrb[0].mxu0
      %v1407 = vadd.f32 0.0, %v1406
      %v1408 = vpop.f32.mrb[0].mxu0
      %1409 = vmatprep.mubr.f32.mxu0 0.0
      %1410 = vmatmul.mubr.f32.gmra.mrb[0].mxu0 %v1202
      %v1411 = vpop.f32.mrb[0].mxu0
      %v1412 = vadd.f32 0.0, %v1411
      %v1413 = vpop.f32.mrb[0].mxu0
      %1414 = vmatprep.mubr.f32.mxu0 0.0
      %1415 = vmatmul.mubr.f32.gmra.mrb[0].mxu0 %v1205
      %v1416 = vpop.f32.mrb[0].mxu0
      %v1417 = vadd.f32 0.0, %v1416
      %v1418 = vpop.f32.mrb[0].mxu0
      %1419 = vmatprep.mubr.f32.mxu0 0.0
      %1420 = vmatmul.mubr.f32.gmra.mrb[0].mxu0 %v1208
      %v1421 = vpop.f32.mrb[0].mxu0
      %v1422 = vadd.f32 0.0, %v1421
      %v1423 = vpop.f32.mrb[0].mxu0
      %1424 = vmatprep.mubr.f32.mxu0 0.0
      %1425 = vmatmul.mubr.f32.gmra.mrb[0].mxu0 %v1211
      %v1426 = vpop.f32.mrb[0].mxu0
      %v1427 = vadd.f32 0.0, %v1426
      %v1428 = vpop.f32.mrb[0].mxu0
      %1429 = vmatprep.mubr.f32.mxu0 0.0
      %1430 = vmatmul.mubr.f32.gmra.mrb[0].mxu0 %v1214
      %v1431 = vpop.f32.mrb[0].mxu0
      %v1432 = vadd.f32 0.0, %v1431
      %v1433 = vpop.f32.mrb[0].mxu0
      %1434 = vmatprep.mubr.f32.mxu0 0.0
      %1435 = vmatmul.mubr.f32.gmra.mrb[0].mxu0 %v1217
      %v1436 = vpop.f32.mrb[0].mxu0
      %v1437 = vadd.f32 0.0, %v1436
      %v1438 = vpop.f32.mrb[0].mxu0
      %1439 = vmatprep.mubr.f32.mxu0 0.0
      %1440 = vmatmul.mubr.f32.gmra.mrb[0].mxu0 %v1220
      %v1441 = vpop.f32.mrb[0].mxu0
      %v1442 = vadd.f32 0.0, %v1441
      %v1443 = vpop.f32.mrb[0].mxu0
      %1444 = vmatprep.mubr.f32.mxu0 0.0
      %1445 = vmatmul.mubr.f32.gmra.mrb[0].mxu0 %v1223
      %v1446 = vpop.f32.mrb[0].mxu0
      %v1447 = vadd.f32 0.0, %v1446
      %v1448 = vpop.f32.mrb[0].mxu0
      %1449 = vdwg.mxu0
      %v1450 = vadd.f32 %v934, %v1292
      %v1451 = vadd.f32 %v939, %v1297
      %v1452 = vadd.f32 %v944, %v1302
      %v1453 = vadd.f32 %v949, %v1307
      %v1454 = vadd.f32 %v954, %v1312
      %v1455 = vadd.f32 %v959, %v1317
      %v1456 = vadd.f32 %v964, %v1322
      %v1457 = vadd.f32 %v969, %v1327
      %v1458 = vadd.f32 %v974, %v1332
      %v1459 = vadd.f32 %v979, %v1337
      %v1460 = vadd.f32 %v984, %v1342
      %v1461 = vadd.f32 %v989, %v1347
      %v1462 = vadd.f32 %v994, %v1352
      %v1463 = vadd.f32 %v999, %v1357
      %v1464 = vadd.f32 %v1004, %v1362
      %v1465 = vadd.f32 %v1009, %v1367
      %v1466 = vadd.f32 %v1014, %v1372
      %v1467 = vadd.f32 %v1019, %v1377
      %v1468 = vadd.f32 %v1024, %v1382
      %v1469 = vadd.f32 %v1029, %v1387
      %v1470 = vadd.f32 %v1034, %v1392
      %v1471 = vadd.f32 %v1039, %v1397
      %v1472 = vadd.f32 %v1044, %v1402
      %v1473 = vadd.f32 %v1049, %v1407
      %v1474 = vadd.f32 %v1054, %v1412
      %v1475 = vadd.f32 %v1059, %v1417
      %v1476 = vadd.f32 %v1064, %v1422
      %v1477 = vadd.f32 %v1069, %v1427
      %v1478 = vadd.f32 %v1074, %v1432
      %v1479 = vadd.f32 %v1079, %v1437
      %v1480 = vadd.f32 %v1084, %v1442
      %v1481 = vadd.f32 %v1089, %v1447
      %v1482 = vld [vmem:[%s344] sm:$0xff]
      %v1483 = vld [vmem:[%s344 + $0x10] sm:$0xff]
      %v1484 = vld [vmem:[%s344 + $0x20] sm:$0xff]
      %v1485 = vld [vmem:[%s344 + $0x30] sm:$0xff]
      %v1486 = vld [vmem:[%s344 + $0x40] sm:$0xff]
      %v1487 = vld [vmem:[%s344 + $0x50] sm:$0xff]
      %v1488 = vld [vmem:[%s344 + $0x60] sm:$0xff]
      %v1489 = vld [vmem:[%s344 + $0x70] sm:$0xff]
      %v1490 = vld [vmem:[%s344 + $0xa0] sm:$0xff]
      %v1491 = vld [vmem:[%s344 + $0xb0] sm:$0xff]
      %v1492 = vld [vmem:[%s344 + $0xc0] sm:$0xff]
      %v1493 = vld [vmem:[%s344 + $0xd0] sm:$0xff]
      %v1494 = vld [vmem:[%s344 + $0xe0] sm:$0xff]
      %v1495 = vld [vmem:[%s344 + $0xf0] sm:$0xff]
      %v1496 = vld [vmem:[%s344 + $0x100] sm:$0xff]
      %v1497 = vld [vmem:[%s344 + $0x110] sm:$0xff]
      %v1498 = vld [vmem:[%s344 + $0x140] sm:$0xff]
      %v1499 = vld [vmem:[%s344 + $0x150] sm:$0xff]
      %v1500 = vld [vmem:[%s344 + $0x160] sm:$0xff]
      %v1501 = vld [vmem:[%s344 + $0x170] sm:$0xff]
      %v1502 = vld [vmem:[%s344 + $0x180] sm:$0xff]
      %v1503 = vld [vmem:[%s344 + $0x190] sm:$0xff]
      %v1504 = vld [vmem:[%s344 + $0x1a0] sm:$0xff]
      %v1505 = vld [vmem:[%s344 + $0x1b0] sm:$0xff]
      %v1506 = vld [vmem:[%s344 + $0x1e0] sm:$0xff]
      %v1507 = vld [vmem:[%s344 + $0x1f0] sm:$0xff]
      %v1508 = vld [vmem:[%s344 + $0x200] sm:$0xff]
      %v1509 = vld [vmem:[%s344 + $0x210] sm:$0xff]
      %v1510 = vld [vmem:[%s344 + $0x220] sm:$0xff]
      %v1511 = vld [vmem:[%s344 + $0x230] sm:$0xff]
      %v1512 = vld [vmem:[%s344 + $0x240] sm:$0xff]
      %v1513 = vld [vmem:[%s344 + $0x250] sm:$0xff]
      %s1514 = scalar_lea.vmem %s1, 96
      %v1515 = vld [vmem:[%s1514] sm:$0xff]
      %v1516 = vld [vmem:[%s1514 + $0x8] sm:$0xff]
      %v1517 = vld [vmem:[%s1514 + $0x10] sm:$0xff]
      %v1518 = vld [vmem:[%s1514 + $0x18] sm:$0xff]
      %v1520 = vsel %vm230, %v1482, 0
      %v1523 = vsel %vm230, %v1483, 0
      %v1526 = vsel %vm230, %v1484, 0
      %v1529 = vsel %vm230, %v1485, 0
      %v1532 = vsel %vm230, %v1486, 0
      %v1535 = vsel %vm230, %v1487, 0
      %v1538 = vsel %vm230, %v1488, 0
      %v1541 = vsel %vm230, %v1489, 0
      %v1544 = vsel %vm230, %v1490, 0
      %v1547 = vsel %vm230, %v1491, 0
      %v1550 = vsel %vm230, %v1492, 0
      %v1553 = vsel %vm230, %v1493, 0
      %v1556 = vsel %vm230, %v1494, 0
      %v1559 = vsel %vm230, %v1495, 0
      %v1562 = vsel %vm230, %v1496, 0
      %v1565 = vsel %vm230, %v1497, 0
      %v1568 = vsel %vm230, %v1498, 0
      %v1571 = vsel %vm230, %v1499, 0
      %v1574 = vsel %vm230, %v1500, 0
      %v1577 = vsel %vm230, %v1501, 0
      %v1580 = vsel %vm230, %v1502, 0
      %v1583 = vsel %vm230, %v1503, 0
      %v1586 = vsel %vm230, %v1504, 0
      %v1589 = vsel %vm230, %v1505, 0
      %v1592 = vsel %vm230, %v1506, 0
      %v1595 = vsel %vm230, %v1507, 0
      %v1598 = vsel %vm230, %v1508, 0
      %v1601 = vsel %vm230, %v1509, 0
      %v1604 = vsel %vm230, %v1510, 0
      %v1607 = vsel %vm230, %v1511, 0
      %v1610 = vsel %vm230, %v1512, 0
      %v1613 = vsel %vm230, %v1513, 0
      %1615 = vmatprep.subr.mxu0 0.0
      %1616 = vmatpush1.msra.mxu0 %v1515
      %1617 = vmatprep.subr.mxu0 0.0
      %1618 = vmatpush1.msra.mxu0 %v1516
      %1619 = vmatprep.subr.mxu0 0.0
      %1620 = vmatpush1.msra.mxu0 %v1517
      %1621 = vmatprep.subr.mxu0 0.0
      %1622 = vmatpush1.msra.mxu0 %v1518
      %1623 = vmatprep.subr.mxu0 0.0
      %1624 = vmatpush1.msra.mxu0 0.0
      %1625 = vmatprep.subr.mxu0 0.0
      %1626 = vmatpush1.msra.mxu0 0.0
      %1627 = vmatprep.subr.mxu0 0.0
      %1628 = vmatpush1.msra.mxu0 0.0
      %1629 = vmatprep.subr.mxu0 0.0
      %1630 = vmatpush1.msra.mxu0 0.0
      %1631 = vmatprep.subr.mxu0 0.0
      %1632 = vmatpush1.msra.mxu0 0.0
      %1633 = vmatprep.subr.mxu0 0.0
      %1634 = vmatpush1.msra.mxu0 0.0
      %1635 = vmatprep.subr.mxu0 0.0
      %1636 = vmatpush1.msra.mxu0 0.0
      %1637 = vmatprep.subr.mxu0 0.0
      %1638 = vmatpush1.msra.mxu0 0.0
      %1639 = vmatprep.subr.mxu0 0.0
      %1640 = vmatpush1.msra.mxu0 0.0
      %1641 = vmatprep.subr.mxu0 0.0
      %1642 = vmatpush1.msra.mxu0 0.0
      %1643 = vmatprep.subr.mxu0 0.0
      %1644 = vmatpush1.msra.mxu0 0.0
      %1645 = vmatprep.subr.mxu0 0.0
      %1646 = vmatpush1.msra.mxu0 0.0
      %1647 = vmatprep.subr.mxu0 0.0
      %1648 = vmatpush1.msra.mxu0 0.0
      %1649 = vmatprep.subr.mxu0 0.0
      %1650 = vmatpush1.msra.mxu0 0.0
      %1651 = vmatprep.subr.mxu0 0.0
      %1652 = vmatpush1.msra.mxu0 0.0
      %1653 = vmatprep.subr.mxu0 0.0
      %1654 = vmatpush1.msra.mxu0 0.0
      %1655 = vmatprep.subr.mxu0 0.0
      %1656 = vmatpush1.msra.mxu0 0.0
      %1657 = vmatprep.subr.mxu0 0.0
      %1658 = vmatpush1.msra.mxu0 0.0
      %1659 = vmatprep.subr.mxu0 0.0
      %1660 = vmatpush1.msra.mxu0 0.0
      %1661 = vmatprep.subr.mxu0 0.0
      %1662 = vmatpush1.msra.mxu0 0.0
      %1663 = vmatprep.subr.mxu0 0.0
      %1664 = vmatpush1.msra.mxu0 0.0
      %1665 = vmatprep.subr.mxu0 0.0
      %1666 = vmatpush1.msra.mxu0 0.0
      %1667 = vmatprep.subr.mxu0 0.0
      %1668 = vmatpush1.msra.mxu0 0.0
      %1669 = vmatprep.subr.mxu0 0.0
      %1670 = vmatpush1.msra.mxu0 0.0
      %1671 = vmatprep.subr.mxu0 0.0
      %1672 = vmatpush1.msra.mxu0 0.0
      %1673 = vmatprep.subr.mxu0 0.0
      %1674 = vmatpush1.msra.mxu0 0.0
      %1675 = vmatprep.subr.mxu0 0.0
      %1676 = vmatpush1.msra.mxu0 0.0
      %1677 = vmatprep.subr.mxu0 0.0
      %1678 = vmatpush1.msra.mxu0 0.0
      %1679 = vmatprep.mubr.f32.mxu0 0.0
      %1680 = vmatmul.mubr.f32.gmra.mrb[0].mxu0 %v1520
      %v1681 = vpop.f32.mrb[0].mxu0
      %v1682 = vadd.f32 0.0, %v1681
      %v1683 = vpop.f32.mrb[0].mxu0
      %1684 = vmatprep.mubr.f32.mxu0 0.0
      %1685 = vmatmul.mubr.f32.gmra.mrb[0].mxu0 %v1523
      %v1686 = vpop.f32.mrb[0].mxu0
      %v1687 = vadd.f32 0.0, %v1686
      %v1688 = vpop.f32.mrb[0].mxu0
      %1689 = vmatprep.mubr.f32.mxu0 0.0
      %1690 = vmatmul.mubr.f32.gmra.mrb[0].mxu0 %v1526
      %v1691 = vpop.f32.mrb[0].mxu0
      %v1692 = vadd.f32 0.0, %v1691
      %v1693 = vpop.f32.mrb[0].mxu0
      %1694 = vmatprep.mubr.f32.mxu0 0.0
      %1695 = vmatmul.mubr.f32.gmra.mrb[0].mxu0 %v1529
      %v1696 = vpop.f32.mrb[0].mxu0
      %v1697 = vadd.f32 0.0, %v1696
      %v1698 = vpop.f32.mrb[0].mxu0
      %1699 = vmatprep.mubr.f32.mxu0 0.0
      %1700 = vmatmul.mubr.f32.gmra.mrb[0].mxu0 %v1532
      %v1701 = vpop.f32.mrb[0].mxu0
      %v1702 = vadd.f32 0.0, %v1701
      %v1703 = vpop.f32.mrb[0].mxu0
      %1704 = vmatprep.mubr.f32.mxu0 0.0
      %1705 = vmatmul.mubr.f32.gmra.mrb[0].mxu0 %v1535
      %v1706 = vpop.f32.mrb[0].mxu0
      %v1707 = vadd.f32 0.0, %v1706
      %v1708 = vpop.f32.mrb[0].mxu0
      %1709 = vmatprep.mubr.f32.mxu0 0.0
      %1710 = vmatmul.mubr.f32.gmra.mrb[0].mxu0 %v1538
      %v1711 = vpop.f32.mrb[0].mxu0
      %v1712 = vadd.f32 0.0, %v1711
      %v1713 = vpop.f32.mrb[0].mxu0
      %1714 = vmatprep.mubr.f32.mxu0 0.0
      %1715 = vmatmul.mubr.f32.gmra.mrb[0].mxu0 %v1541
      %v1716 = vpop.f32.mrb[0].mxu0
      %v1717 = vadd.f32 0.0, %v1716
      %v1718 = vpop.f32.mrb[0].mxu0
      %1719 = vmatprep.mubr.f32.mxu0 0.0
      %1720 = vmatmul.mubr.f32.gmra.mrb[0].mxu0 %v1544
      %v1721 = vpop.f32.mrb[0].mxu0
      %v1722 = vadd.f32 0.0, %v1721
      %v1723 = vpop.f32.mrb[0].mxu0
      %1724 = vmatprep.mubr.f32.mxu0 0.0
      %1725 = vmatmul.mubr.f32.gmra.mrb[0].mxu0 %v1547
      %v1726 = vpop.f32.mrb[0].mxu0
      %v1727 = vadd.f32 0.0, %v1726
      %v1728 = vpop.f32.mrb[0].mxu0
      %1729 = vmatprep.mubr.f32.mxu0 0.0
      %1730 = vmatmul.mubr.f32.gmra.mrb[0].mxu0 %v1550
      %v1731 = vpop.f32.mrb[0].mxu0
      %v1732 = vadd.f32 0.0, %v1731
      %v1733 = vpop.f32.mrb[0].mxu0
      %1734 = vmatprep.mubr.f32.mxu0 0.0
      %1735 = vmatmul.mubr.f32.gmra.mrb[0].mxu0 %v1553
      %v1736 = vpop.f32.mrb[0].mxu0
      %v1737 = vadd.f32 0.0, %v1736
      %v1738 = vpop.f32.mrb[0].mxu0
      %1739 = vmatprep.mubr.f32.mxu0 0.0
      %1740 = vmatmul.mubr.f32.gmra.mrb[0].mxu0 %v1556
      %v1741 = vpop.f32.mrb[0].mxu0
      %v1742 = vadd.f32 0.0, %v1741
      %v1743 = vpop.f32.mrb[0].mxu0
      %1744 = vmatprep.mubr.f32.mxu0 0.0
      %1745 = vmatmul.mubr.f32.gmra.mrb[0].mxu0 %v1559
      %v1746 = vpop.f32.mrb[0].mxu0
      %v1747 = vadd.f32 0.0, %v1746
      %v1748 = vpop.f32.mrb[0].mxu0
      %1749 = vmatprep.mubr.f32.mxu0 0.0
      %1750 = vmatmul.mubr.f32.gmra.mrb[0].mxu0 %v1562
      %v1751 = vpop.f32.mrb[0].mxu0
      %v1752 = vadd.f32 0.0, %v1751
      %v1753 = vpop.f32.mrb[0].mxu0
      %1754 = vmatprep.mubr.f32.mxu0 0.0
      %1755 = vmatmul.mubr.f32.gmra.mrb[0].mxu0 %v1565
      %v1756 = vpop.f32.mrb[0].mxu0
      %v1757 = vadd.f32 0.0, %v1756
      %v1758 = vpop.f32.mrb[0].mxu0
      %1759 = vmatprep.mubr.f32.mxu0 0.0
      %1760 = vmatmul.mubr.f32.gmra.mrb[0].mxu0 %v1568
      %v1761 = vpop.f32.mrb[0].mxu0
      %v1762 = vadd.f32 0.0, %v1761
      %v1763 = vpop.f32.mrb[0].mxu0
      %1764 = vmatprep.mubr.f32.mxu0 0.0
      %1765 = vmatmul.mubr.f32.gmra.mrb[0].mxu0 %v1571
      %v1766 = vpop.f32.mrb[0].mxu0
      %v1767 = vadd.f32 0.0, %v1766
      %v1768 = vpop.f32.mrb[0].mxu0
      %1769 = vmatprep.mubr.f32.mxu0 0.0
      %1770 = vmatmul.mubr.f32.gmra.mrb[0].mxu0 %v1574
      %v1771 = vpop.f32.mrb[0].mxu0
      %v1772 = vadd.f32 0.0, %v1771
      %v1773 = vpop.f32.mrb[0].mxu0
      %1774 = vmatprep.mubr.f32.mxu0 0.0
      %1775 = vmatmul.mubr.f32.gmra.mrb[0].mxu0 %v1577
      %v1776 = vpop.f32.mrb[0].mxu0
      %v1777 = vadd.f32 0.0, %v1776
      %v1778 = vpop.f32.mrb[0].mxu0
      %1779 = vmatprep.mubr.f32.mxu0 0.0
      %1780 = vmatmul.mubr.f32.gmra.mrb[0].mxu0 %v1580
      %v1781 = vpop.f32.mrb[0].mxu0
      %v1782 = vadd.f32 0.0, %v1781
      %v1783 = vpop.f32.mrb[0].mxu0
      %1784 = vmatprep.mubr.f32.mxu0 0.0
      %1785 = vmatmul.mubr.f32.gmra.mrb[0].mxu0 %v1583
      %v1786 = vpop.f32.mrb[0].mxu0
      %v1787 = vadd.f32 0.0, %v1786
      %v1788 = vpop.f32.mrb[0].mxu0
      %1789 = vmatprep.mubr.f32.mxu0 0.0
      %1790 = vmatmul.mubr.f32.gmra.mrb[0].mxu0 %v1586
      %v1791 = vpop.f32.mrb[0].mxu0
      %v1792 = vadd.f32 0.0, %v1791
      %v1793 = vpop.f32.mrb[0].mxu0
      %1794 = vmatprep.mubr.f32.mxu0 0.0
      %1795 = vmatmul.mubr.f32.gmra.mrb[0].mxu0 %v1589
      %v1796 = vpop.f32.mrb[0].mxu0
      %v1797 = vadd.f32 0.0, %v1796
      %v1798 = vpop.f32.mrb[0].mxu0
      %1799 = vmatprep.mubr.f32.mxu0 0.0
      %1800 = vmatmul.mubr.f32.gmra.mrb[0].mxu0 %v1592
      %v1801 = vpop.f32.mrb[0].mxu0
      %v1802 = vadd.f32 0.0, %v1801
      %v1803 = vpop.f32.mrb[0].mxu0
      %1804 = vmatprep.mubr.f32.mxu0 0.0
      %1805 = vmatmul.mubr.f32.gmra.mrb[0].mxu0 %v1595
      %v1806 = vpop.f32.mrb[0].mxu0
      %v1807 = vadd.f32 0.0, %v1806
      %v1808 = vpop.f32.mrb[0].mxu0
      %1809 = vmatprep.mubr.f32.mxu0 0.0
      %1810 = vmatmul.mubr.f32.gmra.mrb[0].mxu0 %v1598
      %v1811 = vpop.f32.mrb[0].mxu0
      %v1812 = vadd.f32 0.0, %v1811
      %v1813 = vpop.f32.mrb[0].mxu0
      %1814 = vmatprep.mubr.f32.mxu0 0.0
      %1815 = vmatmul.mubr.f32.gmra.mrb[0].mxu0 %v1601
      %v1816 = vpop.f32.mrb[0].mxu0
      %v1817 = vadd.f32 0.0, %v1816
      %v1818 = vpop.f32.mrb[0].mxu0
      %1819 = vmatprep.mubr.f32.mxu0 0.0
      %1820 = vmatmul.mubr.f32.gmra.mrb[0].mxu0 %v1604
      %v1821 = vpop.f32.mrb[0].mxu0
      %v1822 = vadd.f32 0.0, %v1821
      %v1823 = vpop.f32.mrb[0].mxu0
      %1824 = vmatprep.mubr.f32.mxu0 0.0
      %1825 = vmatmul.mubr.f32.gmra.mrb[0].mxu0 %v1607
      %v1826 = vpop.f32.mrb[0].mxu0
      %v1827 = vadd.f32 0.0, %v1826
      %v1828 = vpop.f32.mrb[0].mxu0
      %1829 = vmatprep.mubr.f32.mxu0 0.0
      %1830 = vmatmul.mubr.f32.gmra.mrb[0].mxu0 %v1610
      %v1831 = vpop.f32.mrb[0].mxu0
      %v1832 = vadd.f32 0.0, %v1831
      %v1833 = vpop.f32.mrb[0].mxu0
      %1834 = vmatprep.mubr.f32.mxu0 0.0
      %1835 = vmatmul.mubr.f32.gmra.mrb[0].mxu0 %v1613
      %v1836 = vpop.f32.mrb[0].mxu0
      %v1837 = vadd.f32 0.0, %v1836
      %v1838 = vpop.f32.mrb[0].mxu0
      %1839 = vdwg.mxu0
      %v1840 = vadd.f32 %v1450, %v1682
      %v1841 = vadd.f32 %v1451, %v1687
      %v1842 = vadd.f32 %v1452, %v1692
      %v1843 = vadd.f32 %v1453, %v1697
      %v1844 = vadd.f32 %v1454, %v1702
      %v1845 = vadd.f32 %v1455, %v1707
      %v1846 = vadd.f32 %v1456, %v1712
      %v1847 = vadd.f32 %v1457, %v1717
      %v1848 = vadd.f32 %v1458, %v1722
      %v1849 = vadd.f32 %v1459, %v1727
      %v1850 = vadd.f32 %v1460, %v1732
      %v1851 = vadd.f32 %v1461, %v1737
      %v1852 = vadd.f32 %v1462, %v1742
      %v1853 = vadd.f32 %v1463, %v1747
      %v1854 = vadd.f32 %v1464, %v1752
      %v1855 = vadd.f32 %v1465, %v1757
      %v1856 = vadd.f32 %v1466, %v1762
      %v1857 = vadd.f32 %v1467, %v1767
      %v1858 = vadd.f32 %v1468, %v1772
      %v1859 = vadd.f32 %v1469, %v1777
      %v1860 = vadd.f32 %v1470, %v1782
      %v1861 = vadd.f32 %v1471, %v1787
      %v1862 = vadd.f32 %v1472, %v1792
      %v1863 = vadd.f32 %v1473, %v1797
      %v1864 = vadd.f32 %v1474, %v1802
      %v1865 = vadd.f32 %v1475, %v1807
      %v1866 = vadd.f32 %v1476, %v1812
      %v1867 = vadd.f32 %v1477, %v1817
      %v1868 = vadd.f32 %v1478, %v1822
      %v1869 = vadd.f32 %v1479, %v1827
      %v1870 = vadd.f32 %v1480, %v1832
      %v1871 = vadd.f32 %v1481, %v1837
      %v1872 = vld [vmem:[%s344 + $0x1] sm:$0xff]
      %v1873 = vld [vmem:[%s344 + $0x11] sm:$0xff]
      %v1874 = vld [vmem:[%s344 + $0x21] sm:$0xff]
      %v1875 = vld [vmem:[%s344 + $0x31] sm:$0xff]
      %v1876 = vld [vmem:[%s344 + $0x41] sm:$0xff]
      %v1877 = vld [vmem:[%s344 + $0x51] sm:$0xff]
      %v1878 = vld [vmem:[%s344 + $0x61] sm:$0xff]
      %v1879 = vld [vmem:[%s344 + $0x71] sm:$0xff]
      %v1880 = vld [vmem:[%s344 + $0xa1] sm:$0xff]
      %v1881 = vld [vmem:[%s344 + $0xb1] sm:$0xff]
      %v1882 = vld [vmem:[%s344 + $0xc1] sm:$0xff]
      %v1883 = vld [vmem:[%s344 + $0xd1] sm:$0xff]
      %v1884 = vld [vmem:[%s344 + $0xe1] sm:$0xff]
      %v1885 = vld [vmem:[%s344 + $0xf1] sm:$0xff]
      %v1886 = vld [vmem:[%s344 + $0x101] sm:$0xff]
      %v1887 = vld [vmem:[%s344 + $0x111] sm:$0xff]
      %v1888 = vld [vmem:[%s344 + $0x141] sm:$0xff]
      %v1889 = vld [vmem:[%s344 + $0x151] sm:$0xff]
      %v1890 = vld [vmem:[%s344 + $0x161] sm:$0xff]
      %v1891 = vld [vmem:[%s344 + $0x171] sm:$0xff]
      %v1892 = vld [vmem:[%s344 + $0x181] sm:$0xff]
      %v1893 = vld [vmem:[%s344 + $0x191] sm:$0xff]
      %v1894 = vld [vmem:[%s344 + $0x1a1] sm:$0xff]
      %v1895 = vld [vmem:[%s344 + $0x1b1] sm:$0xff]
      %v1896 = vld [vmem:[%s344 + $0x1e1] sm:$0xff]
      %v1897 = vld [vmem:[%s344 + $0x1f1] sm:$0xff]
      %v1898 = vld [vmem:[%s344 + $0x201] sm:$0xff]
      %v1899 = vld [vmem:[%s344 + $0x211] sm:$0xff]
      %v1900 = vld [vmem:[%s344 + $0x221] sm:$0xff]
      %v1901 = vld [vmem:[%s344 + $0x231] sm:$0xff]
      %v1902 = vld [vmem:[%s344 + $0x241] sm:$0xff]
      %v1903 = vld [vmem:[%s344 + $0x251] sm:$0xff]
      %s1904 = scalar_lea.vmem %s1, 128
      %v1905 = vld [vmem:[%s1904] sm:$0xff]
      %v1906 = vld [vmem:[%s1904 + $0x8] sm:$0xff]
      %v1907 = vld [vmem:[%s1904 + $0x10] sm:$0xff]
      %v1908 = vld [vmem:[%s1904 + $0x18] sm:$0xff]
      %v1910 = vsel %vm230, %v1872, 0
      %v1913 = vsel %vm230, %v1873, 0
      %v1916 = vsel %vm230, %v1874, 0
      %v1919 = vsel %vm230, %v1875, 0
      %v1922 = vsel %vm230, %v1876, 0
      %v1925 = vsel %vm230, %v1877, 0
      %v1928 = vsel %vm230, %v1878, 0
      %v1931 = vsel %vm230, %v1879, 0
      %v1934 = vsel %vm230, %v1880, 0
      %v1937 = vsel %vm230, %v1881, 0
      %v1940 = vsel %vm230, %v1882, 0
      %v1943 = vsel %vm230, %v1883, 0
      %v1946 = vsel %vm230, %v1884, 0
      %v1949 = vsel %vm230, %v1885, 0
      %v1952 = vsel %vm230, %v1886, 0
      %v1955 = vsel %vm230, %v1887, 0
      %v1958 = vsel %vm230, %v1888, 0
      %v1961 = vsel %vm230, %v1889, 0
      %v1964 = vsel %vm230, %v1890, 0
      %v1967 = vsel %vm230, %v1891, 0
      %v1970 = vsel %vm230, %v1892, 0
      %v1973 = vsel %vm230, %v1893, 0
      %v1976 = vsel %vm230, %v1894, 0
      %v1979 = vsel %vm230, %v1895, 0
      %v1982 = vsel %vm230, %v1896, 0
      %v1985 = vsel %vm230, %v1897, 0
      %v1988 = vsel %vm230, %v1898, 0
      %v1991 = vsel %vm230, %v1899, 0
      %v1994 = vsel %vm230, %v1900, 0
      %v1997 = vsel %vm230, %v1901, 0
      %v2000 = vsel %vm230, %v1902, 0
      %v2003 = vsel %vm230, %v1903, 0
      %2005 = vmatprep.subr.mxu0 0.0
      %2006 = vmatpush1.msra.mxu0 %v1905
      %2007 = vmatprep.subr.mxu0 0.0
      %2008 = vmatpush1.msra.mxu0 %v1906
      %2009 = vmatprep.subr.mxu0 0.0
      %2010 = vmatpush1.msra.mxu0 %v1907
      %2011 = vmatprep.subr.mxu0 0.0
      %2012 = vmatpush1.msra.mxu0 %v1908
      %2013 = vmatprep.subr.mxu0 0.0
      %2014 = vmatpush1.msra.mxu0 0.0
      %2015 = vmatprep.subr.mxu0 0.0
      %2016 = vmatpush1.msra.mxu0 0.0
      %2017 = vmatprep.subr.mxu0 0.0
      %2018 = vmatpush1.msra.mxu0 0.0
      %2019 = vmatprep.subr.mxu0 0.0
      %2020 = vmatpush1.msra.mxu0 0.0
      %2021 = vmatprep.subr.mxu0 0.0
      %2022 = vmatpush1.msra.mxu0 0.0
      %2023 = vmatprep.subr.mxu0 0.0
      %2024 = vmatpush1.msra.mxu0 0.0
      %2025 = vmatprep.subr.mxu0 0.0
      %2026 = vmatpush1.msra.mxu0 0.0
      %2027 = vmatprep.subr.mxu0 0.0
      %2028 = vmatpush1.msra.mxu0 0.0
      %2029 = vmatprep.subr.mxu0 0.0
      %2030 = vmatpush1.msra.mxu0 0.0
      %2031 = vmatprep.subr.mxu0 0.0
      %2032 = vmatpush1.msra.mxu0 0.0
      %2033 = vmatprep.subr.mxu0 0.0
      %2034 = vmatpush1.msra.mxu0 0.0
      %2035 = vmatprep.subr.mxu0 0.0
      %2036 = vmatpush1.msra.mxu0 0.0
      %2037 = vmatprep.subr.mxu0 0.0
      %2038 = vmatpush1.msra.mxu0 0.0
      %2039 = vmatprep.subr.mxu0 0.0
      %2040 = vmatpush1.msra.mxu0 0.0
      %2041 = vmatprep.subr.mxu0 0.0
      %2042 = vmatpush1.msra.mxu0 0.0
      %2043 = vmatprep.subr.mxu0 0.0
      %2044 = vmatpush1.msra.mxu0 0.0
      %2045 = vmatprep.subr.mxu0 0.0
      %2046 = vmatpush1.msra.mxu0 0.0
      %2047 = vmatprep.subr.mxu0 0.0
      %2048 = vmatpush1.msra.mxu0 0.0
      %2049 = vmatprep.subr.mxu0 0.0
      %2050 = vmatpush1.msra.mxu0 0.0
      %2051 = vmatprep.subr.mxu0 0.0
      %2052 = vmatpush1.msra.mxu0 0.0
      %2053 = vmatprep.subr.mxu0 0.0
      %2054 = vmatpush1.msra.mxu0 0.0
      %2055 = vmatprep.subr.mxu0 0.0
      %2056 = vmatpush1.msra.mxu0 0.0
      %2057 = vmatprep.subr.mxu0 0.0
      %2058 = vmatpush1.msra.mxu0 0.0
      %2059 = vmatprep.subr.mxu0 0.0
      %2060 = vmatpush1.msra.mxu0 0.0
      %2061 = vmatprep.subr.mxu0 0.0
      %2062 = vmatpush1.msra.mxu0 0.0
      %2063 = vmatprep.subr.mxu0 0.0
      %2064 = vmatpush1.msra.mxu0 0.0
      %2065 = vmatprep.subr.mxu0 0.0
      %2066 = vmatpush1.msra.mxu0 0.0
      %2067 = vmatprep.subr.mxu0 0.0
      %2068 = vmatpush1.msra.mxu0 0.0
      %2069 = vmatprep.mubr.f32.mxu0 0.0
      %2070 = vmatmul.mubr.f32.gmra.mrb[0].mxu0 %v1910
      %v2071 = vpop.f32.mrb[0].mxu0
      %v2072 = vadd.f32 0.0, %v2071
      %v2073 = vpop.f32.mrb[0].mxu0
      %2074 = vmatprep.mubr.f32.mxu0 0.0
      %2075 = vmatmul.mubr.f32.gmra.mrb[0].mxu0 %v1913
      %v2076 = vpop.f32.mrb[0].mxu0
      %v2077 = vadd.f32 0.0, %v2076
      %v2078 = vpop.f32.mrb[0].mxu0
      %2079 = vmatprep.mubr.f32.mxu0 0.0
      %2080 = vmatmul.mubr.f32.gmra.mrb[0].mxu0 %v1916
      %v2081 = vpop.f32.mrb[0].mxu0
      %v2082 = vadd.f32 0.0, %v2081
      %v2083 = vpop.f32.mrb[0].mxu0
      %2084 = vmatprep.mubr.f32.mxu0 0.0
      %2085 = vmatmul.mubr.f32.gmra.mrb[0].mxu0 %v1919
      %v2086 = vpop.f32.mrb[0].mxu0
      %v2087 = vadd.f32 0.0, %v2086
      %v2088 = vpop.f32.mrb[0].mxu0
      %2089 = vmatprep.mubr.f32.mxu0 0.0
      %2090 = vmatmul.mubr.f32.gmra.mrb[0].mxu0 %v1922
      %v2091 = vpop.f32.mrb[0].mxu0
      %v2092 = vadd.f32 0.0, %v2091
      %v2093 = vpop.f32.mrb[0].mxu0
      %2094 = vmatprep.mubr.f32.mxu0 0.0
      %2095 = vmatmul.mubr.f32.gmra.mrb[0].mxu0 %v1925
      %v2096 = vpop.f32.mrb[0].mxu0
      %v2097 = vadd.f32 0.0, %v2096
      %v2098 = vpop.f32.mrb[0].mxu0
      %2099 = vmatprep.mubr.f32.mxu0 0.0
      %2100 = vmatmul.mubr.f32.gmra.mrb[0].mxu0 %v1928
      %v2101 = vpop.f32.mrb[0].mxu0
      %v2102 = vadd.f32 0.0, %v2101
      %v2103 = vpop.f32.mrb[0].mxu0
      %2104 = vmatprep.mubr.f32.mxu0 0.0
      %2105 = vmatmul.mubr.f32.gmra.mrb[0].mxu0 %v1931
      %v2106 = vpop.f32.mrb[0].mxu0
      %v2107 = vadd.f32 0.0, %v2106
      %v2108 = vpop.f32.mrb[0].mxu0
      %2109 = vmatprep.mubr.f32.mxu0 0.0
      %2110 = vmatmul.mubr.f32.gmra.mrb[0].mxu0 %v1934
      %v2111 = vpop.f32.mrb[0].mxu0
      %v2112 = vadd.f32 0.0, %v2111
      %v2113 = vpop.f32.mrb[0].mxu0
      %2114 = vmatprep.mubr.f32.mxu0 0.0
      %2115 = vmatmul.mubr.f32.gmra.mrb[0].mxu0 %v1937
      %v2116 = vpop.f32.mrb[0].mxu0
      %v2117 = vadd.f32 0.0, %v2116
      %v2118 = vpop.f32.mrb[0].mxu0
      %2119 = vmatprep.mubr.f32.mxu0 0.0
      %2120 = vmatmul.mubr.f32.gmra.mrb[0].mxu0 %v1940
      %v2121 = vpop.f32.mrb[0].mxu0
      %v2122 = vadd.f32 0.0, %v2121
      %v2123 = vpop.f32.mrb[0].mxu0
      %2124 = vmatprep.mubr.f32.mxu0 0.0
      %2125 = vmatmul.mubr.f32.gmra.mrb[0].mxu0 %v1943
      %v2126 = vpop.f32.mrb[0].mxu0
      %v2127 = vadd.f32 0.0, %v2126
      %v2128 = vpop.f32.mrb[0].mxu0
      %2129 = vmatprep.mubr.f32.mxu0 0.0
      %2130 = vmatmul.mubr.f32.gmra.mrb[0].mxu0 %v1946
      %v2131 = vpop.f32.mrb[0].mxu0
      %v2132 = vadd.f32 0.0, %v2131
      %v2133 = vpop.f32.mrb[0].mxu0
      %2134 = vmatprep.mubr.f32.mxu0 0.0
      %2135 = vmatmul.mubr.f32.gmra.mrb[0].mxu0 %v1949
      %v2136 = vpop.f32.mrb[0].mxu0
      %v2137 = vadd.f32 0.0, %v2136
      %v2138 = vpop.f32.mrb[0].mxu0
      %2139 = vmatprep.mubr.f32.mxu0 0.0
      %2140 = vmatmul.mubr.f32.gmra.mrb[0].mxu0 %v1952
      %v2141 = vpop.f32.mrb[0].mxu0
      %v2142 = vadd.f32 0.0, %v2141
      %v2143 = vpop.f32.mrb[0].mxu0
      %2144 = vmatprep.mubr.f32.mxu0 0.0
      %2145 = vmatmul.mubr.f32.gmra.mrb[0].mxu0 %v1955
      %v2146 = vpop.f32.mrb[0].mxu0
      %v2147 = vadd.f32 0.0, %v2146
      %v2148 = vpop.f32.mrb[0].mxu0
      %2149 = vmatprep.mubr.f32.mxu0 0.0
      %2150 = vmatmul.mubr.f32.gmra.mrb[0].mxu0 %v1958
      %v2151 = vpop.f32.mrb[0].mxu0
      %v2152 = vadd.f32 0.0, %v2151
      %v2153 = vpop.f32.mrb[0].mxu0
      %2154 = vmatprep.mubr.f32.mxu0 0.0
      %2155 = vmatmul.mubr.f32.gmra.mrb[0].mxu0 %v1961
      %v2156 = vpop.f32.mrb[0].mxu0
      %v2157 = vadd.f32 0.0, %v2156
      %v2158 = vpop.f32.mrb[0].mxu0
      %2159 = vmatprep.mubr.f32.mxu0 0.0
      %2160 = vmatmul.mubr.f32.gmra.mrb[0].mxu0 %v1964
      %v2161 = vpop.f32.mrb[0].mxu0
      %v2162 = vadd.f32 0.0, %v2161
      %v2163 = vpop.f32.mrb[0].mxu0
      %2164 = vmatprep.mubr.f32.mxu0 0.0
      %2165 = vmatmul.mubr.f32.gmra.mrb[0].mxu0 %v1967
      %v2166 = vpop.f32.mrb[0].mxu0
      %v2167 = vadd.f32 0.0, %v2166
      %v2168 = vpop.f32.mrb[0].mxu0
      %2169 = vmatprep.mubr.f32.mxu0 0.0
      %2170 = vmatmul.mubr.f32.gmra.mrb[0].mxu0 %v1970
      %v2171 = vpop.f32.mrb[0].mxu0
      %v2172 = vadd.f32 0.0, %v2171
      %v2173 = vpop.f32.mrb[0].mxu0
      %2174 = vmatprep.mubr.f32.mxu0 0.0
      %2175 = vmatmul.mubr.f32.gmra.mrb[0].mxu0 %v1973
      %v2176 = vpop.f32.mrb[0].mxu0
      %v2177 = vadd.f32 0.0, %v2176
      %v2178 = vpop.f32.mrb[0].mxu0
      %2179 = vmatprep.mubr.f32.mxu0 0.0
      %2180 = vmatmul.mubr.f32.gmra.mrb[0].mxu0 %v1976
      %v2181 = vpop.f32.mrb[0].mxu0
      %v2182 = vadd.f32 0.0, %v2181
      %v2183 = vpop.f32.mrb[0].mxu0
      %2184 = vmatprep.mubr.f32.mxu0 0.0
      %2185 = vmatmul.mubr.f32.gmra.mrb[0].mxu0 %v1979
      %v2186 = vpop.f32.mrb[0].mxu0
      %v2187 = vadd.f32 0.0, %v2186
      %v2188 = vpop.f32.mrb[0].mxu0
      %2189 = vmatprep.mubr.f32.mxu0 0.0
      %2190 = vmatmul.mubr.f32.gmra.mrb[0].mxu0 %v1982
      %v2191 = vpop.f32.mrb[0].mxu0
      %v2192 = vadd.f32 0.0, %v2191
      %v2193 = vpop.f32.mrb[0].mxu0
      %2194 = vmatprep.mubr.f32.mxu0 0.0
      %2195 = vmatmul.mubr.f32.gmra.mrb[0].mxu0 %v1985
      %v2196 = vpop.f32.mrb[0].mxu0
      %v2197 = vadd.f32 0.0, %v2196
      %v2198 = vpop.f32.mrb[0].mxu0
      %2199 = vmatprep.mubr.f32.mxu0 0.0
      %2200 = vmatmul.mubr.f32.gmra.mrb[0].mxu0 %v1988
      %v2201 = vpop.f32.mrb[0].mxu0
      %v2202 = vadd.f32 0.0, %v2201
      %v2203 = vpop.f32.mrb[0].mxu0
      %2204 = vmatprep.mubr.f32.mxu0 0.0
      %2205 = vmatmul.mubr.f32.gmra.mrb[0].mxu0 %v1991
      %v2206 = vpop.f32.mrb[0].mxu0
      %v2207 = vadd.f32 0.0, %v2206
      %v2208 = vpop.f32.mrb[0].mxu0
      %2209 = vmatprep.mubr.f32.mxu0 0.0
      %2210 = vmatmul.mubr.f32.gmra.mrb[0].mxu0 %v1994
      %v2211 = vpop.f32.mrb[0].mxu0
      %v2212 = vadd.f32 0.0, %v2211
      %v2213 = vpop.f32.mrb[0].mxu0
      %2214 = vmatprep.mubr.f32.mxu0 0.0
      %2215 = vmatmul.mubr.f32.gmra.mrb[0].mxu0 %v1997
      %v2216 = vpop.f32.mrb[0].mxu0
      %v2217 = vadd.f32 0.0, %v2216
      %v2218 = vpop.f32.mrb[0].mxu0
      %2219 = vmatprep.mubr.f32.mxu0 0.0
      %2220 = vmatmul.mubr.f32.gmra.mrb[0].mxu0 %v2000
      %v2221 = vpop.f32.mrb[0].mxu0
      %v2222 = vadd.f32 0.0, %v2221
      %v2223 = vpop.f32.mrb[0].mxu0
      %2224 = vmatprep.mubr.f32.mxu0 0.0
      %2225 = vmatmul.mubr.f32.gmra.mrb[0].mxu0 %v2003
      %v2226 = vpop.f32.mrb[0].mxu0
      %v2227 = vadd.f32 0.0, %v2226
      %v2228 = vpop.f32.mrb[0].mxu0
      %2229 = vdwg.mxu0
      %v2230 = vadd.f32 %v1840, %v2072
      %v2231 = vadd.f32 %v1841, %v2077
      %v2232 = vadd.f32 %v1842, %v2082
      %v2233 = vadd.f32 %v1843, %v2087
      %v2234 = vadd.f32 %v1844, %v2092
      %v2235 = vadd.f32 %v1845, %v2097
      %v2236 = vadd.f32 %v1846, %v2102
      %v2237 = vadd.f32 %v1847, %v2107
      %v2238 = vadd.f32 %v1848, %v2112
      %v2239 = vadd.f32 %v1849, %v2117
      %v2240 = vadd.f32 %v1850, %v2122
      %v2241 = vadd.f32 %v1851, %v2127
      %v2242 = vadd.f32 %v1852, %v2132
      %v2243 = vadd.f32 %v1853, %v2137
      %v2244 = vadd.f32 %v1854, %v2142
      %v2245 = vadd.f32 %v1855, %v2147
      %v2246 = vadd.f32 %v1856, %v2152
      %v2247 = vadd.f32 %v1857, %v2157
      %v2248 = vadd.f32 %v1858, %v2162
      %v2249 = vadd.f32 %v1859, %v2167
      %v2250 = vadd.f32 %v1860, %v2172
      %v2251 = vadd.f32 %v1861, %v2177
      %v2252 = vadd.f32 %v1862, %v2182
      %v2253 = vadd.f32 %v1863, %v2187
      %v2254 = vadd.f32 %v1864, %v2192
      %v2255 = vadd.f32 %v1865, %v2197
      %v2256 = vadd.f32 %v1866, %v2202
      %v2257 = vadd.f32 %v1867, %v2207
      %v2258 = vadd.f32 %v1868, %v2212
      %v2259 = vadd.f32 %v1869, %v2217
      %v2260 = vadd.f32 %v1870, %v2222
      %v2261 = vadd.f32 %v1871, %v2227
      %v2262 = vld [vmem:[%s344 + $0x2] sm:$0xff]
      %v2263 = vld [vmem:[%s344 + $0x12] sm:$0xff]
      %v2264 = vld [vmem:[%s344 + $0x22] sm:$0xff]
      %v2265 = vld [vmem:[%s344 + $0x32] sm:$0xff]
      %v2266 = vld [vmem:[%s344 + $0x42] sm:$0xff]
      %v2267 = vld [vmem:[%s344 + $0x52] sm:$0xff]
      %v2268 = vld [vmem:[%s344 + $0x62] sm:$0xff]
      %v2269 = vld [vmem:[%s344 + $0x72] sm:$0xff]
      %v2270 = vld [vmem:[%s344 + $0xa2] sm:$0xff]
      %v2271 = vld [vmem:[%s344 + $0xb2] sm:$0xff]
      %v2272 = vld [vmem:[%s344 + $0xc2] sm:$0xff]
      %v2273 = vld [vmem:[%s344 + $0xd2] sm:$0xff]
      %v2274 = vld [vmem:[%s344 + $0xe2] sm:$0xff]
      %v2275 = vld [vmem:[%s344 + $0xf2] sm:$0xff]
      %v2276 = vld [vmem:[%s344 + $0x102] sm:$0xff]
      %v2277 = vld [vmem:[%s344 + $0x112] sm:$0xff]
      %v2278 = vld [vmem:[%s344 + $0x142] sm:$0xff]
      %v2279 = vld [vmem:[%s344 + $0x152] sm:$0xff]
      %v2280 = vld [vmem:[%s344 + $0x162] sm:$0xff]
      %v2281 = vld [vmem:[%s344 + $0x172] sm:$0xff]
      %v2282 = vld [vmem:[%s344 + $0x182] sm:$0xff]
      %v2283 = vld [vmem:[%s344 + $0x192] sm:$0xff]
      %v2284 = vld [vmem:[%s344 + $0x1a2] sm:$0xff]
      %v2285 = vld [vmem:[%s344 + $0x1b2] sm:$0xff]
      %v2286 = vld [vmem:[%s344 + $0x1e2] sm:$0xff]
      %v2287 = vld [vmem:[%s344 + $0x1f2] sm:$0xff]
      %v2288 = vld [vmem:[%s344 + $0x202] sm:$0xff]
      %v2289 = vld [vmem:[%s344 + $0x212] sm:$0xff]
      %v2290 = vld [vmem:[%s344 + $0x222] sm:$0xff]
      %v2291 = vld [vmem:[%s344 + $0x232] sm:$0xff]
      %v2292 = vld [vmem:[%s344 + $0x242] sm:$0xff]
      %v2293 = vld [vmem:[%s344 + $0x252] sm:$0xff]
      %s2294 = scalar_lea.vmem %s1, 160
      %v2295 = vld [vmem:[%s2294] sm:$0xff]
      %v2296 = vld [vmem:[%s2294 + $0x8] sm:$0xff]
      %v2297 = vld [vmem:[%s2294 + $0x10] sm:$0xff]
      %v2298 = vld [vmem:[%s2294 + $0x18] sm:$0xff]
      %v2300 = vsel %vm230, %v2262, 0
      %v2303 = vsel %vm230, %v2263, 0
      %v2306 = vsel %vm230, %v2264, 0
      %v2309 = vsel %vm230, %v2265, 0
      %v2312 = vsel %vm230, %v2266, 0
      %v2315 = vsel %vm230, %v2267, 0
      %v2318 = vsel %vm230, %v2268, 0
      %v2321 = vsel %vm230, %v2269, 0
      %v2324 = vsel %vm230, %v2270, 0
      %v2327 = vsel %vm230, %v2271, 0
      %v2330 = vsel %vm230, %v2272, 0
      %v2333 = vsel %vm230, %v2273, 0
      %v2336 = vsel %vm230, %v2274, 0
      %v2339 = vsel %vm230, %v2275, 0
      %v2342 = vsel %vm230, %v2276, 0
      %v2345 = vsel %vm230, %v2277, 0
      %v2348 = vsel %vm230, %v2278, 0
      %v2351 = vsel %vm230, %v2279, 0
      %v2354 = vsel %vm230, %v2280, 0
      %v2357 = vsel %vm230, %v2281, 0
      %v2360 = vsel %vm230, %v2282, 0
      %v2363 = vsel %vm230, %v2283, 0
      %v2366 = vsel %vm230, %v2284, 0
      %v2369 = vsel %vm230, %v2285, 0
      %v2372 = vsel %vm230, %v2286, 0
      %v2375 = vsel %vm230, %v2287, 0
      %v2378 = vsel %vm230, %v2288, 0
      %v2381 = vsel %vm230, %v2289, 0
      %v2384 = vsel %vm230, %v2290, 0
      %v2387 = vsel %vm230, %v2291, 0
      %v2390 = vsel %vm230, %v2292, 0
      %v2393 = vsel %vm230, %v2293, 0
      %2395 = vmatprep.subr.mxu0 0.0
      %2396 = vmatpush1.msra.mxu0 %v2295
      %2397 = vmatprep.subr.mxu0 0.0
      %2398 = vmatpush1.msra.mxu0 %v2296
      %2399 = vmatprep.subr.mxu0 0.0
      %2400 = vmatpush1.msra.mxu0 %v2297
      %2401 = vmatprep.subr.mxu0 0.0
      %2402 = vmatpush1.msra.mxu0 %v2298
      %2403 = vmatprep.subr.mxu0 0.0
      %2404 = vmatpush1.msra.mxu0 0.0
      %2405 = vmatprep.subr.mxu0 0.0
      %2406 = vmatpush1.msra.mxu0 0.0
      %2407 = vmatprep.subr.mxu0 0.0
      %2408 = vmatpush1.msra.mxu0 0.0
      %2409 = vmatprep.subr.mxu0 0.0
      %2410 = vmatpush1.msra.mxu0 0.0
      %2411 = vmatprep.subr.mxu0 0.0
      %2412 = vmatpush1.msra.mxu0 0.0
      %2413 = vmatprep.subr.mxu0 0.0
      %2414 = vmatpush1.msra.mxu0 0.0
      %2415 = vmatprep.subr.mxu0 0.0
      %2416 = vmatpush1.msra.mxu0 0.0
      %2417 = vmatprep.subr.mxu0 0.0
      %2418 = vmatpush1.msra.mxu0 0.0
      %2419 = vmatprep.subr.mxu0 0.0
      %2420 = vmatpush1.msra.mxu0 0.0
      %2421 = vmatprep.subr.mxu0 0.0
      %2422 = vmatpush1.msra.mxu0 0.0
      %2423 = vmatprep.subr.mxu0 0.0
      %2424 = vmatpush1.msra.mxu0 0.0
      %2425 = vmatprep.subr.mxu0 0.0
      %2426 = vmatpush1.msra.mxu0 0.0
      %2427 = vmatprep.subr.mxu0 0.0
      %2428 = vmatpush1.msra.mxu0 0.0
      %2429 = vmatprep.subr.mxu0 0.0
      %2430 = vmatpush1.msra.mxu0 0.0
      %2431 = vmatprep.subr.mxu0 0.0
      %2432 = vmatpush1.msra.mxu0 0.0
      %2433 = vmatprep.subr.mxu0 0.0
      %2434 = vmatpush1.msra.mxu0 0.0
      %2435 = vmatprep.subr.mxu0 0.0
      %2436 = vmatpush1.msra.mxu0 0.0
      %2437 = vmatprep.subr.mxu0 0.0
      %2438 = vmatpush1.msra.mxu0 0.0
      %2439 = vmatprep.subr.mxu0 0.0
      %2440 = vmatpush1.msra.mxu0 0.0
      %2441 = vmatprep.subr.mxu0 0.0
      %2442 = vmatpush1.msra.mxu0 0.0
      %2443 = vmatprep.subr.mxu0 0.0
      %2444 = vmatpush1.msra.mxu0 0.0
      %2445 = vmatprep.subr.mxu0 0.0
      %2446 = vmatpush1.msra.mxu0 0.0
      %2447 = vmatprep.subr.mxu0 0.0
      %2448 = vmatpush1.msra.mxu0 0.0
      %2449 = vmatprep.subr.mxu0 0.0
      %2450 = vmatpush1.msra.mxu0 0.0
      %2451 = vmatprep.subr.mxu0 0.0
      %2452 = vmatpush1.msra.mxu0 0.0
      %2453 = vmatprep.subr.mxu0 0.0
      %2454 = vmatpush1.msra.mxu0 0.0
      %2455 = vmatprep.subr.mxu0 0.0
      %2456 = vmatpush1.msra.mxu0 0.0
      %2457 = vmatprep.subr.mxu0 0.0
      %2458 = vmatpush1.msra.mxu0 0.0
      %2459 = vmatprep.mubr.f32.mxu0 0.0
      %2460 = vmatmul.mubr.f32.gmra.mrb[0].mxu0 %v2300
      %v2461 = vpop.f32.mrb[0].mxu0
      %v2462 = vadd.f32 0.0, %v2461
      %v2463 = vpop.f32.mrb[0].mxu0
      %2464 = vmatprep.mubr.f32.mxu0 0.0
      %2465 = vmatmul.mubr.f32.gmra.mrb[0].mxu0 %v2303
      %v2466 = vpop.f32.mrb[0].mxu0
      %v2467 = vadd.f32 0.0, %v2466
      %v2468 = vpop.f32.mrb[0].mxu0
      %2469 = vmatprep.mubr.f32.mxu0 0.0
      %2470 = vmatmul.mubr.f32.gmra.mrb[0].mxu0 %v2306
      %v2471 = vpop.f32.mrb[0].mxu0
      %v2472 = vadd.f32 0.0, %v2471
      %v2473 = vpop.f32.mrb[0].mxu0
      %2474 = vmatprep.mubr.f32.mxu0 0.0
      %2475 = vmatmul.mubr.f32.gmra.mrb[0].mxu0 %v2309
      %v2476 = vpop.f32.mrb[0].mxu0
      %v2477 = vadd.f32 0.0, %v2476
      %v2478 = vpop.f32.mrb[0].mxu0
      %2479 = vmatprep.mubr.f32.mxu0 0.0
      %2480 = vmatmul.mubr.f32.gmra.mrb[0].mxu0 %v2312
      %v2481 = vpop.f32.mrb[0].mxu0
      %v2482 = vadd.f32 0.0, %v2481
      %v2483 = vpop.f32.mrb[0].mxu0
      %2484 = vmatprep.mubr.f32.mxu0 0.0
      %2485 = vmatmul.mubr.f32.gmra.mrb[0].mxu0 %v2315
      %v2486 = vpop.f32.mrb[0].mxu0
      %v2487 = vadd.f32 0.0, %v2486
      %v2488 = vpop.f32.mrb[0].mxu0
      %2489 = vmatprep.mubr.f32.mxu0 0.0
      %2490 = vmatmul.mubr.f32.gmra.mrb[0].mxu0 %v2318
      %v2491 = vpop.f32.mrb[0].mxu0
      %v2492 = vadd.f32 0.0, %v2491
      %v2493 = vpop.f32.mrb[0].mxu0
      %2494 = vmatprep.mubr.f32.mxu0 0.0
      %2495 = vmatmul.mubr.f32.gmra.mrb[0].mxu0 %v2321
      %v2496 = vpop.f32.mrb[0].mxu0
      %v2497 = vadd.f32 0.0, %v2496
      %v2498 = vpop.f32.mrb[0].mxu0
      %2499 = vmatprep.mubr.f32.mxu0 0.0
      %2500 = vmatmul.mubr.f32.gmra.mrb[0].mxu0 %v2324
      %v2501 = vpop.f32.mrb[0].mxu0
      %v2502 = vadd.f32 0.0, %v2501
      %v2503 = vpop.f32.mrb[0].mxu0
      %2504 = vmatprep.mubr.f32.mxu0 0.0
      %2505 = vmatmul.mubr.f32.gmra.mrb[0].mxu0 %v2327
      %v2506 = vpop.f32.mrb[0].mxu0
      %v2507 = vadd.f32 0.0, %v2506
      %v2508 = vpop.f32.mrb[0].mxu0
      %2509 = vmatprep.mubr.f32.mxu0 0.0
      %2510 = vmatmul.mubr.f32.gmra.mrb[0].mxu0 %v2330
      %v2511 = vpop.f32.mrb[0].mxu0
      %v2512 = vadd.f32 0.0, %v2511
      %v2513 = vpop.f32.mrb[0].mxu0
      %2514 = vmatprep.mubr.f32.mxu0 0.0
      %2515 = vmatmul.mubr.f32.gmra.mrb[0].mxu0 %v2333
      %v2516 = vpop.f32.mrb[0].mxu0
      %v2517 = vadd.f32 0.0, %v2516
      %v2518 = vpop.f32.mrb[0].mxu0
      %2519 = vmatprep.mubr.f32.mxu0 0.0
      %2520 = vmatmul.mubr.f32.gmra.mrb[0].mxu0 %v2336
      %v2521 = vpop.f32.mrb[0].mxu0
      %v2522 = vadd.f32 0.0, %v2521
      %v2523 = vpop.f32.mrb[0].mxu0
      %2524 = vmatprep.mubr.f32.mxu0 0.0
      %2525 = vmatmul.mubr.f32.gmra.mrb[0].mxu0 %v2339
      %v2526 = vpop.f32.mrb[0].mxu0
      %v2527 = vadd.f32 0.0, %v2526
      %v2528 = vpop.f32.mrb[0].mxu0
      %2529 = vmatprep.mubr.f32.mxu0 0.0
      %2530 = vmatmul.mubr.f32.gmra.mrb[0].mxu0 %v2342
      %v2531 = vpop.f32.mrb[0].mxu0
      %v2532 = vadd.f32 0.0, %v2531
      %v2533 = vpop.f32.mrb[0].mxu0
      %2534 = vmatprep.mubr.f32.mxu0 0.0
      %2535 = vmatmul.mubr.f32.gmra.mrb[0].mxu0 %v2345
      %v2536 = vpop.f32.mrb[0].mxu0
      %v2537 = vadd.f32 0.0, %v2536
      %v2538 = vpop.f32.mrb[0].mxu0
      %2539 = vmatprep.mubr.f32.mxu0 0.0
      %2540 = vmatmul.mubr.f32.gmra.mrb[0].mxu0 %v2348
      %v2541 = vpop.f32.mrb[0].mxu0
      %v2542 = vadd.f32 0.0, %v2541
      %v2543 = vpop.f32.mrb[0].mxu0
      %2544 = vmatprep.mubr.f32.mxu0 0.0
      %2545 = vmatmul.mubr.f32.gmra.mrb[0].mxu0 %v2351
      %v2546 = vpop.f32.mrb[0].mxu0
      %v2547 = vadd.f32 0.0, %v2546
      %v2548 = vpop.f32.mrb[0].mxu0
      %2549 = vmatprep.mubr.f32.mxu0 0.0
      %2550 = vmatmul.mubr.f32.gmra.mrb[0].mxu0 %v2354
      %v2551 = vpop.f32.mrb[0].mxu0
      %v2552 = vadd.f32 0.0, %v2551
      %v2553 = vpop.f32.mrb[0].mxu0
      %2554 = vmatprep.mubr.f32.mxu0 0.0
      %2555 = vmatmul.mubr.f32.gmra.mrb[0].mxu0 %v2357
      %v2556 = vpop.f32.mrb[0].mxu0
      %v2557 = vadd.f32 0.0, %v2556
      %v2558 = vpop.f32.mrb[0].mxu0
      %2559 = vmatprep.mubr.f32.mxu0 0.0
      %2560 = vmatmul.mubr.f32.gmra.mrb[0].mxu0 %v2360
      %v2561 = vpop.f32.mrb[0].mxu0
      %v2562 = vadd.f32 0.0, %v2561
      %v2563 = vpop.f32.mrb[0].mxu0
      %2564 = vmatprep.mubr.f32.mxu0 0.0
      %2565 = vmatmul.mubr.f32.gmra.mrb[0].mxu0 %v2363
      %v2566 = vpop.f32.mrb[0].mxu0
      %v2567 = vadd.f32 0.0, %v2566
      %v2568 = vpop.f32.mrb[0].mxu0
      %2569 = vmatprep.mubr.f32.mxu0 0.0
      %2570 = vmatmul.mubr.f32.gmra.mrb[0].mxu0 %v2366
      %v2571 = vpop.f32.mrb[0].mxu0
      %v2572 = vadd.f32 0.0, %v2571
      %v2573 = vpop.f32.mrb[0].mxu0
      %2574 = vmatprep.mubr.f32.mxu0 0.0
      %2575 = vmatmul.mubr.f32.gmra.mrb[0].mxu0 %v2369
      %v2576 = vpop.f32.mrb[0].mxu0
      %v2577 = vadd.f32 0.0, %v2576
      %v2578 = vpop.f32.mrb[0].mxu0
      %2579 = vmatprep.mubr.f32.mxu0 0.0
      %2580 = vmatmul.mubr.f32.gmra.mrb[0].mxu0 %v2372
      %v2581 = vpop.f32.mrb[0].mxu0
      %v2582 = vadd.f32 0.0, %v2581
      %v2583 = vpop.f32.mrb[0].mxu0
      %2584 = vmatprep.mubr.f32.mxu0 0.0
      %2585 = vmatmul.mubr.f32.gmra.mrb[0].mxu0 %v2375
      %v2586 = vpop.f32.mrb[0].mxu0
      %v2587 = vadd.f32 0.0, %v2586
      %v2588 = vpop.f32.mrb[0].mxu0
      %2589 = vmatprep.mubr.f32.mxu0 0.0
      %2590 = vmatmul.mubr.f32.gmra.mrb[0].mxu0 %v2378
      %v2591 = vpop.f32.mrb[0].mxu0
      %v2592 = vadd.f32 0.0, %v2591
      %v2593 = vpop.f32.mrb[0].mxu0
      %2594 = vmatprep.mubr.f32.mxu0 0.0
      %2595 = vmatmul.mubr.f32.gmra.mrb[0].mxu0 %v2381
      %v2596 = vpop.f32.mrb[0].mxu0
      %v2597 = vadd.f32 0.0, %v2596
      %v2598 = vpop.f32.mrb[0].mxu0
      %2599 = vmatprep.mubr.f32.mxu0 0.0
      %2600 = vmatmul.mubr.f32.gmra.mrb[0].mxu0 %v2384
      %v2601 = vpop.f32.mrb[0].mxu0
      %v2602 = vadd.f32 0.0, %v2601
      %v2603 = vpop.f32.mrb[0].mxu0
      %2604 = vmatprep.mubr.f32.mxu0 0.0
      %2605 = vmatmul.mubr.f32.gmra.mrb[0].mxu0 %v2387
      %v2606 = vpop.f32.mrb[0].mxu0
      %v2607 = vadd.f32 0.0, %v2606
      %v2608 = vpop.f32.mrb[0].mxu0
      %2609 = vmatprep.mubr.f32.mxu0 0.0
      %2610 = vmatmul.mubr.f32.gmra.mrb[0].mxu0 %v2390
      %v2611 = vpop.f32.mrb[0].mxu0
      %v2612 = vadd.f32 0.0, %v2611
      %v2613 = vpop.f32.mrb[0].mxu0
      %2614 = vmatprep.mubr.f32.mxu0 0.0
      %2615 = vmatmul.mubr.f32.gmra.mrb[0].mxu0 %v2393
      %v2616 = vpop.f32.mrb[0].mxu0
      %v2617 = vadd.f32 0.0, %v2616
      %v2618 = vpop.f32.mrb[0].mxu0
      %2619 = vdwg.mxu0
      %v2620 = vadd.f32 %v2230, %v2462
      %v2621 = vadd.f32 %v2231, %v2467
      %v2622 = vadd.f32 %v2232, %v2472
      %v2623 = vadd.f32 %v2233, %v2477
      %v2624 = vadd.f32 %v2234, %v2482
      %v2625 = vadd.f32 %v2235, %v2487
      %v2626 = vadd.f32 %v2236, %v2492
      %v2627 = vadd.f32 %v2237, %v2497
      %v2628 = vadd.f32 %v2238, %v2502
      %v2629 = vadd.f32 %v2239, %v2507
      %v2630 = vadd.f32 %v2240, %v2512
      %v2631 = vadd.f32 %v2241, %v2517
      %v2632 = vadd.f32 %v2242, %v2522
      %v2633 = vadd.f32 %v2243, %v2527
      %v2634 = vadd.f32 %v2244, %v2532
      %v2635 = vadd.f32 %v2245, %v2537
      %v2636 = vadd.f32 %v2246, %v2542
      %v2637 = vadd.f32 %v2247, %v2547
      %v2638 = vadd.f32 %v2248, %v2552
      %v2639 = vadd.f32 %v2249, %v2557
      %v2640 = vadd.f32 %v2250, %v2562
      %v2641 = vadd.f32 %v2251, %v2567
      %v2642 = vadd.f32 %v2252, %v2572
      %v2643 = vadd.f32 %v2253, %v2577
      %v2644 = vadd.f32 %v2254, %v2582
      %v2645 = vadd.f32 %v2255, %v2587
      %v2646 = vadd.f32 %v2256, %v2592
      %v2647 = vadd.f32 %v2257, %v2597
      %v2648 = vadd.f32 %v2258, %v2602
      %v2649 = vadd.f32 %v2259, %v2607
      %v2650 = vadd.f32 %v2260, %v2612
      %v2651 = vadd.f32 %v2261, %v2617
      %s2652 = scalar_lea.vmem [#allocation2], 32
      %v2653 = vld [vmem:[%s2652] sm:$0xff]
      %v2654 = vld [vmem:[%s2652 + $0x10] sm:$0xff]
      %v2655 = vld [vmem:[%s2652 + $0x20] sm:$0xff]
      %v2656 = vld [vmem:[%s2652 + $0x30] sm:$0xff]
      %v2657 = vld [vmem:[%s2652 + $0x40] sm:$0xff]
      %v2658 = vld [vmem:[%s2652 + $0x50] sm:$0xff]
      %v2659 = vld [vmem:[%s2652 + $0x60] sm:$0xff]
      %v2660 = vld [vmem:[%s2652 + $0x70] sm:$0xff]
      %v2661 = vld [vmem:[%s2652 + $0xa0] sm:$0xff]
      %v2662 = vld [vmem:[%s2652 + $0xb0] sm:$0xff]
      %v2663 = vld [vmem:[%s2652 + $0xc0] sm:$0xff]
      %v2664 = vld [vmem:[%s2652 + $0xd0] sm:$0xff]
      %v2665 = vld [vmem:[%s2652 + $0xe0] sm:$0xff]
      %v2666 = vld [vmem:[%s2652 + $0xf0] sm:$0xff]
      %v2667 = vld [vmem:[%s2652 + $0x100] sm:$0xff]
      %v2668 = vld [vmem:[%s2652 + $0x110] sm:$0xff]
      %v2669 = vld [vmem:[%s2652 + $0x140] sm:$0xff]
      %v2670 = vld [vmem:[%s2652 + $0x150] sm:$0xff]
      %v2671 = vld [vmem:[%s2652 + $0x160] sm:$0xff]
      %v2672 = vld [vmem:[%s2652 + $0x170] sm:$0xff]
      %v2673 = vld [vmem:[%s2652 + $0x180] sm:$0xff]
      %v2674 = vld [vmem:[%s2652 + $0x190] sm:$0xff]
      %v2675 = vld [vmem:[%s2652 + $0x1a0] sm:$0xff]
      %v2676 = vld [vmem:[%s2652 + $0x1b0] sm:$0xff]
      %v2677 = vld [vmem:[%s2652 + $0x1e0] sm:$0xff]
      %v2678 = vld [vmem:[%s2652 + $0x1f0] sm:$0xff]
      %v2679 = vld [vmem:[%s2652 + $0x200] sm:$0xff]
      %v2680 = vld [vmem:[%s2652 + $0x210] sm:$0xff]
      %v2681 = vld [vmem:[%s2652 + $0x220] sm:$0xff]
      %v2682 = vld [vmem:[%s2652 + $0x230] sm:$0xff]
      %v2683 = vld [vmem:[%s2652 + $0x240] sm:$0xff]
      %v2684 = vld [vmem:[%s2652 + $0x250] sm:$0xff]
      %s2685 = scalar_lea.vmem %s1, 192
      %v2686 = vld [vmem:[%s2685] sm:$0xff]
      %v2687 = vld [vmem:[%s2685 + $0x8] sm:$0xff]
      %v2688 = vld [vmem:[%s2685 + $0x10] sm:$0xff]
      %v2689 = vld [vmem:[%s2685 + $0x18] sm:$0xff]
      %v2691 = vsel %vm230, %v2653, 0
      %v2694 = vsel %vm230, %v2654, 0
      %v2697 = vsel %vm230, %v2655, 0
      %v2700 = vsel %vm230, %v2656, 0
      %v2703 = vsel %vm230, %v2657, 0
      %v2706 = vsel %vm230, %v2658, 0
      %v2709 = vsel %vm230, %v2659, 0
      %v2712 = vsel %vm230, %v2660, 0
      %v2715 = vsel %vm230, %v2661, 0
      %v2718 = vsel %vm230, %v2662, 0
      %v2721 = vsel %vm230, %v2663, 0
      %v2724 = vsel %vm230, %v2664, 0
      %v2727 = vsel %vm230, %v2665, 0
      %v2730 = vsel %vm230, %v2666, 0
      %v2733 = vsel %vm230, %v2667, 0
      %v2736 = vsel %vm230, %v2668, 0
      %v2739 = vsel %vm230, %v2669, 0
      %v2742 = vsel %vm230, %v2670, 0
      %v2745 = vsel %vm230, %v2671, 0
      %v2748 = vsel %vm230, %v2672, 0
      %v2751 = vsel %vm230, %v2673, 0
      %v2754 = vsel %vm230, %v2674, 0
      %v2757 = vsel %vm230, %v2675, 0
      %v2760 = vsel %vm230, %v2676, 0
      %v2763 = vsel %vm230, %v2677, 0
      %v2766 = vsel %vm230, %v2678, 0
      %v2769 = vsel %vm230, %v2679, 0
      %v2772 = vsel %vm230, %v2680, 0
      %v2775 = vsel %vm230, %v2681, 0
      %v2778 = vsel %vm230, %v2682, 0
      %v2781 = vsel %vm230, %v2683, 0
      %v2784 = vsel %vm230, %v2684, 0
      %2786 = vmatprep.subr.mxu0 0.0
      %2787 = vmatpush1.msra.mxu0 %v2686
      %2788 = vmatprep.subr.mxu0 0.0
      %2789 = vmatpush1.msra.mxu0 %v2687
      %2790 = vmatprep.subr.mxu0 0.0
      %2791 = vmatpush1.msra.mxu0 %v2688
      %2792 = vmatprep.subr.mxu0 0.0
      %2793 = vmatpush1.msra.mxu0 %v2689
      %2794 = vmatprep.subr.mxu0 0.0
      %2795 = vmatpush1.msra.mxu0 0.0
      %2796 = vmatprep.subr.mxu0 0.0
      %2797 = vmatpush1.msra.mxu0 0.0
      %2798 = vmatprep.subr.mxu0 0.0
      %2799 = vmatpush1.msra.mxu0 0.0
      %2800 = vmatprep.subr.mxu0 0.0
      %2801 = vmatpush1.msra.mxu0 0.0
      %2802 = vmatprep.subr.mxu0 0.0
      %2803 = vmatpush1.msra.mxu0 0.0
      %2804 = vmatprep.subr.mxu0 0.0
      %2805 = vmatpush1.msra.mxu0 0.0
      %2806 = vmatprep.subr.mxu0 0.0
      %2807 = vmatpush1.msra.mxu0 0.0
      %2808 = vmatprep.subr.mxu0 0.0
      %2809 = vmatpush1.msra.mxu0 0.0
      %2810 = vmatprep.subr.mxu0 0.0
      %2811 = vmatpush1.msra.mxu0 0.0
      %2812 = vmatprep.subr.mxu0 0.0
      %2813 = vmatpush1.msra.mxu0 0.0
      %2814 = vmatprep.subr.mxu0 0.0
      %2815 = vmatpush1.msra.mxu0 0.0
      %2816 = vmatprep.subr.mxu0 0.0
      %2817 = vmatpush1.msra.mxu0 0.0
      %2818 = vmatprep.subr.mxu0 0.0
      %2819 = vmatpush1.msra.mxu0 0.0
      %2820 = vmatprep.subr.mxu0 0.0
      %2821 = vmatpush1.msra.mxu0 0.0
      %2822 = vmatprep.subr.mxu0 0.0
      %2823 = vmatpush1.msra.mxu0 0.0
      %2824 = vmatprep.subr.mxu0 0.0
      %2825 = vmatpush1.msra.mxu0 0.0
      %2826 = vmatprep.subr.mxu0 0.0
      %2827 = vmatpush1.msra.mxu0 0.0
      %2828 = vmatprep.subr.mxu0 0.0
      %2829 = vmatpush1.msra.mxu0 0.0
      %2830 = vmatprep.subr.mxu0 0.0
      %2831 = vmatpush1.msra.mxu0 0.0
      %2832 = vmatprep.subr.mxu0 0.0
      %2833 = vmatpush1.msra.mxu0 0.0
      %2834 = vmatprep.subr.mxu0 0.0
      %2835 = vmatpush1.msra.mxu0 0.0
      %2836 = vmatprep.subr.mxu0 0.0
      %2837 = vmatpush1.msra.mxu0 0.0
      %2838 = vmatprep.subr.mxu0 0.0
      %2839 = vmatpush1.msra.mxu0 0.0
      %2840 = vmatprep.subr.mxu0 0.0
      %2841 = vmatpush1.msra.mxu0 0.0
      %2842 = vmatprep.subr.mxu0 0.0
      %2843 = vmatpush1.msra.mxu0 0.0
      %2844 = vmatprep.subr.mxu0 0.0
      %2845 = vmatpush1.msra.mxu0 0.0
      %2846 = vmatprep.subr.mxu0 0.0
      %2847 = vmatpush1.msra.mxu0 0.0
      %2848 = vmatprep.subr.mxu0 0.0
      %2849 = vmatpush1.msra.mxu0 0.0
      %2850 = vmatprep.mubr.f32.mxu0 0.0
      %2851 = vmatmul.mubr.f32.gmra.mrb[0].mxu0 %v2691
      %v2852 = vpop.f32.mrb[0].mxu0
      %v2853 = vadd.f32 0.0, %v2852
      %v2854 = vpop.f32.mrb[0].mxu0
      %2855 = vmatprep.mubr.f32.mxu0 0.0
      %2856 = vmatmul.mubr.f32.gmra.mrb[0].mxu0 %v2694
      %v2857 = vpop.f32.mrb[0].mxu0
      %v2858 = vadd.f32 0.0, %v2857
      %v2859 = vpop.f32.mrb[0].mxu0
      %2860 = vmatprep.mubr.f32.mxu0 0.0
      %2861 = vmatmul.mubr.f32.gmra.mrb[0].mxu0 %v2697
      %v2862 = vpop.f32.mrb[0].mxu0
      %v2863 = vadd.f32 0.0, %v2862
      %v2864 = vpop.f32.mrb[0].mxu0
      %2865 = vmatprep.mubr.f32.mxu0 0.0
      %2866 = vmatmul.mubr.f32.gmra.mrb[0].mxu0 %v2700
      %v2867 = vpop.f32.mrb[0].mxu0
      %v2868 = vadd.f32 0.0, %v2867
      %v2869 = vpop.f32.mrb[0].mxu0
      %2870 = vmatprep.mubr.f32.mxu0 0.0
      %2871 = vmatmul.mubr.f32.gmra.mrb[0].mxu0 %v2703
      %v2872 = vpop.f32.mrb[0].mxu0
      %v2873 = vadd.f32 0.0, %v2872
      %v2874 = vpop.f32.mrb[0].mxu0
      %2875 = vmatprep.mubr.f32.mxu0 0.0
      %2876 = vmatmul.mubr.f32.gmra.mrb[0].mxu0 %v2706
      %v2877 = vpop.f32.mrb[0].mxu0
      %v2878 = vadd.f32 0.0, %v2877
      %v2879 = vpop.f32.mrb[0].mxu0
      %2880 = vmatprep.mubr.f32.mxu0 0.0
      %2881 = vmatmul.mubr.f32.gmra.mrb[0].mxu0 %v2709
      %v2882 = vpop.f32.mrb[0].mxu0
      %v2883 = vadd.f32 0.0, %v2882
      %v2884 = vpop.f32.mrb[0].mxu0
      %2885 = vmatprep.mubr.f32.mxu0 0.0
      %2886 = vmatmul.mubr.f32.gmra.mrb[0].mxu0 %v2712
      %v2887 = vpop.f32.mrb[0].mxu0
      %v2888 = vadd.f32 0.0, %v2887
      %v2889 = vpop.f32.mrb[0].mxu0
      %2890 = vmatprep.mubr.f32.mxu0 0.0
      %2891 = vmatmul.mubr.f32.gmra.mrb[0].mxu0 %v2715
      %v2892 = vpop.f32.mrb[0].mxu0
      %v2893 = vadd.f32 0.0, %v2892
      %v2894 = vpop.f32.mrb[0].mxu0
      %2895 = vmatprep.mubr.f32.mxu0 0.0
      %2896 = vmatmul.mubr.f32.gmra.mrb[0].mxu0 %v2718
      %v2897 = vpop.f32.mrb[0].mxu0
      %v2898 = vadd.f32 0.0, %v2897
      %v2899 = vpop.f32.mrb[0].mxu0
      %2900 = vmatprep.mubr.f32.mxu0 0.0
      %2901 = vmatmul.mubr.f32.gmra.mrb[0].mxu0 %v2721
      %v2902 = vpop.f32.mrb[0].mxu0
      %v2903 = vadd.f32 0.0, %v2902
      %v2904 = vpop.f32.mrb[0].mxu0
      %2905 = vmatprep.mubr.f32.mxu0 0.0
      %2906 = vmatmul.mubr.f32.gmra.mrb[0].mxu0 %v2724
      %v2907 = vpop.f32.mrb[0].mxu0
      %v2908 = vadd.f32 0.0, %v2907
      %v2909 = vpop.f32.mrb[0].mxu0
      %2910 = vmatprep.mubr.f32.mxu0 0.0
      %2911 = vmatmul.mubr.f32.gmra.mrb[0].mxu0 %v2727
      %v2912 = vpop.f32.mrb[0].mxu0
      %v2913 = vadd.f32 0.0, %v2912
      %v2914 = vpop.f32.mrb[0].mxu0
      %2915 = vmatprep.mubr.f32.mxu0 0.0
      %2916 = vmatmul.mubr.f32.gmra.mrb[0].mxu0 %v2730
      %v2917 = vpop.f32.mrb[0].mxu0
      %v2918 = vadd.f32 0.0, %v2917
      %v2919 = vpop.f32.mrb[0].mxu0
      %2920 = vmatprep.mubr.f32.mxu0 0.0
      %2921 = vmatmul.mubr.f32.gmra.mrb[0].mxu0 %v2733
      %v2922 = vpop.f32.mrb[0].mxu0
      %v2923 = vadd.f32 0.0, %v2922
      %v2924 = vpop.f32.mrb[0].mxu0
      %2925 = vmatprep.mubr.f32.mxu0 0.0
      %2926 = vmatmul.mubr.f32.gmra.mrb[0].mxu0 %v2736
      %v2927 = vpop.f32.mrb[0].mxu0
      %v2928 = vadd.f32 0.0, %v2927
      %v2929 = vpop.f32.mrb[0].mxu0
      %2930 = vmatprep.mubr.f32.mxu0 0.0
      %2931 = vmatmul.mubr.f32.gmra.mrb[0].mxu0 %v2739
      %v2932 = vpop.f32.mrb[0].mxu0
      %v2933 = vadd.f32 0.0, %v2932
      %v2934 = vpop.f32.mrb[0].mxu0
      %2935 = vmatprep.mubr.f32.mxu0 0.0
      %2936 = vmatmul.mubr.f32.gmra.mrb[0].mxu0 %v2742
      %v2937 = vpop.f32.mrb[0].mxu0
      %v2938 = vadd.f32 0.0, %v2937
      %v2939 = vpop.f32.mrb[0].mxu0
      %2940 = vmatprep.mubr.f32.mxu0 0.0
      %2941 = vmatmul.mubr.f32.gmra.mrb[0].mxu0 %v2745
      %v2942 = vpop.f32.mrb[0].mxu0
      %v2943 = vadd.f32 0.0, %v2942
      %v2944 = vpop.f32.mrb[0].mxu0
      %2945 = vmatprep.mubr.f32.mxu0 0.0
      %2946 = vmatmul.mubr.f32.gmra.mrb[0].mxu0 %v2748
      %v2947 = vpop.f32.mrb[0].mxu0
      %v2948 = vadd.f32 0.0, %v2947
      %v2949 = vpop.f32.mrb[0].mxu0
      %2950 = vmatprep.mubr.f32.mxu0 0.0
      %2951 = vmatmul.mubr.f32.gmra.mrb[0].mxu0 %v2751
      %v2952 = vpop.f32.mrb[0].mxu0
      %v2953 = vadd.f32 0.0, %v2952
      %v2954 = vpop.f32.mrb[0].mxu0
      %2955 = vmatprep.mubr.f32.mxu0 0.0
      %2956 = vmatmul.mubr.f32.gmra.mrb[0].mxu0 %v2754
      %v2957 = vpop.f32.mrb[0].mxu0
      %v2958 = vadd.f32 0.0, %v2957
      %v2959 = vpop.f32.mrb[0].mxu0
      %2960 = vmatprep.mubr.f32.mxu0 0.0
      %2961 = vmatmul.mubr.f32.gmra.mrb[0].mxu0 %v2757
      %v2962 = vpop.f32.mrb[0].mxu0
      %v2963 = vadd.f32 0.0, %v2962
      %v2964 = vpop.f32.mrb[0].mxu0
      %2965 = vmatprep.mubr.f32.mxu0 0.0
      %2966 = vmatmul.mubr.f32.gmra.mrb[0].mxu0 %v2760
      %v2967 = vpop.f32.mrb[0].mxu0
      %v2968 = vadd.f32 0.0, %v2967
      %v2969 = vpop.f32.mrb[0].mxu0
      %2970 = vmatprep.mubr.f32.mxu0 0.0
      %2971 = vmatmul.mubr.f32.gmra.mrb[0].mxu0 %v2763
      %v2972 = vpop.f32.mrb[0].mxu0
      %v2973 = vadd.f32 0.0, %v2972
      %v2974 = vpop.f32.mrb[0].mxu0
      %2975 = vmatprep.mubr.f32.mxu0 0.0
      %2976 = vmatmul.mubr.f32.gmra.mrb[0].mxu0 %v2766
      %v2977 = vpop.f32.mrb[0].mxu0
      %v2978 = vadd.f32 0.0, %v2977
      %v2979 = vpop.f32.mrb[0].mxu0
      %2980 = vmatprep.mubr.f32.mxu0 0.0
      %2981 = vmatmul.mubr.f32.gmra.mrb[0].mxu0 %v2769
      %v2982 = vpop.f32.mrb[0].mxu0
      %v2983 = vadd.f32 0.0, %v2982
      %v2984 = vpop.f32.mrb[0].mxu0
      %2985 = vmatprep.mubr.f32.mxu0 0.0
      %2986 = vmatmul.mubr.f32.gmra.mrb[0].mxu0 %v2772
      %v2987 = vpop.f32.mrb[0].mxu0
      %v2988 = vadd.f32 0.0, %v2987
      %v2989 = vpop.f32.mrb[0].mxu0
      %2990 = vmatprep.mubr.f32.mxu0 0.0
      %2991 = vmatmul.mubr.f32.gmra.mrb[0].mxu0 %v2775
      %v2992 = vpop.f32.mrb[0].mxu0
      %v2993 = vadd.f32 0.0, %v2992
      %v2994 = vpop.f32.mrb[0].mxu0
      %2995 = vmatprep.mubr.f32.mxu0 0.0
      %2996 = vmatmul.mubr.f32.gmra.mrb[0].mxu0 %v2778
      %v2997 = vpop.f32.mrb[0].mxu0
      %v2998 = vadd.f32 0.0, %v2997
      %v2999 = vpop.f32.mrb[0].mxu0
      %3000 = vmatprep.mubr.f32.mxu0 0.0
      %3001 = vmatmul.mubr.f32.gmra.mrb[0].mxu0 %v2781
      %v3002 = vpop.f32.mrb[0].mxu0
      %v3003 = vadd.f32 0.0, %v3002
      %v3004 = vpop.f32.mrb[0].mxu0
      %3005 = vmatprep.mubr.f32.mxu0 0.0
      %3006 = vmatmul.mubr.f32.gmra.mrb[0].mxu0 %v2784
      %v3007 = vpop.f32.mrb[0].mxu0
      %v3008 = vadd.f32 0.0, %v3007
      %v3009 = vpop.f32.mrb[0].mxu0
      %3010 = vdwg.mxu0
      %v3011 = vadd.f32 %v2620, %v2853
      %v3012 = vadd.f32 %v2621, %v2858
      %v3013 = vadd.f32 %v2622, %v2863
      %v3014 = vadd.f32 %v2623, %v2868
      %v3015 = vadd.f32 %v2624, %v2873
      %v3016 = vadd.f32 %v2625, %v2878
      %v3017 = vadd.f32 %v2626, %v2883
      %v3018 = vadd.f32 %v2627, %v2888
      %v3019 = vadd.f32 %v2628, %v2893
      %v3020 = vadd.f32 %v2629, %v2898
      %v3021 = vadd.f32 %v2630, %v2903
      %v3022 = vadd.f32 %v2631, %v2908
      %v3023 = vadd.f32 %v2632, %v2913
      %v3024 = vadd.f32 %v2633, %v2918
      %v3025 = vadd.f32 %v2634, %v2923
      %v3026 = vadd.f32 %v2635, %v2928
      %v3027 = vadd.f32 %v2636, %v2933
      %v3028 = vadd.f32 %v2637, %v2938
      %v3029 = vadd.f32 %v2638, %v2943
      %v3030 = vadd.f32 %v2639, %v2948
      %v3031 = vadd.f32 %v2640, %v2953
      %v3032 = vadd.f32 %v2641, %v2958
      %v3033 = vadd.f32 %v2642, %v2963
      %v3034 = vadd.f32 %v2643, %v2968
      %v3035 = vadd.f32 %v2644, %v2973
      %v3036 = vadd.f32 %v2645, %v2978
      %v3037 = vadd.f32 %v2646, %v2983
      %v3038 = vadd.f32 %v2647, %v2988
      %v3039 = vadd.f32 %v2648, %v2993
      %v3040 = vadd.f32 %v2649, %v2998
      %v3041 = vadd.f32 %v2650, %v3003
      %v3042 = vadd.f32 %v2651, %v3008
      %v3043 = vld [vmem:[%s2652 + $0x1] sm:$0xff]
      %v3044 = vld [vmem:[%s2652 + $0x11] sm:$0xff]
      %v3045 = vld [vmem:[%s2652 + $0x21] sm:$0xff]
      %v3046 = vld [vmem:[%s2652 + $0x31] sm:$0xff]
      %v3047 = vld [vmem:[%s2652 + $0x41] sm:$0xff]
      %v3048 = vld [vmem:[%s2652 + $0x51] sm:$0xff]
      %v3049 = vld [vmem:[%s2652 + $0x61] sm:$0xff]
      %v3050 = vld [vmem:[%s2652 + $0x71] sm:$0xff]
      %v3051 = vld [vmem:[%s2652 + $0xa1] sm:$0xff]
      %v3052 = vld [vmem:[%s2652 + $0xb1] sm:$0xff]
      %v3053 = vld [vmem:[%s2652 + $0xc1] sm:$0xff]
      %v3054 = vld [vmem:[%s2652 + $0xd1] sm:$0xff]
      %v3055 = vld [vmem:[%s2652 + $0xe1] sm:$0xff]
      %v3056 = vld [vmem:[%s2652 + $0xf1] sm:$0xff]
      %v3057 = vld [vmem:[%s2652 + $0x101] sm:$0xff]
      %v3058 = vld [vmem:[%s2652 + $0x111] sm:$0xff]
      %v3059 = vld [vmem:[%s2652 + $0x141] sm:$0xff]
      %v3060 = vld [vmem:[%s2652 + $0x151] sm:$0xff]
      %v3061 = vld [vmem:[%s2652 + $0x161] sm:$0xff]
      %v3062 = vld [vmem:[%s2652 + $0x171] sm:$0xff]
      %v3063 = vld [vmem:[%s2652 + $0x181] sm:$0xff]
      %v3064 = vld [vmem:[%s2652 + $0x191] sm:$0xff]
      %v3065 = vld [vmem:[%s2652 + $0x1a1] sm:$0xff]
      %v3066 = vld [vmem:[%s2652 + $0x1b1] sm:$0xff]
      %v3067 = vld [vmem:[%s2652 + $0x1e1] sm:$0xff]
      %v3068 = vld [vmem:[%s2652 + $0x1f1] sm:$0xff]
      %v3069 = vld [vmem:[%s2652 + $0x201] sm:$0xff]
      %v3070 = vld [vmem:[%s2652 + $0x211] sm:$0xff]
      %v3071 = vld [vmem:[%s2652 + $0x221] sm:$0xff]
      %v3072 = vld [vmem:[%s2652 + $0x231] sm:$0xff]
      %v3073 = vld [vmem:[%s2652 + $0x241] sm:$0xff]
      %v3074 = vld [vmem:[%s2652 + $0x251] sm:$0xff]
      %s3075 = scalar_lea.vmem %s1, 224
      %v3076 = vld [vmem:[%s3075] sm:$0xff]
      %v3077 = vld [vmem:[%s3075 + $0x8] sm:$0xff]
      %v3078 = vld [vmem:[%s3075 + $0x10] sm:$0xff]
      %v3079 = vld [vmem:[%s3075 + $0x18] sm:$0xff]
      %v3081 = vsel %vm230, %v3043, 0
      %v3084 = vsel %vm230, %v3044, 0
      %v3087 = vsel %vm230, %v3045, 0
      %v3090 = vsel %vm230, %v3046, 0
      %v3093 = vsel %vm230, %v3047, 0
      %v3096 = vsel %vm230, %v3048, 0
      %v3099 = vsel %vm230, %v3049, 0
      %v3102 = vsel %vm230, %v3050, 0
      %v3105 = vsel %vm230, %v3051, 0
      %v3108 = vsel %vm230, %v3052, 0
      %v3111 = vsel %vm230, %v3053, 0
      %v3114 = vsel %vm230, %v3054, 0
      %v3117 = vsel %vm230, %v3055, 0
      %v3120 = vsel %vm230, %v3056, 0
      %v3123 = vsel %vm230, %v3057, 0
      %v3126 = vsel %vm230, %v3058, 0
      %v3129 = vsel %vm230, %v3059, 0
      %v3132 = vsel %vm230, %v3060, 0
      %v3135 = vsel %vm230, %v3061, 0
      %v3138 = vsel %vm230, %v3062, 0
      %v3141 = vsel %vm230, %v3063, 0
      %v3144 = vsel %vm230, %v3064, 0
      %v3147 = vsel %vm230, %v3065, 0
      %v3150 = vsel %vm230, %v3066, 0
      %v3153 = vsel %vm230, %v3067, 0
      %v3156 = vsel %vm230, %v3068, 0
      %v3159 = vsel %vm230, %v3069, 0
      %v3162 = vsel %vm230, %v3070, 0
      %v3165 = vsel %vm230, %v3071, 0
      %v3168 = vsel %vm230, %v3072, 0
      %v3171 = vsel %vm230, %v3073, 0
      %v3174 = vsel %vm230, %v3074, 0
      %3176 = vmatprep.subr.mxu0 0.0
      %3177 = vmatpush1.msra.mxu0 %v3076
      %3178 = vmatprep.subr.mxu0 0.0
      %3179 = vmatpush1.msra.mxu0 %v3077
      %3180 = vmatprep.subr.mxu0 0.0
      %3181 = vmatpush1.msra.mxu0 %v3078
      %3182 = vmatprep.subr.mxu0 0.0
      %3183 = vmatpush1.msra.mxu0 %v3079
      %3184 = vmatprep.subr.mxu0 0.0
      %3185 = vmatpush1.msra.mxu0 0.0
      %3186 = vmatprep.subr.mxu0 0.0
      %3187 = vmatpush1.msra.mxu0 0.0
      %3188 = vmatprep.subr.mxu0 0.0
      %3189 = vmatpush1.msra.mxu0 0.0
      %3190 = vmatprep.subr.mxu0 0.0
      %3191 = vmatpush1.msra.mxu0 0.0
      %3192 = vmatprep.subr.mxu0 0.0
      %3193 = vmatpush1.msra.mxu0 0.0
      %3194 = vmatprep.subr.mxu0 0.0
      %3195 = vmatpush1.msra.mxu0 0.0
      %3196 = vmatprep.subr.mxu0 0.0
      %3197 = vmatpush1.msra.mxu0 0.0
      %3198 = vmatprep.subr.mxu0 0.0
      %3199 = vmatpush1.msra.mxu0 0.0
      %3200 = vmatprep.subr.mxu0 0.0
      %3201 = vmatpush1.msra.mxu0 0.0
      %3202 = vmatprep.subr.mxu0 0.0
      %3203 = vmatpush1.msra.mxu0 0.0
      %3204 = vmatprep.subr.mxu0 0.0
      %3205 = vmatpush1.msra.mxu0 0.0
      %3206 = vmatprep.subr.mxu0 0.0
      %3207 = vmatpush1.msra.mxu0 0.0
      %3208 = vmatprep.subr.mxu0 0.0
      %3209 = vmatpush1.msra.mxu0 0.0
      %3210 = vmatprep.subr.mxu0 0.0
      %3211 = vmatpush1.msra.mxu0 0.0
      %3212 = vmatprep.subr.mxu0 0.0
      %3213 = vmatpush1.msra.mxu0 0.0
      %3214 = vmatprep.subr.mxu0 0.0
      %3215 = vmatpush1.msra.mxu0 0.0
      %3216 = vmatprep.subr.mxu0 0.0
      %3217 = vmatpush1.msra.mxu0 0.0
      %3218 = vmatprep.subr.mxu0 0.0
      %3219 = vmatpush1.msra.mxu0 0.0
      %3220 = vmatprep.subr.mxu0 0.0
      %3221 = vmatpush1.msra.mxu0 0.0
      %3222 = vmatprep.subr.mxu0 0.0
      %3223 = vmatpush1.msra.mxu0 0.0
      %3224 = vmatprep.subr.mxu0 0.0
      %3225 = vmatpush1.msra.mxu0 0.0
      %3226 = vmatprep.subr.mxu0 0.0
      %3227 = vmatpush1.msra.mxu0 0.0
      %3228 = vmatprep.subr.mxu0 0.0
      %3229 = vmatpush1.msra.mxu0 0.0
      %3230 = vmatprep.subr.mxu0 0.0
      %3231 = vmatpush1.msra.mxu0 0.0
      %3232 = vmatprep.subr.mxu0 0.0
      %3233 = vmatpush1.msra.mxu0 0.0
      %3234 = vmatprep.subr.mxu0 0.0
      %3235 = vmatpush1.msra.mxu0 0.0
      %3236 = vmatprep.subr.mxu0 0.0
      %3237 = vmatpush1.msra.mxu0 0.0
      %3238 = vmatprep.subr.mxu0 0.0
      %3239 = vmatpush1.msra.mxu0 0.0
      %3240 = vmatprep.mubr.f32.mxu0 0.0
      %3241 = vmatmul.mubr.f32.gmra.mrb[0].mxu0 %v3081
      %v3242 = vpop.f32.mrb[0].mxu0
      %v3243 = vadd.f32 0.0, %v3242
      %v3244 = vpop.f32.mrb[0].mxu0
      %3245 = vmatprep.mubr.f32.mxu0 0.0
      %3246 = vmatmul.mubr.f32.gmra.mrb[0].mxu0 %v3084
      %v3247 = vpop.f32.mrb[0].mxu0
      %v3248 = vadd.f32 0.0, %v3247
      %v3249 = vpop.f32.mrb[0].mxu0
      %3250 = vmatprep.mubr.f32.mxu0 0.0
      %3251 = vmatmul.mubr.f32.gmra.mrb[0].mxu0 %v3087
      %v3252 = vpop.f32.mrb[0].mxu0
      %v3253 = vadd.f32 0.0, %v3252
      %v3254 = vpop.f32.mrb[0].mxu0
      %3255 = vmatprep.mubr.f32.mxu0 0.0
      %3256 = vmatmul.mubr.f32.gmra.mrb[0].mxu0 %v3090
      %v3257 = vpop.f32.mrb[0].mxu0
      %v3258 = vadd.f32 0.0, %v3257
      %v3259 = vpop.f32.mrb[0].mxu0
      %3260 = vmatprep.mubr.f32.mxu0 0.0
      %3261 = vmatmul.mubr.f32.gmra.mrb[0].mxu0 %v3093
      %v3262 = vpop.f32.mrb[0].mxu0
      %v3263 = vadd.f32 0.0, %v3262
      %v3264 = vpop.f32.mrb[0].mxu0
      %3265 = vmatprep.mubr.f32.mxu0 0.0
      %3266 = vmatmul.mubr.f32.gmra.mrb[0].mxu0 %v3096
      %v3267 = vpop.f32.mrb[0].mxu0
      %v3268 = vadd.f32 0.0, %v3267
      %v3269 = vpop.f32.mrb[0].mxu0
      %3270 = vmatprep.mubr.f32.mxu0 0.0
      %3271 = vmatmul.mubr.f32.gmra.mrb[0].mxu0 %v3099
      %v3272 = vpop.f32.mrb[0].mxu0
      %v3273 = vadd.f32 0.0, %v3272
      %v3274 = vpop.f32.mrb[0].mxu0
      %3275 = vmatprep.mubr.f32.mxu0 0.0
      %3276 = vmatmul.mubr.f32.gmra.mrb[0].mxu0 %v3102
      %v3277 = vpop.f32.mrb[0].mxu0
      %v3278 = vadd.f32 0.0, %v3277
      %v3279 = vpop.f32.mrb[0].mxu0
      %3280 = vmatprep.mubr.f32.mxu0 0.0
      %3281 = vmatmul.mubr.f32.gmra.mrb[0].mxu0 %v3105
      %v3282 = vpop.f32.mrb[0].mxu0
      %v3283 = vadd.f32 0.0, %v3282
      %v3284 = vpop.f32.mrb[0].mxu0
      %3285 = vmatprep.mubr.f32.mxu0 0.0
      %3286 = vmatmul.mubr.f32.gmra.mrb[0].mxu0 %v3108
      %v3287 = vpop.f32.mrb[0].mxu0
      %v3288 = vadd.f32 0.0, %v3287
      %v3289 = vpop.f32.mrb[0].mxu0
      %3290 = vmatprep.mubr.f32.mxu0 0.0
      %3291 = vmatmul.mubr.f32.gmra.mrb[0].mxu0 %v3111
      %v3292 = vpop.f32.mrb[0].mxu0
      %v3293 = vadd.f32 0.0, %v3292
      %v3294 = vpop.f32.mrb[0].mxu0
      %3295 = vmatprep.mubr.f32.mxu0 0.0
      %3296 = vmatmul.mubr.f32.gmra.mrb[0].mxu0 %v3114
      %v3297 = vpop.f32.mrb[0].mxu0
      %v3298 = vadd.f32 0.0, %v3297
      %v3299 = vpop.f32.mrb[0].mxu0
      %3300 = vmatprep.mubr.f32.mxu0 0.0
      %3301 = vmatmul.mubr.f32.gmra.mrb[0].mxu0 %v3117
      %v3302 = vpop.f32.mrb[0].mxu0
      %v3303 = vadd.f32 0.0, %v3302
      %v3304 = vpop.f32.mrb[0].mxu0
      %3305 = vmatprep.mubr.f32.mxu0 0.0
      %3306 = vmatmul.mubr.f32.gmra.mrb[0].mxu0 %v3120
      %v3307 = vpop.f32.mrb[0].mxu0
      %v3308 = vadd.f32 0.0, %v3307
      %v3309 = vpop.f32.mrb[0].mxu0
      %3310 = vmatprep.mubr.f32.mxu0 0.0
      %3311 = vmatmul.mubr.f32.gmra.mrb[0].mxu0 %v3123
      %v3312 = vpop.f32.mrb[0].mxu0
      %v3313 = vadd.f32 0.0, %v3312
      %v3314 = vpop.f32.mrb[0].mxu0
      %3315 = vmatprep.mubr.f32.mxu0 0.0
      %3316 = vmatmul.mubr.f32.gmra.mrb[0].mxu0 %v3126
      %v3317 = vpop.f32.mrb[0].mxu0
      %v3318 = vadd.f32 0.0, %v3317
      %v3319 = vpop.f32.mrb[0].mxu0
      %3320 = vmatprep.mubr.f32.mxu0 0.0
      %3321 = vmatmul.mubr.f32.gmra.mrb[0].mxu0 %v3129
      %v3322 = vpop.f32.mrb[0].mxu0
      %v3323 = vadd.f32 0.0, %v3322
      %v3324 = vpop.f32.mrb[0].mxu0
      %3325 = vmatprep.mubr.f32.mxu0 0.0
      %3326 = vmatmul.mubr.f32.gmra.mrb[0].mxu0 %v3132
      %v3327 = vpop.f32.mrb[0].mxu0
      %v3328 = vadd.f32 0.0, %v3327
      %v3329 = vpop.f32.mrb[0].mxu0
      %3330 = vmatprep.mubr.f32.mxu0 0.0
      %3331 = vmatmul.mubr.f32.gmra.mrb[0].mxu0 %v3135
      %v3332 = vpop.f32.mrb[0].mxu0
      %v3333 = vadd.f32 0.0, %v3332
      %v3334 = vpop.f32.mrb[0].mxu0
      %3335 = vmatprep.mubr.f32.mxu0 0.0
      %3336 = vmatmul.mubr.f32.gmra.mrb[0].mxu0 %v3138
      %v3337 = vpop.f32.mrb[0].mxu0
      %v3338 = vadd.f32 0.0, %v3337
      %v3339 = vpop.f32.mrb[0].mxu0
      %3340 = vmatprep.mubr.f32.mxu0 0.0
      %3341 = vmatmul.mubr.f32.gmra.mrb[0].mxu0 %v3141
      %v3342 = vpop.f32.mrb[0].mxu0
      %v3343 = vadd.f32 0.0, %v3342
      %v3344 = vpop.f32.mrb[0].mxu0
      %3345 = vmatprep.mubr.f32.mxu0 0.0
      %3346 = vmatmul.mubr.f32.gmra.mrb[0].mxu0 %v3144
      %v3347 = vpop.f32.mrb[0].mxu0
      %v3348 = vadd.f32 0.0, %v3347
      %v3349 = vpop.f32.mrb[0].mxu0
      %3350 = vmatprep.mubr.f32.mxu0 0.0
      %3351 = vmatmul.mubr.f32.gmra.mrb[0].mxu0 %v3147
      %v3352 = vpop.f32.mrb[0].mxu0
      %v3353 = vadd.f32 0.0, %v3352
      %v3354 = vpop.f32.mrb[0].mxu0
      %3355 = vmatprep.mubr.f32.mxu0 0.0
      %3356 = vmatmul.mubr.f32.gmra.mrb[0].mxu0 %v3150
      %v3357 = vpop.f32.mrb[0].mxu0
      %v3358 = vadd.f32 0.0, %v3357
      %v3359 = vpop.f32.mrb[0].mxu0
      %3360 = vmatprep.mubr.f32.mxu0 0.0
      %3361 = vmatmul.mubr.f32.gmra.mrb[0].mxu0 %v3153
      %v3362 = vpop.f32.mrb[0].mxu0
      %v3363 = vadd.f32 0.0, %v3362
      %v3364 = vpop.f32.mrb[0].mxu0
      %3365 = vmatprep.mubr.f32.mxu0 0.0
      %3366 = vmatmul.mubr.f32.gmra.mrb[0].mxu0 %v3156
      %v3367 = vpop.f32.mrb[0].mxu0
      %v3368 = vadd.f32 0.0, %v3367
      %v3369 = vpop.f32.mrb[0].mxu0
      %3370 = vmatprep.mubr.f32.mxu0 0.0
      %3371 = vmatmul.mubr.f32.gmra.mrb[0].mxu0 %v3159
      %v3372 = vpop.f32.mrb[0].mxu0
      %v3373 = vadd.f32 0.0, %v3372
      %v3374 = vpop.f32.mrb[0].mxu0
      %3375 = vmatprep.mubr.f32.mxu0 0.0
      %3376 = vmatmul.mubr.f32.gmra.mrb[0].mxu0 %v3162
      %v3377 = vpop.f32.mrb[0].mxu0
      %v3378 = vadd.f32 0.0, %v3377
      %v3379 = vpop.f32.mrb[0].mxu0
      %3380 = vmatprep.mubr.f32.mxu0 0.0
      %3381 = vmatmul.mubr.f32.gmra.mrb[0].mxu0 %v3165
      %v3382 = vpop.f32.mrb[0].mxu0
      %v3383 = vadd.f32 0.0, %v3382
      %v3384 = vpop.f32.mrb[0].mxu0
      %3385 = vmatprep.mubr.f32.mxu0 0.0
      %3386 = vmatmul.mubr.f32.gmra.mrb[0].mxu0 %v3168
      %v3387 = vpop.f32.mrb[0].mxu0
      %v3388 = vadd.f32 0.0, %v3387
      %v3389 = vpop.f32.mrb[0].mxu0
      %3390 = vmatprep.mubr.f32.mxu0 0.0
      %3391 = vmatmul.mubr.f32.gmra.mrb[0].mxu0 %v3171
      %v3392 = vpop.f32.mrb[0].mxu0
      %v3393 = vadd.f32 0.0, %v3392
      %v3394 = vpop.f32.mrb[0].mxu0
      %3395 = vmatprep.mubr.f32.mxu0 0.0
      %3396 = vmatmul.mubr.f32.gmra.mrb[0].mxu0 %v3174
      %v3397 = vpop.f32.mrb[0].mxu0
      %v3398 = vadd.f32 0.0, %v3397
      %v3399 = vpop.f32.mrb[0].mxu0
      %3400 = vdwg.mxu0
      %v3401 = vadd.f32 %v3011, %v3243
      %v3402 = vadd.f32 %v3012, %v3248
      %v3403 = vadd.f32 %v3013, %v3253
      %v3404 = vadd.f32 %v3014, %v3258
      %v3405 = vadd.f32 %v3015, %v3263
      %v3406 = vadd.f32 %v3016, %v3268
      %v3407 = vadd.f32 %v3017, %v3273
      %v3408 = vadd.f32 %v3018, %v3278
      %v3409 = vadd.f32 %v3019, %v3283
      %v3410 = vadd.f32 %v3020, %v3288
      %v3411 = vadd.f32 %v3021, %v3293
      %v3412 = vadd.f32 %v3022, %v3298
      %v3413 = vadd.f32 %v3023, %v3303
      %v3414 = vadd.f32 %v3024, %v3308
      %v3415 = vadd.f32 %v3025, %v3313
      %v3416 = vadd.f32 %v3026, %v3318
      %v3417 = vadd.f32 %v3027, %v3323
      %v3418 = vadd.f32 %v3028, %v3328
      %v3419 = vadd.f32 %v3029, %v3333
      %v3420 = vadd.f32 %v3030, %v3338
      %v3421 = vadd.f32 %v3031, %v3343
      %v3422 = vadd.f32 %v3032, %v3348
      %v3423 = vadd.f32 %v3033, %v3353
      %v3424 = vadd.f32 %v3034, %v3358
      %v3425 = vadd.f32 %v3035, %v3363
      %v3426 = vadd.f32 %v3036, %v3368
      %v3427 = vadd.f32 %v3037, %v3373
      %v3428 = vadd.f32 %v3038, %v3378
      %v3429 = vadd.f32 %v3039, %v3383
      %v3430 = vadd.f32 %v3040, %v3388
      %v3431 = vadd.f32 %v3041, %v3393
      %v3432 = vadd.f32 %v3042, %v3398
      %v3433 = vld [vmem:[%s2652 + $0x2] sm:$0xff]
      %v3434 = vld [vmem:[%s2652 + $0x12] sm:$0xff]
      %v3435 = vld [vmem:[%s2652 + $0x22] sm:$0xff]
      %v3436 = vld [vmem:[%s2652 + $0x32] sm:$0xff]
      %v3437 = vld [vmem:[%s2652 + $0x42] sm:$0xff]
      %v3438 = vld [vmem:[%s2652 + $0x52] sm:$0xff]
      %v3439 = vld [vmem:[%s2652 + $0x62] sm:$0xff]
      %v3440 = vld [vmem:[%s2652 + $0x72] sm:$0xff]
      %v3441 = vld [vmem:[%s2652 + $0xa2] sm:$0xff]
      %v3442 = vld [vmem:[%s2652 + $0xb2] sm:$0xff]
      %v3443 = vld [vmem:[%s2652 + $0xc2] sm:$0xff]
      %v3444 = vld [vmem:[%s2652 + $0xd2] sm:$0xff]
      %v3445 = vld [vmem:[%s2652 + $0xe2] sm:$0xff]
      %v3446 = vld [vmem:[%s2652 + $0xf2] sm:$0xff]
      %v3447 = vld [vmem:[%s2652 + $0x102] sm:$0xff]
      %v3448 = vld [vmem:[%s2652 + $0x112] sm:$0xff]
      %v3449 = vld [vmem:[%s2652 + $0x142] sm:$0xff]
      %v3450 = vld [vmem:[%s2652 + $0x152] sm:$0xff]
      %v3451 = vld [vmem:[%s2652 + $0x162] sm:$0xff]
      %v3452 = vld [vmem:[%s2652 + $0x172] sm:$0xff]
      %v3453 = vld [vmem:[%s2652 + $0x182] sm:$0xff]
      %v3454 = vld [vmem:[%s2652 + $0x192] sm:$0xff]
      %v3455 = vld [vmem:[%s2652 + $0x1a2] sm:$0xff]
      %v3456 = vld [vmem:[%s2652 + $0x1b2] sm:$0xff]
      %v3457 = vld [vmem:[%s2652 + $0x1e2] sm:$0xff]
      %v3458 = vld [vmem:[%s2652 + $0x1f2] sm:$0xff]
      %v3459 = vld [vmem:[%s2652 + $0x202] sm:$0xff]
      %v3460 = vld [vmem:[%s2652 + $0x212] sm:$0xff]
      %v3461 = vld [vmem:[%s2652 + $0x222] sm:$0xff]
      %v3462 = vld [vmem:[%s2652 + $0x232] sm:$0xff]
      %v3463 = vld [vmem:[%s2652 + $0x242] sm:$0xff]
      %v3464 = vld [vmem:[%s2652 + $0x252] sm:$0xff]
      %s3465 = scalar_lea.vmem %s1, 256
      %v3466 = vld [vmem:[%s3465] sm:$0xff]
      %v3467 = vld [vmem:[%s3465 + $0x8] sm:$0xff]
      %v3468 = vld [vmem:[%s3465 + $0x10] sm:$0xff]
      %v3469 = vld [vmem:[%s3465 + $0x18] sm:$0xff]
      %v3471 = vsel %vm230, %v3433, 0
      %v3474 = vsel %vm230, %v3434, 0
      %v3477 = vsel %vm230, %v3435, 0
      %v3480 = vsel %vm230, %v3436, 0
      %v3483 = vsel %vm230, %v3437, 0
      %v3486 = vsel %vm230, %v3438, 0
      %v3489 = vsel %vm230, %v3439, 0
      %v3492 = vsel %vm230, %v3440, 0
      %v3495 = vsel %vm230, %v3441, 0
      %v3498 = vsel %vm230, %v3442, 0
      %v3501 = vsel %vm230, %v3443, 0
      %v3504 = vsel %vm230, %v3444, 0
      %v3507 = vsel %vm230, %v3445, 0
      %v3510 = vsel %vm230, %v3446, 0
      %v3513 = vsel %vm230, %v3447, 0
      %v3516 = vsel %vm230, %v3448, 0
      %v3519 = vsel %vm230, %v3449, 0
      %v3522 = vsel %vm230, %v3450, 0
      %v3525 = vsel %vm230, %v3451, 0
      %v3528 = vsel %vm230, %v3452, 0
      %v3531 = vsel %vm230, %v3453, 0
      %v3534 = vsel %vm230, %v3454, 0
      %v3537 = vsel %vm230, %v3455, 0
      %v3540 = vsel %vm230, %v3456, 0
      %v3543 = vsel %vm230, %v3457, 0
      %v3546 = vsel %vm230, %v3458, 0
      %v3549 = vsel %vm230, %v3459, 0
      %v3552 = vsel %vm230, %v3460, 0
      %v3555 = vsel %vm230, %v3461, 0
      %v3558 = vsel %vm230, %v3462, 0
      %v3561 = vsel %vm230, %v3463, 0
      %v3564 = vsel %vm230, %v3464, 0
      %3566 = vmatprep.subr.mxu0 0.0
      %3567 = vmatpush1.msra.mxu0 %v3466
      %3568 = vmatprep.subr.mxu0 0.0
      %3569 = vmatpush1.msra.mxu0 %v3467
      %3570 = vmatprep.subr.mxu0 0.0
      %3571 = vmatpush1.msra.mxu0 %v3468
      %3572 = vmatprep.subr.mxu0 0.0
      %3573 = vmatpush1.msra.mxu0 %v3469
      %3574 = vmatprep.subr.mxu0 0.0
      %3575 = vmatpush1.msra.mxu0 0.0
      %3576 = vmatprep.subr.mxu0 0.0
      %3577 = vmatpush1.msra.mxu0 0.0
      %3578 = vmatprep.subr.mxu0 0.0
      %3579 = vmatpush1.msra.mxu0 0.0
      %3580 = vmatprep.subr.mxu0 0.0
      %3581 = vmatpush1.msra.mxu0 0.0
      %3582 = vmatprep.subr.mxu0 0.0
      %3583 = vmatpush1.msra.mxu0 0.0
      %3584 = vmatprep.subr.mxu0 0.0
      %3585 = vmatpush1.msra.mxu0 0.0
      %3586 = vmatprep.subr.mxu0 0.0
      %3587 = vmatpush1.msra.mxu0 0.0
      %3588 = vmatprep.subr.mxu0 0.0
      %3589 = vmatpush1.msra.mxu0 0.0
      %3590 = vmatprep.subr.mxu0 0.0
      %3591 = vmatpush1.msra.mxu0 0.0
      %3592 = vmatprep.subr.mxu0 0.0
      %3593 = vmatpush1.msra.mxu0 0.0
      %3594 = vmatprep.subr.mxu0 0.0
      %3595 = vmatpush1.msra.mxu0 0.0
      %3596 = vmatprep.subr.mxu0 0.0
      %3597 = vmatpush1.msra.mxu0 0.0
      %3598 = vmatprep.subr.mxu0 0.0
      %3599 = vmatpush1.msra.mxu0 0.0
      %3600 = vmatprep.subr.mxu0 0.0
      %3601 = vmatpush1.msra.mxu0 0.0
      %3602 = vmatprep.subr.mxu0 0.0
      %3603 = vmatpush1.msra.mxu0 0.0
      %3604 = vmatprep.subr.mxu0 0.0
      %3605 = vmatpush1.msra.mxu0 0.0
      %3606 = vmatprep.subr.mxu0 0.0
      %3607 = vmatpush1.msra.mxu0 0.0
      %3608 = vmatprep.subr.mxu0 0.0
      %3609 = vmatpush1.msra.mxu0 0.0
      %3610 = vmatprep.subr.mxu0 0.0
      %3611 = vmatpush1.msra.mxu0 0.0
      %3612 = vmatprep.subr.mxu0 0.0
      %3613 = vmatpush1.msra.mxu0 0.0
      %3614 = vmatprep.subr.mxu0 0.0
      %3615 = vmatpush1.msra.mxu0 0.0
      %3616 = vmatprep.subr.mxu0 0.0
      %3617 = vmatpush1.msra.mxu0 0.0
      %3618 = vmatprep.subr.mxu0 0.0
      %3619 = vmatpush1.msra.mxu0 0.0
      %3620 = vmatprep.subr.mxu0 0.0
      %3621 = vmatpush1.msra.mxu0 0.0
      %3622 = vmatprep.subr.mxu0 0.0
      %3623 = vmatpush1.msra.mxu0 0.0
      %3624 = vmatprep.subr.mxu0 0.0
      %3625 = vmatpush1.msra.mxu0 0.0
      %3626 = vmatprep.subr.mxu0 0.0
      %3627 = vmatpush1.msra.mxu0 0.0
      %3628 = vmatprep.subr.mxu0 0.0
      %3629 = vmatpush1.msra.mxu0 0.0
      %3630 = vmatprep.mubr.f32.mxu0 0.0
      %3631 = vmatmul.mubr.f32.gmra.mrb[0].mxu0 %v3471
      %v3632 = vpop.f32.mrb[0].mxu0
      %v3633 = vadd.f32 0.0, %v3632
      %v3634 = vpop.f32.mrb[0].mxu0
      %3635 = vmatprep.mubr.f32.mxu0 0.0
      %3636 = vmatmul.mubr.f32.gmra.mrb[0].mxu0 %v3474
      %v3637 = vpop.f32.mrb[0].mxu0
      %v3638 = vadd.f32 0.0, %v3637
      %v3639 = vpop.f32.mrb[0].mxu0
      %3640 = vmatprep.mubr.f32.mxu0 0.0
      %3641 = vmatmul.mubr.f32.gmra.mrb[0].mxu0 %v3477
      %v3642 = vpop.f32.mrb[0].mxu0
      %v3643 = vadd.f32 0.0, %v3642
      %v3644 = vpop.f32.mrb[0].mxu0
      %3645 = vmatprep.mubr.f32.mxu0 0.0
      %3646 = vmatmul.mubr.f32.gmra.mrb[0].mxu0 %v3480
      %v3647 = vpop.f32.mrb[0].mxu0
      %v3648 = vadd.f32 0.0, %v3647
      %v3649 = vpop.f32.mrb[0].mxu0
      %3650 = vmatprep.mubr.f32.mxu0 0.0
      %3651 = vmatmul.mubr.f32.gmra.mrb[0].mxu0 %v3483
      %v3652 = vpop.f32.mrb[0].mxu0
      %v3653 = vadd.f32 0.0, %v3652
      %v3654 = vpop.f32.mrb[0].mxu0
      %3655 = vmatprep.mubr.f32.mxu0 0.0
      %3656 = vmatmul.mubr.f32.gmra.mrb[0].mxu0 %v3486
      %v3657 = vpop.f32.mrb[0].mxu0
      %v3658 = vadd.f32 0.0, %v3657
      %v3659 = vpop.f32.mrb[0].mxu0
      %3660 = vmatprep.mubr.f32.mxu0 0.0
      %3661 = vmatmul.mubr.f32.gmra.mrb[0].mxu0 %v3489
      %v3662 = vpop.f32.mrb[0].mxu0
      %v3663 = vadd.f32 0.0, %v3662
      %v3664 = vpop.f32.mrb[0].mxu0
      %3665 = vmatprep.mubr.f32.mxu0 0.0
      %3666 = vmatmul.mubr.f32.gmra.mrb[0].mxu0 %v3492
      %v3667 = vpop.f32.mrb[0].mxu0
      %v3668 = vadd.f32 0.0, %v3667
      %v3669 = vpop.f32.mrb[0].mxu0
      %3670 = vmatprep.mubr.f32.mxu0 0.0
      %3671 = vmatmul.mubr.f32.gmra.mrb[0].mxu0 %v3495
      %v3672 = vpop.f32.mrb[0].mxu0
      %v3673 = vadd.f32 0.0, %v3672
      %v3674 = vpop.f32.mrb[0].mxu0
      %3675 = vmatprep.mubr.f32.mxu0 0.0
      %3676 = vmatmul.mubr.f32.gmra.mrb[0].mxu0 %v3498
      %v3677 = vpop.f32.mrb[0].mxu0
      %v3678 = vadd.f32 0.0, %v3677
      %v3679 = vpop.f32.mrb[0].mxu0
      %3680 = vmatprep.mubr.f32.mxu0 0.0
      %3681 = vmatmul.mubr.f32.gmra.mrb[0].mxu0 %v3501
      %v3682 = vpop.f32.mrb[0].mxu0
      %v3683 = vadd.f32 0.0, %v3682
      %v3684 = vpop.f32.mrb[0].mxu0
      %3685 = vmatprep.mubr.f32.mxu0 0.0
      %3686 = vmatmul.mubr.f32.gmra.mrb[0].mxu0 %v3504
      %v3687 = vpop.f32.mrb[0].mxu0
      %v3688 = vadd.f32 0.0, %v3687
      %v3689 = vpop.f32.mrb[0].mxu0
      %3690 = vmatprep.mubr.f32.mxu0 0.0
      %3691 = vmatmul.mubr.f32.gmra.mrb[0].mxu0 %v3507
      %v3692 = vpop.f32.mrb[0].mxu0
      %v3693 = vadd.f32 0.0, %v3692
      %v3694 = vpop.f32.mrb[0].mxu0
      %3695 = vmatprep.mubr.f32.mxu0 0.0
      %3696 = vmatmul.mubr.f32.gmra.mrb[0].mxu0 %v3510
      %v3697 = vpop.f32.mrb[0].mxu0
      %v3698 = vadd.f32 0.0, %v3697
      %v3699 = vpop.f32.mrb[0].mxu0
      %3700 = vmatprep.mubr.f32.mxu0 0.0
      %3701 = vmatmul.mubr.f32.gmra.mrb[0].mxu0 %v3513
      %v3702 = vpop.f32.mrb[0].mxu0
      %v3703 = vadd.f32 0.0, %v3702
      %v3704 = vpop.f32.mrb[0].mxu0
      %3705 = vmatprep.mubr.f32.mxu0 0.0
      %3706 = vmatmul.mubr.f32.gmra.mrb[0].mxu0 %v3516
      %v3707 = vpop.f32.mrb[0].mxu0
      %v3708 = vadd.f32 0.0, %v3707
      %v3709 = vpop.f32.mrb[0].mxu0
      %3710 = vmatprep.mubr.f32.mxu0 0.0
      %3711 = vmatmul.mubr.f32.gmra.mrb[0].mxu0 %v3519
      %v3712 = vpop.f32.mrb[0].mxu0
      %v3713 = vadd.f32 0.0, %v3712
      %v3714 = vpop.f32.mrb[0].mxu0
      %3715 = vmatprep.mubr.f32.mxu0 0.0
      %3716 = vmatmul.mubr.f32.gmra.mrb[0].mxu0 %v3522
      %v3717 = vpop.f32.mrb[0].mxu0
      %v3718 = vadd.f32 0.0, %v3717
      %v3719 = vpop.f32.mrb[0].mxu0
      %3720 = vmatprep.mubr.f32.mxu0 0.0
      %3721 = vmatmul.mubr.f32.gmra.mrb[0].mxu0 %v3525
      %v3722 = vpop.f32.mrb[0].mxu0
      %v3723 = vadd.f32 0.0, %v3722
      %v3724 = vpop.f32.mrb[0].mxu0
      %3725 = vmatprep.mubr.f32.mxu0 0.0
      %3726 = vmatmul.mubr.f32.gmra.mrb[0].mxu0 %v3528
      %v3727 = vpop.f32.mrb[0].mxu0
      %v3728 = vadd.f32 0.0, %v3727
      %v3729 = vpop.f32.mrb[0].mxu0
      %3730 = vmatprep.mubr.f32.mxu0 0.0
      %3731 = vmatmul.mubr.f32.gmra.mrb[0].mxu0 %v3531
      %v3732 = vpop.f32.mrb[0].mxu0
      %v3733 = vadd.f32 0.0, %v3732
      %v3734 = vpop.f32.mrb[0].mxu0
      %3735 = vmatprep.mubr.f32.mxu0 0.0
      %3736 = vmatmul.mubr.f32.gmra.mrb[0].mxu0 %v3534
      %v3737 = vpop.f32.mrb[0].mxu0
      %v3738 = vadd.f32 0.0, %v3737
      %v3739 = vpop.f32.mrb[0].mxu0
      %3740 = vmatprep.mubr.f32.mxu0 0.0
      %3741 = vmatmul.mubr.f32.gmra.mrb[0].mxu0 %v3537
      %v3742 = vpop.f32.mrb[0].mxu0
      %v3743 = vadd.f32 0.0, %v3742
      %v3744 = vpop.f32.mrb[0].mxu0
      %3745 = vmatprep.mubr.f32.mxu0 0.0
      %3746 = vmatmul.mubr.f32.gmra.mrb[0].mxu0 %v3540
      %v3747 = vpop.f32.mrb[0].mxu0
      %v3748 = vadd.f32 0.0, %v3747
      %v3749 = vpop.f32.mrb[0].mxu0
      %3750 = vmatprep.mubr.f32.mxu0 0.0
      %3751 = vmatmul.mubr.f32.gmra.mrb[0].mxu0 %v3543
      %v3752 = vpop.f32.mrb[0].mxu0
      %v3753 = vadd.f32 0.0, %v3752
      %v3754 = vpop.f32.mrb[0].mxu0
      %3755 = vmatprep.mubr.f32.mxu0 0.0
      %3756 = vmatmul.mubr.f32.gmra.mrb[0].mxu0 %v3546
      %v3757 = vpop.f32.mrb[0].mxu0
      %v3758 = vadd.f32 0.0, %v3757
      %v3759 = vpop.f32.mrb[0].mxu0
      %3760 = vmatprep.mubr.f32.mxu0 0.0
      %3761 = vmatmul.mubr.f32.gmra.mrb[0].mxu0 %v3549
      %v3762 = vpop.f32.mrb[0].mxu0
      %v3763 = vadd.f32 0.0, %v3762
      %v3764 = vpop.f32.mrb[0].mxu0
      %3765 = vmatprep.mubr.f32.mxu0 0.0
      %3766 = vmatmul.mubr.f32.gmra.mrb[0].mxu0 %v3552
      %v3767 = vpop.f32.mrb[0].mxu0
      %v3768 = vadd.f32 0.0, %v3767
      %v3769 = vpop.f32.mrb[0].mxu0
      %3770 = vmatprep.mubr.f32.mxu0 0.0
      %3771 = vmatmul.mubr.f32.gmra.mrb[0].mxu0 %v3555
      %v3772 = vpop.f32.mrb[0].mxu0
      %v3773 = vadd.f32 0.0, %v3772
      %v3774 = vpop.f32.mrb[0].mxu0
      %3775 = vmatprep.mubr.f32.mxu0 0.0
      %3776 = vmatmul.mubr.f32.gmra.mrb[0].mxu0 %v3558
      %v3777 = vpop.f32.mrb[0].mxu0
      %v3778 = vadd.f32 0.0, %v3777
      %v3779 = vpop.f32.mrb[0].mxu0
      %3780 = vmatprep.mubr.f32.mxu0 0.0
      %3781 = vmatmul.mubr.f32.gmra.mrb[0].mxu0 %v3561
      %v3782 = vpop.f32.mrb[0].mxu0
      %v3783 = vadd.f32 0.0, %v3782
      %v3784 = vpop.f32.mrb[0].mxu0
      %3785 = vmatprep.mubr.f32.mxu0 0.0
      %3786 = vmatmul.mubr.f32.gmra.mrb[0].mxu0 %v3564
      %v3787 = vpop.f32.mrb[0].mxu0
      %v3788 = vadd.f32 0.0, %v3787
      %v3789 = vpop.f32.mrb[0].mxu0
      %3790 = vdwg.mxu0
      %v3791 = vadd.f32 %v3401, %v3633
      %v3792 = vadd.f32 %v3402, %v3638
      %v3793 = vadd.f32 %v3403, %v3643
      %v3794 = vadd.f32 %v3404, %v3648
      %v3795 = vadd.f32 %v3405, %v3653
      %v3796 = vadd.f32 %v3406, %v3658
      %v3797 = vadd.f32 %v3407, %v3663
      %v3798 = vadd.f32 %v3408, %v3668
      %v3799 = vadd.f32 %v3409, %v3673
      %v3800 = vadd.f32 %v3410, %v3678
      %v3801 = vadd.f32 %v3411, %v3683
      %v3802 = vadd.f32 %v3412, %v3688
      %v3803 = vadd.f32 %v3413, %v3693
      %v3804 = vadd.f32 %v3414, %v3698
      %v3805 = vadd.f32 %v3415, %v3703
      %v3806 = vadd.f32 %v3416, %v3708
      %v3807 = vadd.f32 %v3417, %v3713
      %v3808 = vadd.f32 %v3418, %v3718
      %v3809 = vadd.f32 %v3419, %v3723
      %v3810 = vadd.f32 %v3420, %v3728
      %v3811 = vadd.f32 %v3421, %v3733
      %v3812 = vadd.f32 %v3422, %v3738
      %v3813 = vadd.f32 %v3423, %v3743
      %v3814 = vadd.f32 %v3424, %v3748
      %v3815 = vadd.f32 %v3425, %v3753
      %v3816 = vadd.f32 %v3426, %v3758
      %v3817 = vadd.f32 %v3427, %v3763
      %v3818 = vadd.f32 %v3428, %v3768
      %v3819 = vadd.f32 %v3429, %v3773
      %v3820 = vadd.f32 %v3430, %v3778
      %v3821 = vadd.f32 %v3431, %v3783
      %v3822 = vadd.f32 %v3432, %v3788
      %v3823 = vld [vmem:[%s2] sm:$0x1]
      %v3825 = vlaneseq
      %v3826 = vshrl.u32 %v3825, 7
      %v3827 = vsub.s32 0, %v3826
      %v3828 = vrot.slane %v3823, %v3827
      %v3830 = vadd.f32 %v3791, %v3828
      %v3831 = vadd.f32 %v3792, %v3828
      %v3832 = vadd.f32 %v3793, %v3828
      %v3833 = vadd.f32 %v3794, %v3828
      %v3834 = vadd.f32 %v3795, %v3828
      %v3835 = vadd.f32 %v3796, %v3828
      %v3836 = vadd.f32 %v3797, %v3828
      %v3837 = vadd.f32 %v3798, %v3828
      %v3838 = vadd.f32 %v3799, %v3828
      %v3839 = vadd.f32 %v3800, %v3828
      %v3840 = vadd.f32 %v3801, %v3828
      %v3841 = vadd.f32 %v3802, %v3828
      %v3842 = vadd.f32 %v3803, %v3828
      %v3843 = vadd.f32 %v3804, %v3828
      %v3844 = vadd.f32 %v3805, %v3828
      %v3845 = vadd.f32 %v3806, %v3828
      %v3846 = vadd.f32 %v3807, %v3828
      %v3847 = vadd.f32 %v3808, %v3828
      %v3848 = vadd.f32 %v3809, %v3828
      %v3849 = vadd.f32 %v3810, %v3828
      %v3850 = vadd.f32 %v3811, %v3828
      %v3851 = vadd.f32 %v3812, %v3828
      %v3852 = vadd.f32 %v3813, %v3828
      %v3853 = vadd.f32 %v3814, %v3828
      %v3854 = vadd.f32 %v3815, %v3828
      %v3855 = vadd.f32 %v3816, %v3828
      %v3856 = vadd.f32 %v3817, %v3828
      %v3857 = vadd.f32 %v3818, %v3828
      %v3858 = vadd.f32 %v3819, %v3828
      %v3859 = vadd.f32 %v3820, %v3828
      %v3860 = vadd.f32 %v3821, %v3828
      %v3861 = vadd.f32 %v3822, %v3828
      %vm3862 = vcmask 523264
      %3863 = vst.msk [vmem:[#allocation3] sm:$0xff] %vm3862, 0.0
      %vm3864 = vcmask 517120
      %3865 = vst.msk [vmem:[#allocation3 + $0x8] sm:$0x3] %vm3864, 0.0
      %3866 = vst.msk [vmem:[#allocation3 + $0x10] sm:$0xff] %vm3862, 0.0
      %3867 = vst.msk [vmem:[#allocation3 + $0x18] sm:$0x3] %vm3864, 0.0
      %3868 = vst.msk [vmem:[#allocation3 + $0x20] sm:$0xff] %vm3862, 0.0
      %3869 = vst.msk [vmem:[#allocation3 + $0x28] sm:$0x3] %vm3864, 0.0
      %3870 = vst.msk [vmem:[#allocation3 + $0x30] sm:$0xff] %vm3862, 0.0
      %3871 = vst.msk [vmem:[#allocation3 + $0x38] sm:$0x3] %vm3864, 0.0
      %3872 = vst.msk [vmem:[#allocation3 + $0x40] sm:$0xff] %vm3862, 0.0
      %3873 = vst.msk [vmem:[#allocation3 + $0x48] sm:$0x3] %vm3864, 0.0
      %3874 = vst.msk [vmem:[#allocation3 + $0x50] sm:$0xff] %vm3862, 0.0
      %3875 = vst.msk [vmem:[#allocation3 + $0x58] sm:$0x3] %vm3864, 0.0
      %3876 = vst.msk [vmem:[#allocation3 + $0x60] sm:$0xff] %vm3862, 0.0
      %3877 = vst.msk [vmem:[#allocation3 + $0x68] sm:$0x3] %vm3864, 0.0
      %3878 = vst.msk [vmem:[#allocation3 + $0x70] sm:$0xff] %vm3862, 0.0
      %3879 = vst.msk [vmem:[#allocation3 + $0x78] sm:$0x3] %vm3864, 0.0
      %3880 = vst.msk [vmem:[#allocation3 + $0x80] sm:$0xff] %vm3862, 0.0
      %3881 = vst.msk [vmem:[#allocation3 + $0x88] sm:$0x3] %vm3864, 0.0
      %3882 = vst.msk [vmem:[#allocation3 + $0x90] sm:$0xff] %vm3862, 0.0
      %3883 = vst.msk [vmem:[#allocation3 + $0x98] sm:$0x3] %vm3864, 0.0
      %3884 = vst.msk [vmem:[#allocation3 + $0xa0] sm:$0xff] %vm3862, 0.0
      %3885 = vst.msk [vmem:[#allocation3 + $0xa8] sm:$0x3] %vm3864, 0.0
      %3886 = vst.msk [vmem:[#allocation3 + $0xb0] sm:$0xff] %vm3862, 0.0
      %3887 = vst.msk [vmem:[#allocation3 + $0xb8] sm:$0x3] %vm3864, 0.0
      %3888 = vst.msk [vmem:[#allocation3 + $0xc0] sm:$0xff] %vm3862, 0.0
      %3889 = vst.msk [vmem:[#allocation3 + $0xc8] sm:$0x3] %vm3864, 0.0
      %3890 = vst.msk [vmem:[#allocation3 + $0xd0] sm:$0xff] %vm3862, 0.0
      %3891 = vst.msk [vmem:[#allocation3 + $0xd8] sm:$0x3] %vm3864, 0.0
      %3892 = vst.msk [vmem:[#allocation3 + $0xe0] sm:$0xff] %vm3862, 0.0
      %3893 = vst.msk [vmem:[#allocation3 + $0xe8] sm:$0x3] %vm3864, 0.0
      %3894 = vst.msk [vmem:[#allocation3 + $0xf0] sm:$0xff] %vm3862, 0.0
      %3895 = vst.msk [vmem:[#allocation3 + $0xf8] sm:$0x3] %vm3864, 0.0
      %3896 = vst.msk [vmem:[#allocation3 + $0x100] sm:$0xff] %vm3862, 0.0
      %3897 = vst.msk [vmem:[#allocation3 + $0x108] sm:$0x3] %vm3864, 0.0
      %3898 = vst.msk [vmem:[#allocation3 + $0x110] sm:$0xff] %vm3862, 0.0
      %3899 = vst.msk [vmem:[#allocation3 + $0x118] sm:$0x3] %vm3864, 0.0
      %3900 = vst.msk [vmem:[#allocation3 + $0x120] sm:$0xff] %vm3862, 0.0
      %3901 = vst.msk [vmem:[#allocation3 + $0x128] sm:$0x3] %vm3864, 0.0
      %3902 = vst.msk [vmem:[#allocation3 + $0x130] sm:$0xff] %vm3862, 0.0
      %3903 = vst.msk [vmem:[#allocation3 + $0x138] sm:$0x3] %vm3864, 0.0
      %3904 = vst.msk [vmem:[#allocation3 + $0x140] sm:$0xff] %vm3862, 0.0
      %3905 = vst.msk [vmem:[#allocation3 + $0x148] sm:$0x3] %vm3864, 0.0
      %3906 = vst.msk [vmem:[#allocation3 + $0x150] sm:$0xff] %vm3862, 0.0
      %3907 = vst.msk [vmem:[#allocation3 + $0x158] sm:$0x3] %vm3864, 0.0
      %3908 = vst.msk [vmem:[#allocation3 + $0x160] sm:$0xff] %vm3862, 0.0
      %3909 = vst.msk [vmem:[#allocation3 + $0x168] sm:$0x3] %vm3864, 0.0
      %3910 = vst.msk [vmem:[#allocation3 + $0x170] sm:$0xff] %vm3862, 0.0
      %3911 = vst.msk [vmem:[#allocation3 + $0x178] sm:$0x3] %vm3864, 0.0
      %3912 = vst.msk [vmem:[#allocation3 + $0x180] sm:$0xff] %vm3862, 0.0
      %3913 = vst.msk [vmem:[#allocation3 + $0x188] sm:$0x3] %vm3864, 0.0
      %3914 = vst.msk [vmem:[#allocation3 + $0x190] sm:$0xff] %vm3862, 0.0
      %3915 = vst.msk [vmem:[#allocation3 + $0x198] sm:$0x3] %vm3864, 0.0
      %3916 = vst.msk [vmem:[#allocation3 + $0x1a0] sm:$0xff] %vm3862, 0.0
      %3917 = vst.msk [vmem:[#allocation3 + $0x1a8] sm:$0x3] %vm3864, 0.0
      %3918 = vst.msk [vmem:[#allocation3 + $0x1b0] sm:$0xff] %vm3862, 0.0
      %3919 = vst.msk [vmem:[#allocation3 + $0x1b8] sm:$0x3] %vm3864, 0.0
      %3920 = vst.msk [vmem:[#allocation3 + $0x1c0] sm:$0xff] %vm3862, 0.0
      %3921 = vst.msk [vmem:[#allocation3 + $0x1c8] sm:$0x3] %vm3864, 0.0
      %3922 = vst.msk [vmem:[#allocation3 + $0x1d0] sm:$0xff] %vm3862, 0.0
      %3923 = vst.msk [vmem:[#allocation3 + $0x1d8] sm:$0x3] %vm3864, 0.0
      %3924 = vst.msk [vmem:[#allocation3 + $0x1e0] sm:$0xff] %vm3862, 0.0
      %3925 = vst.msk [vmem:[#allocation3 + $0x1e8] sm:$0x3] %vm3864, 0.0
      %3926 = vst.msk [vmem:[#allocation3 + $0x1f0] sm:$0xff] %vm3862, 0.0
      %3927 = vst.msk [vmem:[#allocation3 + $0x1f8] sm:$0x3] %vm3864, 0.0
      %3928 = vst.msk [vmem:[#allocation3 + $0x200] sm:$0xff] %vm3862, 0.0
      %3929 = vst.msk [vmem:[#allocation3 + $0x208] sm:$0x3] %vm3864, 0.0
      %3930 = vst.msk [vmem:[#allocation3 + $0x210] sm:$0xff] %vm3862, 0.0
      %3931 = vst.msk [vmem:[#allocation3 + $0x218] sm:$0x3] %vm3864, 0.0
      %3932 = vst.msk [vmem:[#allocation3 + $0x220] sm:$0xff] %vm3862, 0.0
      %3933 = vst.msk [vmem:[#allocation3 + $0x228] sm:$0x3] %vm3864, 0.0
      %3934 = vst.msk [vmem:[#allocation3 + $0x230] sm:$0xff] %vm3862, 0.0
      %3935 = vst.msk [vmem:[#allocation3 + $0x238] sm:$0x3] %vm3864, 0.0
      %3936 = vst.msk [vmem:[#allocation3 + $0x240] sm:$0xff] %vm3862, 0.0
      %3937 = vst.msk [vmem:[#allocation3 + $0x248] sm:$0x3] %vm3864, 0.0
      %3938 = vst.msk [vmem:[#allocation3 + $0x250] sm:$0xff] %vm3862, 0.0
      %3939 = vst.msk [vmem:[#allocation3 + $0x258] sm:$0x3] %vm3864, 0.0
      %3940 = vst.msk [vmem:[#allocation3 + $0x260] sm:$0xff] %vm3862, 0.0
      %3941 = vst.msk [vmem:[#allocation3 + $0x268] sm:$0x3] %vm3864, 0.0
      %3942 = vst.msk [vmem:[#allocation3 + $0x270] sm:$0xff] %vm3862, 0.0
      %3943 = vst.msk [vmem:[#allocation3 + $0x278] sm:$0x3] %vm3864, 0.0
      %s3944 = scalar_lea.vmem [#allocation3], 16
      %3945 = vst.msk [vmem:[%s3944 + $0x1] sm:$0xff] %vm3862, %v3830
      %3946 = vst.msk [vmem:[%s3944 + $0x11] sm:$0xff] %vm3862, %v3831
      %3947 = vst.msk [vmem:[%s3944 + $0x21] sm:$0xff] %vm3862, %v3832
      %3948 = vst.msk [vmem:[%s3944 + $0x31] sm:$0xff] %vm3862, %v3833
      %3949 = vst.msk [vmem:[%s3944 + $0x41] sm:$0xff] %vm3862, %v3834
      %3950 = vst.msk [vmem:[%s3944 + $0x51] sm:$0xff] %vm3862, %v3835
      %3951 = vst.msk [vmem:[%s3944 + $0x61] sm:$0xff] %vm3862, %v3836
      %3952 = vst.msk [vmem:[%s3944 + $0x71] sm:$0xff] %vm3862, %v3837
      %3953 = vst.msk [vmem:[%s3944 + $0xa1] sm:$0xff] %vm3862, %v3838
      %3954 = vst.msk [vmem:[%s3944 + $0xb1] sm:$0xff] %vm3862, %v3839
      %3955 = vst.msk [vmem:[%s3944 + $0xc1] sm:$0xff] %vm3862, %v3840
      %3956 = vst.msk [vmem:[%s3944 + $0xd1] sm:$0xff] %vm3862, %v3841
      %3957 = vst.msk [vmem:[%s3944 + $0xe1] sm:$0xff] %vm3862, %v3842
      %3958 = vst.msk [vmem:[%s3944 + $0xf1] sm:$0xff] %vm3862, %v3843
      %3959 = vst.msk [vmem:[%s3944 + $0x101] sm:$0xff] %vm3862, %v3844
      %3960 = vst.msk [vmem:[%s3944 + $0x111] sm:$0xff] %vm3862, %v3845
      %3961 = vst.msk [vmem:[%s3944 + $0x141] sm:$0xff] %vm3862, %v3846
      %3962 = vst.msk [vmem:[%s3944 + $0x151] sm:$0xff] %vm3862, %v3847
      %3963 = vst.msk [vmem:[%s3944 + $0x161] sm:$0xff] %vm3862, %v3848
      %3964 = vst.msk [vmem:[%s3944 + $0x171] sm:$0xff] %vm3862, %v3849
      %3965 = vst.msk [vmem:[%s3944 + $0x181] sm:$0xff] %vm3862, %v3850
      %3966 = vst.msk [vmem:[%s3944 + $0x191] sm:$0xff] %vm3862, %v3851
      %3967 = vst.msk [vmem:[%s3944 + $0x1a1] sm:$0xff] %vm3862, %v3852
      %3968 = vst.msk [vmem:[%s3944 + $0x1b1] sm:$0xff] %vm3862, %v3853
      %3969 = vst.msk [vmem:[%s3944 + $0x1e1] sm:$0xff] %vm3862, %v3854
      %3970 = vst.msk [vmem:[%s3944 + $0x1f1] sm:$0xff] %vm3862, %v3855
      %3971 = vst.msk [vmem:[%s3944 + $0x201] sm:$0xff] %vm3862, %v3856
      %3972 = vst.msk [vmem:[%s3944 + $0x211] sm:$0xff] %vm3862, %v3857
      %3973 = vst.msk [vmem:[%s3944 + $0x221] sm:$0xff] %vm3862, %v3858
      %3974 = vst.msk [vmem:[%s3944 + $0x231] sm:$0xff] %vm3862, %v3859
      %3975 = vst.msk [vmem:[%s3944 + $0x241] sm:$0xff] %vm3862, %v3860
      %3976 = vst.msk [vmem:[%s3944 + $0x251] sm:$0xff] %vm3862, %v3861
      %v3977 = vld [vmem:[#allocation3] sm:$0xff]
      %v3978 = vld [vmem:[#allocation3 + $0x10] sm:$0xff]
      %v3979 = vld [vmem:[#allocation3 + $0x20] sm:$0xff]
      %v3980 = vld [vmem:[#allocation3 + $0x30] sm:$0xff]
      %v3981 = vld [vmem:[#allocation3 + $0x40] sm:$0xff]
      %v3982 = vld [vmem:[#allocation3 + $0x50] sm:$0xff]
      %v3983 = vld [vmem:[#allocation3 + $0x60] sm:$0xff]
      %v3984 = vld [vmem:[#allocation3 + $0x70] sm:$0xff]
      %v3985 = vld [vmem:[#allocation3 + $0xa0] sm:$0xff]
      %v3986 = vld [vmem:[#allocation3 + $0xb0] sm:$0xff]
      %v3987 = vld [vmem:[#allocation3 + $0xc0] sm:$0xff]
      %v3988 = vld [vmem:[#allocation3 + $0xd0] sm:$0xff]
      %v3989 = vld [vmem:[#allocation3 + $0xe0] sm:$0xff]
      %v3990 = vld [vmem:[#allocation3 + $0xf0] sm:$0xff]
      %v3991 = vld [vmem:[#allocation3 + $0x100] sm:$0xff]
      %v3992 = vld [vmem:[#allocation3 + $0x110] sm:$0xff]
      %v3993 = vld [vmem:[#allocation3 + $0x140] sm:$0xff]
      %v3994 = vld [vmem:[#allocation3 + $0x150] sm:$0xff]
      %v3995 = vld [vmem:[#allocation3 + $0x160] sm:$0xff]
      %v3996 = vld [vmem:[#allocation3 + $0x170] sm:$0xff]
      %v3997 = vld [vmem:[#allocation3 + $0x180] sm:$0xff]
      %v3998 = vld [vmem:[#allocation3 + $0x190] sm:$0xff]
      %v3999 = vld [vmem:[#allocation3 + $0x1a0] sm:$0xff]
      %v4000 = vld [vmem:[#allocation3 + $0x1b0] sm:$0xff]
      %v4001 = vld [vmem:[#allocation3 + $0x1e0] sm:$0xff]
      %v4002 = vld [vmem:[#allocation3 + $0x1f0] sm:$0xff]
      %v4003 = vld [vmem:[#allocation3 + $0x200] sm:$0xff]
      %v4004 = vld [vmem:[#allocation3 + $0x210] sm:$0xff]
      %v4005 = vld [vmem:[#allocation3 + $0x220] sm:$0xff]
      %v4006 = vld [vmem:[#allocation3 + $0x230] sm:$0xff]
      %v4007 = vld [vmem:[#allocation3 + $0x240] sm:$0xff]
      %v4008 = vld [vmem:[#allocation3 + $0x250] sm:$0xff]
      %v4009 = vld [vmem:[#allocation3 + $0x1] sm:$0xff]
      %v4010 = vld [vmem:[#allocation3 + $0x11] sm:$0xff]
      %v4011 = vld [vmem:[#allocation3 + $0x21] sm:$0xff]
      %v4012 = vld [vmem:[#allocation3 + $0x31] sm:$0xff]
      %v4013 = vld [vmem:[#allocation3 + $0x41] sm:$0xff]
      %v4014 = vld [vmem:[#allocation3 + $0x51] sm:$0xff]
      %v4015 = vld [vmem:[#allocation3 + $0x61] sm:$0xff]
      %v4016 = vld [vmem:[#allocation3 + $0x71] sm:$0xff]
      %v4017 = vld [vmem:[#allocation3 + $0xa1] sm:$0xff]
      %v4018 = vld [vmem:[#allocation3 + $0xb1] sm:$0xff]
      %v4019 = vld [vmem:[#allocation3 + $0xc1] sm:$0xff]
      %v4020 = vld [vmem:[#allocation3 + $0xd1] sm:$0xff]
      %v4021 = vld [vmem:[#allocation3 + $0xe1] sm:$0xff]
      %v4022 = vld [vmem:[#allocation3 + $0xf1] sm:$0xff]
      %v4023 = vld [vmem:[#allocation3 + $0x101] sm:$0xff]
      %v4024 = vld [vmem:[#allocation3 + $0x111] sm:$0xff]
      %v4025 = vld [vmem:[#allocation3 + $0x141] sm:$0xff]
      %v4026 = vld [vmem:[#allocation3 + $0x151] sm:$0xff]
      %v4027 = vld [vmem:[#allocation3 + $0x161] sm:$0xff]
      %v4028 = vld [vmem:[#allocation3 + $0x171] sm:$0xff]
      %v4029 = vld [vmem:[#allocation3 + $0x181] sm:$0xff]
      %v4030 = vld [vmem:[#allocation3 + $0x191] sm:$0xff]
      %v4031 = vld [vmem:[#allocation3 + $0x1a1] sm:$0xff]
      %v4032 = vld [vmem:[#allocation3 + $0x1b1] sm:$0xff]
      %v4033 = vld [vmem:[#allocation3 + $0x1e1] sm:$0xff]
      %v4034 = vld [vmem:[#allocation3 + $0x1f1] sm:$0xff]
      %v4035 = vld [vmem:[#allocation3 + $0x201] sm:$0xff]
      %v4036 = vld [vmem:[#allocation3 + $0x211] sm:$0xff]
      %v4037 = vld [vmem:[#allocation3 + $0x221] sm:$0xff]
      %v4038 = vld [vmem:[#allocation3 + $0x231] sm:$0xff]
      %v4039 = vld [vmem:[#allocation3 + $0x241] sm:$0xff]
      %v4040 = vld [vmem:[#allocation3 + $0x251] sm:$0xff]
      %v4041 = vld [vmem:[#allocation3 + $0x2] sm:$0xff]
      %v4042 = vld [vmem:[#allocation3 + $0x12] sm:$0xff]
      %v4043 = vld [vmem:[#allocation3 + $0x22] sm:$0xff]
      %v4044 = vld [vmem:[#allocation3 + $0x32] sm:$0xff]
      %v4045 = vld [vmem:[#allocation3 + $0x42] sm:$0xff]
      %v4046 = vld [vmem:[#allocation3 + $0x52] sm:$0xff]
      %v4047 = vld [vmem:[#allocation3 + $0x62] sm:$0xff]
      %v4048 = vld [vmem:[#allocation3 + $0x72] sm:$0xff]
      %v4049 = vld [vmem:[#allocation3 + $0xa2] sm:$0xff]
      %v4050 = vld [vmem:[#allocation3 + $0xb2] sm:$0xff]
      %v4051 = vld [vmem:[#allocation3 + $0xc2] sm:$0xff]
      %v4052 = vld [vmem:[#allocation3 + $0xd2] sm:$0xff]
      %v4053 = vld [vmem:[#allocation3 + $0xe2] sm:$0xff]
      %v4054 = vld [vmem:[#allocation3 + $0xf2] sm:$0xff]
      %v4055 = vld [vmem:[#allocation3 + $0x102] sm:$0xff]
      %v4056 = vld [vmem:[#allocation3 + $0x112] sm:$0xff]
      %v4057 = vld [vmem:[#allocation3 + $0x142] sm:$0xff]
      %v4058 = vld [vmem:[#allocation3 + $0x152] sm:$0xff]
      %v4059 = vld [vmem:[#allocation3 + $0x162] sm:$0xff]
      %v4060 = vld [vmem:[#allocation3 + $0x172] sm:$0xff]
      %v4061 = vld [vmem:[#allocation3 + $0x182] sm:$0xff]
      %v4062 = vld [vmem:[#allocation3 + $0x192] sm:$0xff]
      %v4063 = vld [vmem:[#allocation3 + $0x1a2] sm:$0xff]
      %v4064 = vld [vmem:[#allocation3 + $0x1b2] sm:$0xff]
      %v4065 = vld [vmem:[#allocation3 + $0x1e2] sm:$0xff]
      %v4066 = vld [vmem:[#allocation3 + $0x1f2] sm:$0xff]
      %v4067 = vld [vmem:[#allocation3 + $0x202] sm:$0xff]
      %v4068 = vld [vmem:[#allocation3 + $0x212] sm:$0xff]
      %v4069 = vld [vmem:[#allocation3 + $0x222] sm:$0xff]
      %v4070 = vld [vmem:[#allocation3 + $0x232] sm:$0xff]
      %v4071 = vld [vmem:[#allocation3 + $0x242] sm:$0xff]
      %v4072 = vld [vmem:[#allocation3 + $0x252] sm:$0xff]
      %v4073 = vld [vmem:[%s3944] sm:$0xff]
      %v4074 = vld [vmem:[%s3944 + $0x10] sm:$0xff]
      %v4075 = vld [vmem:[%s3944 + $0x20] sm:$0xff]
      %v4076 = vld [vmem:[%s3944 + $0x30] sm:$0xff]
      %v4077 = vld [vmem:[%s3944 + $0x40] sm:$0xff]
      %v4078 = vld [vmem:[%s3944 + $0x50] sm:$0xff]
      %v4079 = vld [vmem:[%s3944 + $0x60] sm:$0xff]
      %v4080 = vld [vmem:[%s3944 + $0x70] sm:$0xff]
      %v4081 = vld [vmem:[%s3944 + $0xa0] sm:$0xff]
      %v4082 = vld [vmem:[%s3944 + $0xb0] sm:$0xff]
      %v4083 = vld [vmem:[%s3944 + $0xc0] sm:$0xff]
      %v4084 = vld [vmem:[%s3944 + $0xd0] sm:$0xff]
      %v4085 = vld [vmem:[%s3944 + $0xe0] sm:$0xff]
      %v4086 = vld [vmem:[%s3944 + $0xf0] sm:$0xff]
      %v4087 = vld [vmem:[%s3944 + $0x100] sm:$0xff]
      %v4088 = vld [vmem:[%s3944 + $0x110] sm:$0xff]
      %v4089 = vld [vmem:[%s3944 + $0x140] sm:$0xff]
      %v4090 = vld [vmem:[%s3944 + $0x150] sm:$0xff]
      %v4091 = vld [vmem:[%s3944 + $0x160] sm:$0xff]
      %v4092 = vld [vmem:[%s3944 + $0x170] sm:$0xff]
      %v4093 = vld [vmem:[%s3944 + $0x180] sm:$0xff]
      %v4094 = vld [vmem:[%s3944 + $0x190] sm:$0xff]
      %v4095 = vld [vmem:[%s3944 + $0x1a0] sm:$0xff]
      %v4096 = vld [vmem:[%s3944 + $0x1b0] sm:$0xff]
      %v4097 = vld [vmem:[%s3944 + $0x1e0] sm:$0xff]
      %v4098 = vld [vmem:[%s3944 + $0x1f0] sm:$0xff]
      %v4099 = vld [vmem:[%s3944 + $0x200] sm:$0xff]
      %v4100 = vld [vmem:[%s3944 + $0x210] sm:$0xff]
      %v4101 = vld [vmem:[%s3944 + $0x220] sm:$0xff]
      %v4102 = vld [vmem:[%s3944 + $0x230] sm:$0xff]
      %v4103 = vld [vmem:[%s3944 + $0x240] sm:$0xff]
      %v4104 = vld [vmem:[%s3944 + $0x250] sm:$0xff]
      %v4105 = vld [vmem:[%s3944 + $0x1] sm:$0xff]
      %v4106 = vld [vmem:[%s3944 + $0x11] sm:$0xff]
      %v4107 = vld [vmem:[%s3944 + $0x21] sm:$0xff]
      %v4108 = vld [vmem:[%s3944 + $0x31] sm:$0xff]
      %v4109 = vld [vmem:[%s3944 + $0x41] sm:$0xff]
      %v4110 = vld [vmem:[%s3944 + $0x51] sm:$0xff]
      %v4111 = vld [vmem:[%s3944 + $0x61] sm:$0xff]
      %v4112 = vld [vmem:[%s3944 + $0x71] sm:$0xff]
      %v4113 = vld [vmem:[%s3944 + $0xa1] sm:$0xff]
      %v4114 = vld [vmem:[%s3944 + $0xb1] sm:$0xff]
      %v4115 = vld [vmem:[%s3944 + $0xc1] sm:$0xff]
      %v4116 = vld [vmem:[%s3944 + $0xd1] sm:$0xff]
      %v4117 = vld [vmem:[%s3944 + $0xe1] sm:$0xff]
      %v4118 = vld [vmem:[%s3944 + $0xf1] sm:$0xff]
      %v4119 = vld [vmem:[%s3944 + $0x101] sm:$0xff]
      %v4120 = vld [vmem:[%s3944 + $0x111] sm:$0xff]
      %v4121 = vld [vmem:[%s3944 + $0x141] sm:$0xff]
      %v4122 = vld [vmem:[%s3944 + $0x151] sm:$0xff]
      %v4123 = vld [vmem:[%s3944 + $0x161] sm:$0xff]
      %v4124 = vld [vmem:[%s3944 + $0x171] sm:$0xff]
      %v4125 = vld [vmem:[%s3944 + $0x181] sm:$0xff]
      %v4126 = vld [vmem:[%s3944 + $0x191] sm:$0xff]
      %v4127 = vld [vmem:[%s3944 + $0x1a1] sm:$0xff]
      %v4128 = vld [vmem:[%s3944 + $0x1b1] sm:$0xff]
      %v4129 = vld [vmem:[%s3944 + $0x1e1] sm:$0xff]
      %v4130 = vld [vmem:[%s3944 + $0x1f1] sm:$0xff]
      %v4131 = vld [vmem:[%s3944 + $0x201] sm:$0xff]
      %v4132 = vld [vmem:[%s3944 + $0x211] sm:$0xff]
      %v4133 = vld [vmem:[%s3944 + $0x221] sm:$0xff]
      %v4134 = vld [vmem:[%s3944 + $0x231] sm:$0xff]
      %v4135 = vld [vmem:[%s3944 + $0x241] sm:$0xff]
      %v4136 = vld [vmem:[%s3944 + $0x251] sm:$0xff]
      %v4137 = vld [vmem:[%s3944 + $0x2] sm:$0xff]
      %v4138 = vld [vmem:[%s3944 + $0x12] sm:$0xff]
      %v4139 = vld [vmem:[%s3944 + $0x22] sm:$0xff]
      %v4140 = vld [vmem:[%s3944 + $0x32] sm:$0xff]
      %v4141 = vld [vmem:[%s3944 + $0x42] sm:$0xff]
      %v4142 = vld [vmem:[%s3944 + $0x52] sm:$0xff]
      %v4143 = vld [vmem:[%s3944 + $0x62] sm:$0xff]
      %v4144 = vld [vmem:[%s3944 + $0x72] sm:$0xff]
      %v4145 = vld [vmem:[%s3944 + $0xa2] sm:$0xff]
      %v4146 = vld [vmem:[%s3944 + $0xb2] sm:$0xff]
      %v4147 = vld [vmem:[%s3944 + $0xc2] sm:$0xff]
      %v4148 = vld [vmem:[%s3944 + $0xd2] sm:$0xff]
      %v4149 = vld [vmem:[%s3944 + $0xe2] sm:$0xff]
      %v4150 = vld [vmem:[%s3944 + $0xf2] sm:$0xff]
      %v4151 = vld [vmem:[%s3944 + $0x102] sm:$0xff]
      %v4152 = vld [vmem:[%s3944 + $0x112] sm:$0xff]
      %v4153 = vld [vmem:[%s3944 + $0x142] sm:$0xff]
      %v4154 = vld [vmem:[%s3944 + $0x152] sm:$0xff]
      %v4155 = vld [vmem:[%s3944 + $0x162] sm:$0xff]
      %v4156 = vld [vmem:[%s3944 + $0x172] sm:$0xff]
      %v4157 = vld [vmem:[%s3944 + $0x182] sm:$0xff]
      %v4158 = vld [vmem:[%s3944 + $0x192] sm:$0xff]
      %v4159 = vld [vmem:[%s3944 + $0x1a2] sm:$0xff]
      %v4160 = vld [vmem:[%s3944 + $0x1b2] sm:$0xff]
      %v4161 = vld [vmem:[%s3944 + $0x1e2] sm:$0xff]
      %v4162 = vld [vmem:[%s3944 + $0x1f2] sm:$0xff]
      %v4163 = vld [vmem:[%s3944 + $0x202] sm:$0xff]
      %v4164 = vld [vmem:[%s3944 + $0x212] sm:$0xff]
      %v4165 = vld [vmem:[%s3944 + $0x222] sm:$0xff]
      %v4166 = vld [vmem:[%s3944 + $0x232] sm:$0xff]
      %v4167 = vld [vmem:[%s3944 + $0x242] sm:$0xff]
      %v4168 = vld [vmem:[%s3944 + $0x252] sm:$0xff]
      %s4169 = scalar_lea.vmem [#allocation3], 32
      %v4170 = vld [vmem:[%s4169] sm:$0xff]
      %v4171 = vld [vmem:[%s4169 + $0x10] sm:$0xff]
      %v4172 = vld [vmem:[%s4169 + $0x20] sm:$0xff]
      %v4173 = vld [vmem:[%s4169 + $0x30] sm:$0xff]
      %v4174 = vld [vmem:[%s4169 + $0x40] sm:$0xff]
      %v4175 = vld [vmem:[%s4169 + $0x50] sm:$0xff]
      %v4176 = vld [vmem:[%s4169 + $0x60] sm:$0xff]
      %v4177 = vld [vmem:[%s4169 + $0x70] sm:$0xff]
      %v4178 = vld [vmem:[%s4169 + $0xa0] sm:$0xff]
      %v4179 = vld [vmem:[%s4169 + $0xb0] sm:$0xff]
      %v4180 = vld [vmem:[%s4169 + $0xc0] sm:$0xff]
      %v4181 = vld [vmem:[%s4169 + $0xd0] sm:$0xff]
      %v4182 = vld [vmem:[%s4169 + $0xe0] sm:$0xff]
      %v4183 = vld [vmem:[%s4169 + $0xf0] sm:$0xff]
      %v4184 = vld [vmem:[%s4169 + $0x100] sm:$0xff]
      %v4185 = vld [vmem:[%s4169 + $0x110] sm:$0xff]
      %v4186 = vld [vmem:[%s4169 + $0x140] sm:$0xff]
      %v4187 = vld [vmem:[%s4169 + $0x150] sm:$0xff]
      %v4188 = vld [vmem:[%s4169 + $0x160] sm:$0xff]
      %v4189 = vld [vmem:[%s4169 + $0x170] sm:$0xff]
      %v4190 = vld [vmem:[%s4169 + $0x180] sm:$0xff]
      %v4191 = vld [vmem:[%s4169 + $0x190] sm:$0xff]
      %v4192 = vld [vmem:[%s4169 + $0x1a0] sm:$0xff]
      %v4193 = vld [vmem:[%s4169 + $0x1b0] sm:$0xff]
      %v4194 = vld [vmem:[%s4169 + $0x1e0] sm:$0xff]
      %v4195 = vld [vmem:[%s4169 + $0x1f0] sm:$0xff]
      %v4196 = vld [vmem:[%s4169 + $0x200] sm:$0xff]
      %v4197 = vld [vmem:[%s4169 + $0x210] sm:$0xff]
      %v4198 = vld [vmem:[%s4169 + $0x220] sm:$0xff]
      %v4199 = vld [vmem:[%s4169 + $0x230] sm:$0xff]
      %v4200 = vld [vmem:[%s4169 + $0x240] sm:$0xff]
      %v4201 = vld [vmem:[%s4169 + $0x250] sm:$0xff]
      %v4202 = vld [vmem:[%s4169 + $0x1] sm:$0xff]
      %v4203 = vld [vmem:[%s4169 + $0x11] sm:$0xff]
      %v4204 = vld [vmem:[%s4169 + $0x21] sm:$0xff]
      %v4205 = vld [vmem:[%s4169 + $0x31] sm:$0xff]
      %v4206 = vld [vmem:[%s4169 + $0x41] sm:$0xff]
      %v4207 = vld [vmem:[%s4169 + $0x51] sm:$0xff]
      %v4208 = vld [vmem:[%s4169 + $0x61] sm:$0xff]
      %v4209 = vld [vmem:[%s4169 + $0x71] sm:$0xff]
      %v4210 = vld [vmem:[%s4169 + $0xa1] sm:$0xff]
      %v4211 = vld [vmem:[%s4169 + $0xb1] sm:$0xff]
      %v4212 = vld [vmem:[%s4169 + $0xc1] sm:$0xff]
      %v4213 = vld [vmem:[%s4169 + $0xd1] sm:$0xff]
      %v4214 = vld [vmem:[%s4169 + $0xe1] sm:$0xff]
      %v4215 = vld [vmem:[%s4169 + $0xf1] sm:$0xff]
      %v4216 = vld [vmem:[%s4169 + $0x101] sm:$0xff]
      %v4217 = vld [vmem:[%s4169 + $0x111] sm:$0xff]
      %v4218 = vld [vmem:[%s4169 + $0x141] sm:$0xff]
      %v4219 = vld [vmem:[%s4169 + $0x151] sm:$0xff]
      %v4220 = vld [vmem:[%s4169 + $0x161] sm:$0xff]
      %v4221 = vld [vmem:[%s4169 + $0x171] sm:$0xff]
      %v4222 = vld [vmem:[%s4169 + $0x181] sm:$0xff]
      %v4223 = vld [vmem:[%s4169 + $0x191] sm:$0xff]
      %v4224 = vld [vmem:[%s4169 + $0x1a1] sm:$0xff]
      %v4225 = vld [vmem:[%s4169 + $0x1b1] sm:$0xff]
      %v4226 = vld [vmem:[%s4169 + $0x1e1] sm:$0xff]
      %v4227 = vld [vmem:[%s4169 + $0x1f1] sm:$0xff]
      %v4228 = vld [vmem:[%s4169 + $0x201] sm:$0xff]
      %v4229 = vld [vmem:[%s4169 + $0x211] sm:$0xff]
      %v4230 = vld [vmem:[%s4169 + $0x221] sm:$0xff]
      %v4231 = vld [vmem:[%s4169 + $0x231] sm:$0xff]
      %v4232 = vld [vmem:[%s4169 + $0x241] sm:$0xff]
      %v4233 = vld [vmem:[%s4169 + $0x251] sm:$0xff]
      %v4234 = vld [vmem:[%s4169 + $0x2] sm:$0xff]
      %v4235 = vld [vmem:[%s4169 + $0x12] sm:$0xff]
      %v4236 = vld [vmem:[%s4169 + $0x22] sm:$0xff]
      %v4237 = vld [vmem:[%s4169 + $0x32] sm:$0xff]
      %v4238 = vld [vmem:[%s4169 + $0x42] sm:$0xff]
      %v4239 = vld [vmem:[%s4169 + $0x52] sm:$0xff]
      %v4240 = vld [vmem:[%s4169 + $0x62] sm:$0xff]
      %v4241 = vld [vmem:[%s4169 + $0x72] sm:$0xff]
      %v4242 = vld [vmem:[%s4169 + $0xa2] sm:$0xff]
      %v4243 = vld [vmem:[%s4169 + $0xb2] sm:$0xff]
      %v4244 = vld [vmem:[%s4169 + $0xc2] sm:$0xff]
      %v4245 = vld [vmem:[%s4169 + $0xd2] sm:$0xff]
      %v4246 = vld [vmem:[%s4169 + $0xe2] sm:$0xff]
      %v4247 = vld [vmem:[%s4169 + $0xf2] sm:$0xff]
      %v4248 = vld [vmem:[%s4169 + $0x102] sm:$0xff]
      %v4249 = vld [vmem:[%s4169 + $0x112] sm:$0xff]
      %v4250 = vld [vmem:[%s4169 + $0x142] sm:$0xff]
      %v4251 = vld [vmem:[%s4169 + $0x152] sm:$0xff]
      %v4252 = vld [vmem:[%s4169 + $0x162] sm:$0xff]
      %v4253 = vld [vmem:[%s4169 + $0x172] sm:$0xff]
      %v4254 = vld [vmem:[%s4169 + $0x182] sm:$0xff]
      %v4255 = vld [vmem:[%s4169 + $0x192] sm:$0xff]
      %v4256 = vld [vmem:[%s4169 + $0x1a2] sm:$0xff]
      %v4257 = vld [vmem:[%s4169 + $0x1b2] sm:$0xff]
      %v4258 = vld [vmem:[%s4169 + $0x1e2] sm:$0xff]
      %v4259 = vld [vmem:[%s4169 + $0x1f2] sm:$0xff]
      %v4260 = vld [vmem:[%s4169 + $0x202] sm:$0xff]
      %v4261 = vld [vmem:[%s4169 + $0x212] sm:$0xff]
      %v4262 = vld [vmem:[%s4169 + $0x222] sm:$0xff]
      %v4263 = vld [vmem:[%s4169 + $0x232] sm:$0xff]
      %v4264 = vld [vmem:[%s4169 + $0x242] sm:$0xff]
      %v4265 = vld [vmem:[%s4169 + $0x252] sm:$0xff]
      %4298 = vrot.lane.b32.xlu0 %v4009, 64
      %v4299 = vpop.permute.xlu0 %4298
      %4300 = vrot.lane.b32.xlu0 %v4010, 64
      %v4301 = vpop.permute.xlu0 %4300
      %4302 = vrot.lane.b32.xlu0 %v4011, 64
      %v4303 = vpop.permute.xlu0 %4302
      %4304 = vrot.lane.b32.xlu0 %v4012, 64
      %v4305 = vpop.permute.xlu0 %4304
      %4306 = vrot.lane.b32.xlu0 %v4013, 64
      %v4307 = vpop.permute.xlu0 %4306
      %4308 = vrot.lane.b32.xlu0 %v4014, 64
      %v4309 = vpop.permute.xlu0 %4308
      %4310 = vrot.lane.b32.xlu0 %v4015, 64
      %v4311 = vpop.permute.xlu0 %4310
      %4312 = vrot.lane.b32.xlu0 %v4016, 64
      %v4313 = vpop.permute.xlu0 %4312
      %4314 = vrot.lane.b32.xlu0 %v4017, 64
      %v4315 = vpop.permute.xlu0 %4314
      %4316 = vrot.lane.b32.xlu0 %v4018, 64
      %v4317 = vpop.permute.xlu0 %4316
      %4318 = vrot.lane.b32.xlu0 %v4019, 64
      %v4319 = vpop.permute.xlu0 %4318
      %4320 = vrot.lane.b32.xlu0 %v4020, 64
      %v4321 = vpop.permute.xlu0 %4320
      %4322 = vrot.lane.b32.xlu0 %v4021, 64
      %v4323 = vpop.permute.xlu0 %4322
      %4324 = vrot.lane.b32.xlu0 %v4022, 64
      %v4325 = vpop.permute.xlu0 %4324
      %4326 = vrot.lane.b32.xlu0 %v4023, 64
      %v4327 = vpop.permute.xlu0 %4326
      %4328 = vrot.lane.b32.xlu0 %v4024, 64
      %v4329 = vpop.permute.xlu0 %4328
      %4330 = vrot.lane.b32.xlu0 %v4025, 64
      %v4331 = vpop.permute.xlu0 %4330
      %4332 = vrot.lane.b32.xlu0 %v4026, 64
      %v4333 = vpop.permute.xlu0 %4332
      %4334 = vrot.lane.b32.xlu0 %v4027, 64
      %v4335 = vpop.permute.xlu0 %4334
      %4336 = vrot.lane.b32.xlu0 %v4028, 64
      %v4337 = vpop.permute.xlu0 %4336
      %4338 = vrot.lane.b32.xlu0 %v4029, 64
      %v4339 = vpop.permute.xlu0 %4338
      %4340 = vrot.lane.b32.xlu0 %v4030, 64
      %v4341 = vpop.permute.xlu0 %4340
      %4342 = vrot.lane.b32.xlu0 %v4031, 64
      %v4343 = vpop.permute.xlu0 %4342
      %4344 = vrot.lane.b32.xlu0 %v4032, 64
      %v4345 = vpop.permute.xlu0 %4344
      %4346 = vrot.lane.b32.xlu0 %v4033, 64
      %v4347 = vpop.permute.xlu0 %4346
      %4348 = vrot.lane.b32.xlu0 %v4034, 64
      %v4349 = vpop.permute.xlu0 %4348
      %4350 = vrot.lane.b32.xlu0 %v4035, 64
      %v4351 = vpop.permute.xlu0 %4350
      %4352 = vrot.lane.b32.xlu0 %v4036, 64
      %v4353 = vpop.permute.xlu0 %4352
      %4354 = vrot.lane.b32.xlu0 %v4037, 64
      %v4355 = vpop.permute.xlu0 %4354
      %4356 = vrot.lane.b32.xlu0 %v4038, 64
      %v4357 = vpop.permute.xlu0 %4356
      %4358 = vrot.lane.b32.xlu0 %v4039, 64
      %v4359 = vpop.permute.xlu0 %4358
      %4360 = vrot.lane.b32.xlu0 %v4040, 64
      %v4361 = vpop.permute.xlu0 %4360
      %4426 = vrot.lane.b32.xlu0 %v4073, 64
      %v4427 = vpop.permute.xlu0 %4426
      %4428 = vrot.lane.b32.xlu0 %v4074, 64
      %v4429 = vpop.permute.xlu0 %4428
      %4430 = vrot.lane.b32.xlu0 %v4075, 64
      %v4431 = vpop.permute.xlu0 %4430
      %4432 = vrot.lane.b32.xlu0 %v4076, 64
      %v4433 = vpop.permute.xlu0 %4432
      %4434 = vrot.lane.b32.xlu0 %v4077, 64
      %v4435 = vpop.permute.xlu0 %4434
      %4436 = vrot.lane.b32.xlu0 %v4078, 64
      %v4437 = vpop.permute.xlu0 %4436
      %4438 = vrot.lane.b32.xlu0 %v4079, 64
      %v4439 = vpop.permute.xlu0 %4438
      %4440 = vrot.lane.b32.xlu0 %v4080, 64
      %v4441 = vpop.permute.xlu0 %4440
      %4442 = vrot.lane.b32.xlu0 %v4081, 64
      %v4443 = vpop.permute.xlu0 %4442
      %4444 = vrot.lane.b32.xlu0 %v4082, 64
      %v4445 = vpop.permute.xlu0 %4444
      %4446 = vrot.lane.b32.xlu0 %v4083, 64
      %v4447 = vpop.permute.xlu0 %4446
      %4448 = vrot.lane.b32.xlu0 %v4084, 64
      %v4449 = vpop.permute.xlu0 %4448
      %4450 = vrot.lane.b32.xlu0 %v4085, 64
      %v4451 = vpop.permute.xlu0 %4450
      %4452 = vrot.lane.b32.xlu0 %v4086, 64
      %v4453 = vpop.permute.xlu0 %4452
      %4454 = vrot.lane.b32.xlu0 %v4087, 64
      %v4455 = vpop.permute.xlu0 %4454
      %4456 = vrot.lane.b32.xlu0 %v4088, 64
      %v4457 = vpop.permute.xlu0 %4456
      %4458 = vrot.lane.b32.xlu0 %v4089, 64
      %v4459 = vpop.permute.xlu0 %4458
      %4460 = vrot.lane.b32.xlu0 %v4090, 64
      %v4461 = vpop.permute.xlu0 %4460
      %4462 = vrot.lane.b32.xlu0 %v4091, 64
      %v4463 = vpop.permute.xlu0 %4462
      %4464 = vrot.lane.b32.xlu0 %v4092, 64
      %v4465 = vpop.permute.xlu0 %4464
      %4466 = vrot.lane.b32.xlu0 %v4093, 64
      %v4467 = vpop.permute.xlu0 %4466
      %4468 = vrot.lane.b32.xlu0 %v4094, 64
      %v4469 = vpop.permute.xlu0 %4468
      %4470 = vrot.lane.b32.xlu0 %v4095, 64
      %v4471 = vpop.permute.xlu0 %4470
      %4472 = vrot.lane.b32.xlu0 %v4096, 64
      %v4473 = vpop.permute.xlu0 %4472
      %4474 = vrot.lane.b32.xlu0 %v4097, 64
      %v4475 = vpop.permute.xlu0 %4474
      %4476 = vrot.lane.b32.xlu0 %v4098, 64
      %v4477 = vpop.permute.xlu0 %4476
      %4478 = vrot.lane.b32.xlu0 %v4099, 64
      %v4479 = vpop.permute.xlu0 %4478
      %4480 = vrot.lane.b32.xlu0 %v4100, 64
      %v4481 = vpop.permute.xlu0 %4480
      %4482 = vrot.lane.b32.xlu0 %v4101, 64
      %v4483 = vpop.permute.xlu0 %4482
      %4484 = vrot.lane.b32.xlu0 %v4102, 64
      %v4485 = vpop.permute.xlu0 %4484
      %4486 = vrot.lane.b32.xlu0 %v4103, 64
      %v4487 = vpop.permute.xlu0 %4486
      %4488 = vrot.lane.b32.xlu0 %v4104, 64
      %v4489 = vpop.permute.xlu0 %4488
      %4554 = vrot.lane.b32.xlu0 %v4137, 64
      %v4555 = vpop.permute.xlu0 %4554
      %4556 = vrot.lane.b32.xlu0 %v4138, 64
      %v4557 = vpop.permute.xlu0 %4556
      %4558 = vrot.lane.b32.xlu0 %v4139, 64
      %v4559 = vpop.permute.xlu0 %4558
      %4560 = vrot.lane.b32.xlu0 %v4140, 64
      %v4561 = vpop.permute.xlu0 %4560
      %4562 = vrot.lane.b32.xlu0 %v4141, 64
      %v4563 = vpop.permute.xlu0 %4562
      %4564 = vrot.lane.b32.xlu0 %v4142, 64
      %v4565 = vpop.permute.xlu0 %4564
      %4566 = vrot.lane.b32.xlu0 %v4143, 64
      %v4567 = vpop.permute.xlu0 %4566
      %4568 = vrot.lane.b32.xlu0 %v4144, 64
      %v4569 = vpop.permute.xlu0 %4568
      %4570 = vrot.lane.b32.xlu0 %v4145, 64
      %v4571 = vpop.permute.xlu0 %4570
      %4572 = vrot.lane.b32.xlu0 %v4146, 64
      %v4573 = vpop.permute.xlu0 %4572
      %4574 = vrot.lane.b32.xlu0 %v4147, 64
      %v4575 = vpop.permute.xlu0 %4574
      %4576 = vrot.lane.b32.xlu0 %v4148, 64
      %v4577 = vpop.permute.xlu0 %4576
      %4578 = vrot.lane.b32.xlu0 %v4149, 64
      %v4579 = vpop.permute.xlu0 %4578
      %4580 = vrot.lane.b32.xlu0 %v4150, 64
      %v4581 = vpop.permute.xlu0 %4580
      %4582 = vrot.lane.b32.xlu0 %v4151, 64
      %v4583 = vpop.permute.xlu0 %4582
      %4584 = vrot.lane.b32.xlu0 %v4152, 64
      %v4585 = vpop.permute.xlu0 %4584
      %4586 = vrot.lane.b32.xlu0 %v4153, 64
      %v4587 = vpop.permute.xlu0 %4586
      %4588 = vrot.lane.b32.xlu0 %v4154, 64
      %v4589 = vpop.permute.xlu0 %4588
      %4590 = vrot.lane.b32.xlu0 %v4155, 64
      %v4591 = vpop.permute.xlu0 %4590
      %4592 = vrot.lane.b32.xlu0 %v4156, 64
      %v4593 = vpop.permute.xlu0 %4592
      %4594 = vrot.lane.b32.xlu0 %v4157, 64
      %v4595 = vpop.permute.xlu0 %4594
      %4596 = vrot.lane.b32.xlu0 %v4158, 64
      %v4597 = vpop.permute.xlu0 %4596
      %4598 = vrot.lane.b32.xlu0 %v4159, 64
      %v4599 = vpop.permute.xlu0 %4598
      %4600 = vrot.lane.b32.xlu0 %v4160, 64
      %v4601 = vpop.permute.xlu0 %4600
      %4602 = vrot.lane.b32.xlu0 %v4161, 64
      %v4603 = vpop.permute.xlu0 %4602
      %4604 = vrot.lane.b32.xlu0 %v4162, 64
      %v4605 = vpop.permute.xlu0 %4604
      %4606 = vrot.lane.b32.xlu0 %v4163, 64
      %v4607 = vpop.permute.xlu0 %4606
      %4608 = vrot.lane.b32.xlu0 %v4164, 64
      %v4609 = vpop.permute.xlu0 %4608
      %4610 = vrot.lane.b32.xlu0 %v4165, 64
      %v4611 = vpop.permute.xlu0 %4610
      %4612 = vrot.lane.b32.xlu0 %v4166, 64
      %v4613 = vpop.permute.xlu0 %4612
      %4614 = vrot.lane.b32.xlu0 %v4167, 64
      %v4615 = vpop.permute.xlu0 %4614
      %4616 = vrot.lane.b32.xlu0 %v4168, 64
      %v4617 = vpop.permute.xlu0 %4616
      %4682 = vrot.lane.b32.xlu0 %v4202, 64
      %v4683 = vpop.permute.xlu0 %4682
      %4684 = vrot.lane.b32.xlu0 %v4203, 64
      %v4685 = vpop.permute.xlu0 %4684
      %4686 = vrot.lane.b32.xlu0 %v4204, 64
      %v4687 = vpop.permute.xlu0 %4686
      %4688 = vrot.lane.b32.xlu0 %v4205, 64
      %v4689 = vpop.permute.xlu0 %4688
      %4690 = vrot.lane.b32.xlu0 %v4206, 64
      %v4691 = vpop.permute.xlu0 %4690
      %4692 = vrot.lane.b32.xlu0 %v4207, 64
      %v4693 = vpop.permute.xlu0 %4692
      %4694 = vrot.lane.b32.xlu0 %v4208, 64
      %v4695 = vpop.permute.xlu0 %4694
      %4696 = vrot.lane.b32.xlu0 %v4209, 64
      %v4697 = vpop.permute.xlu0 %4696
      %4698 = vrot.lane.b32.xlu0 %v4210, 64
      %v4699 = vpop.permute.xlu0 %4698
      %4700 = vrot.lane.b32.xlu0 %v4211, 64
      %v4701 = vpop.permute.xlu0 %4700
      %4702 = vrot.lane.b32.xlu0 %v4212, 64
      %v4703 = vpop.permute.xlu0 %4702
      %4704 = vrot.lane.b32.xlu0 %v4213, 64
      %v4705 = vpop.permute.xlu0 %4704
      %4706 = vrot.lane.b32.xlu0 %v4214, 64
      %v4707 = vpop.permute.xlu0 %4706
      %4708 = vrot.lane.b32.xlu0 %v4215, 64
      %v4709 = vpop.permute.xlu0 %4708
      %4710 = vrot.lane.b32.xlu0 %v4216, 64
      %v4711 = vpop.permute.xlu0 %4710
      %4712 = vrot.lane.b32.xlu0 %v4217, 64
      %v4713 = vpop.permute.xlu0 %4712
      %4714 = vrot.lane.b32.xlu0 %v4218, 64
      %v4715 = vpop.permute.xlu0 %4714
      %4716 = vrot.lane.b32.xlu0 %v4219, 64
      %v4717 = vpop.permute.xlu0 %4716
      %4718 = vrot.lane.b32.xlu0 %v4220, 64
      %v4719 = vpop.permute.xlu0 %4718
      %4720 = vrot.lane.b32.xlu0 %v4221, 64
      %v4721 = vpop.permute.xlu0 %4720
      %4722 = vrot.lane.b32.xlu0 %v4222, 64
      %v4723 = vpop.permute.xlu0 %4722
      %4724 = vrot.lane.b32.xlu0 %v4223, 64
      %v4725 = vpop.permute.xlu0 %4724
      %4726 = vrot.lane.b32.xlu0 %v4224, 64
      %v4727 = vpop.permute.xlu0 %4726
      %4728 = vrot.lane.b32.xlu0 %v4225, 64
      %v4729 = vpop.permute.xlu0 %4728
      %4730 = vrot.lane.b32.xlu0 %v4226, 64
      %v4731 = vpop.permute.xlu0 %4730
      %4732 = vrot.lane.b32.xlu0 %v4227, 64
      %v4733 = vpop.permute.xlu0 %4732
      %4734 = vrot.lane.b32.xlu0 %v4228, 64
      %v4735 = vpop.permute.xlu0 %4734
      %4736 = vrot.lane.b32.xlu0 %v4229, 64
      %v4737 = vpop.permute.xlu0 %4736
      %4738 = vrot.lane.b32.xlu0 %v4230, 64
      %v4739 = vpop.permute.xlu0 %4738
      %4740 = vrot.lane.b32.xlu0 %v4231, 64
      %v4741 = vpop.permute.xlu0 %4740
      %4742 = vrot.lane.b32.xlu0 %v4232, 64
      %v4743 = vpop.permute.xlu0 %4742
      %4744 = vrot.lane.b32.xlu0 %v4233, 64
      %v4745 = vpop.permute.xlu0 %4744
      %v4778 = vsel %vm3862, %v3977, %v4299
      %v4779 = vsel %vm3862, %v3978, %v4301
      %v4780 = vsel %vm3862, %v3979, %v4303
      %v4781 = vsel %vm3862, %v3980, %v4305
      %v4782 = vsel %vm3862, %v3981, %v4307
      %v4783 = vsel %vm3862, %v3982, %v4309
      %v4784 = vsel %vm3862, %v3983, %v4311
      %v4785 = vsel %vm3862, %v3984, %v4313
      %v4786 = vsel %vm3862, %v3985, %v4315
      %v4787 = vsel %vm3862, %v3986, %v4317
      %v4788 = vsel %vm3862, %v3987, %v4319
      %v4789 = vsel %vm3862, %v3988, %v4321
      %v4790 = vsel %vm3862, %v3989, %v4323
      %v4791 = vsel %vm3862, %v3990, %v4325
      %v4792 = vsel %vm3862, %v3991, %v4327
      %v4793 = vsel %vm3862, %v3992, %v4329
      %v4794 = vsel %vm3862, %v3993, %v4331
      %v4795 = vsel %vm3862, %v3994, %v4333
      %v4796 = vsel %vm3862, %v3995, %v4335
      %v4797 = vsel %vm3862, %v3996, %v4337
      %v4798 = vsel %vm3862, %v3997, %v4339
      %v4799 = vsel %vm3862, %v3998, %v4341
      %v4800 = vsel %vm3862, %v3999, %v4343
      %v4801 = vsel %vm3862, %v4000, %v4345
      %v4802 = vsel %vm3862, %v4001, %v4347
      %v4803 = vsel %vm3862, %v4002, %v4349
      %v4804 = vsel %vm3862, %v4003, %v4351
      %v4805 = vsel %vm3862, %v4004, %v4353
      %v4806 = vsel %vm3862, %v4005, %v4355
      %v4807 = vsel %vm3862, %v4006, %v4357
      %v4808 = vsel %vm3862, %v4007, %v4359
      %v4809 = vsel %vm3862, %v4008, %v4361
      %v4810 = vsel %vm3862, %v4041, %v4427
      %v4811 = vsel %vm3862, %v4042, %v4429
      %v4812 = vsel %vm3862, %v4043, %v4431
      %v4813 = vsel %vm3862, %v4044, %v4433
      %v4814 = vsel %vm3862, %v4045, %v4435
      %v4815 = vsel %vm3862, %v4046, %v4437
      %v4816 = vsel %vm3862, %v4047, %v4439
      %v4817 = vsel %vm3862, %v4048, %v4441
      %v4818 = vsel %vm3862, %v4049, %v4443
      %v4819 = vsel %vm3862, %v4050, %v4445
      %v4820 = vsel %vm3862, %v4051, %v4447
      %v4821 = vsel %vm3862, %v4052, %v4449
      %v4822 = vsel %vm3862, %v4053, %v4451
      %v4823 = vsel %vm3862, %v4054, %v4453
      %v4824 = vsel %vm3862, %v4055, %v4455
      %v4825 = vsel %vm3862, %v4056, %v4457
      %v4826 = vsel %vm3862, %v4057, %v4459
      %v4827 = vsel %vm3862, %v4058, %v4461
      %v4828 = vsel %vm3862, %v4059, %v4463
      %v4829 = vsel %vm3862, %v4060, %v4465
      %v4830 = vsel %vm3862, %v4061, %v4467
      %v4831 = vsel %vm3862, %v4062, %v4469
      %v4832 = vsel %vm3862, %v4063, %v4471
      %v4833 = vsel %vm3862, %v4064, %v4473
      %v4834 = vsel %vm3862, %v4065, %v4475
      %v4835 = vsel %vm3862, %v4066, %v4477
      %v4836 = vsel %vm3862, %v4067, %v4479
      %v4837 = vsel %vm3862, %v4068, %v4481
      %v4838 = vsel %vm3862, %v4069, %v4483
      %v4839 = vsel %vm3862, %v4070, %v4485
      %v4840 = vsel %vm3862, %v4071, %v4487
      %v4841 = vsel %vm3862, %v4072, %v4489
      %v4842 = vsel %vm3862, %v4105, %v4555
      %v4843 = vsel %vm3862, %v4106, %v4557
      %v4844 = vsel %vm3862, %v4107, %v4559
      %v4845 = vsel %vm3862, %v4108, %v4561
      %v4846 = vsel %vm3862, %v4109, %v4563
      %v4847 = vsel %vm3862, %v4110, %v4565
      %v4848 = vsel %vm3862, %v4111, %v4567
      %v4849 = vsel %vm3862, %v4112, %v4569
      %v4850 = vsel %vm3862, %v4113, %v4571
      %v4851 = vsel %vm3862, %v4114, %v4573
      %v4852 = vsel %vm3862, %v4115, %v4575
      %v4853 = vsel %vm3862, %v4116, %v4577
      %v4854 = vsel %vm3862, %v4117, %v4579
      %v4855 = vsel %vm3862, %v4118, %v4581
      %v4856 = vsel %vm3862, %v4119, %v4583
      %v4857 = vsel %vm3862, %v4120, %v4585
      %v4858 = vsel %vm3862, %v4121, %v4587
      %v4859 = vsel %vm3862, %v4122, %v4589
      %v4860 = vsel %vm3862, %v4123, %v4591
      %v4861 = vsel %vm3862, %v4124, %v4593
      %v4862 = vsel %vm3862, %v4125, %v4595
      %v4863 = vsel %vm3862, %v4126, %v4597
      %v4864 = vsel %vm3862, %v4127, %v4599
      %v4865 = vsel %vm3862, %v4128, %v4601
      %v4866 = vsel %vm3862, %v4129, %v4603
      %v4867 = vsel %vm3862, %v4130, %v4605
      %v4868 = vsel %vm3862, %v4131, %v4607
      %v4869 = vsel %vm3862, %v4132, %v4609
      %v4870 = vsel %vm3862, %v4133, %v4611
      %v4871 = vsel %vm3862, %v4134, %v4613
      %v4872 = vsel %vm3862, %v4135, %v4615
      %v4873 = vsel %vm3862, %v4136, %v4617
      %v4874 = vsel %vm3862, %v4170, %v4683
      %v4875 = vsel %vm3862, %v4171, %v4685
      %v4876 = vsel %vm3862, %v4172, %v4687
      %v4877 = vsel %vm3862, %v4173, %v4689
      %v4878 = vsel %vm3862, %v4174, %v4691
      %v4879 = vsel %vm3862, %v4175, %v4693
      %v4880 = vsel %vm3862, %v4176, %v4695
      %v4881 = vsel %vm3862, %v4177, %v4697
      %v4882 = vsel %vm3862, %v4178, %v4699
      %v4883 = vsel %vm3862, %v4179, %v4701
      %v4884 = vsel %vm3862, %v4180, %v4703
      %v4885 = vsel %vm3862, %v4181, %v4705
      %v4886 = vsel %vm3862, %v4182, %v4707
      %v4887 = vsel %vm3862, %v4183, %v4709
      %v4888 = vsel %vm3862, %v4184, %v4711
      %v4889 = vsel %vm3862, %v4185, %v4713
      %v4890 = vsel %vm3862, %v4186, %v4715
      %v4891 = vsel %vm3862, %v4187, %v4717
      %v4892 = vsel %vm3862, %v4188, %v4719
      %v4893 = vsel %vm3862, %v4189, %v4721
      %v4894 = vsel %vm3862, %v4190, %v4723
      %v4895 = vsel %vm3862, %v4191, %v4725
      %v4896 = vsel %vm3862, %v4192, %v4727
      %v4897 = vsel %vm3862, %v4193, %v4729
      %v4898 = vsel %vm3862, %v4194, %v4731
      %v4899 = vsel %vm3862, %v4195, %v4733
      %v4900 = vsel %vm3862, %v4196, %v4735
      %v4901 = vsel %vm3862, %v4197, %v4737
      %v4902 = vsel %vm3862, %v4198, %v4739
      %v4903 = vsel %vm3862, %v4199, %v4741
      %v4904 = vsel %vm3862, %v4200, %v4743
      %v4905 = vsel %vm3862, %v4201, %v4745
      %v4906 = vld [vmem:[%s3] sm:$0xff]
      %v4907 = vld [vmem:[%s3 + $0x8] sm:$0xff]
      %v4908 = vld [vmem:[%s3 + $0x10] sm:$0xff]
      %v4909 = vld [vmem:[%s3 + $0x18] sm:$0xff]
      %v4910 = vld [vmem:[%s3 + $0x20] sm:$0xff]
      %v4911 = vld [vmem:[%s3 + $0x28] sm:$0xff]
      %v4912 = vld [vmem:[%s3 + $0x30] sm:$0xff]
      %v4913 = vld [vmem:[%s3 + $0x38] sm:$0xff]
      %v4914 = vld [vmem:[%s3 + $0x40] sm:$0xff]
      %v4915 = vld [vmem:[%s3 + $0x48] sm:$0xff]
      %v4916 = vld [vmem:[%s3 + $0x50] sm:$0xff]
      %v4917 = vld [vmem:[%s3 + $0x58] sm:$0xff]
      %v4918 = vld [vmem:[%s3 + $0x60] sm:$0xff]
      %v4919 = vld [vmem:[%s3 + $0x68] sm:$0xff]
      %v4920 = vld [vmem:[%s3 + $0x70] sm:$0xff]
      %v4921 = vld [vmem:[%s3 + $0x78] sm:$0xff]
      %v4922 = vld [vmem:[%s3 + $0x80] sm:$0xff]
      %v4923 = vld [vmem:[%s3 + $0x88] sm:$0xff]
      %v4924 = vld [vmem:[%s3 + $0x90] sm:$0xff]
      %v4925 = vld [vmem:[%s3 + $0x98] sm:$0xff]
      %v4926 = vld [vmem:[%s3 + $0xa0] sm:$0xff]
      %v4927 = vld [vmem:[%s3 + $0xa8] sm:$0xff]
      %v4928 = vld [vmem:[%s3 + $0xb0] sm:$0xff]
      %v4929 = vld [vmem:[%s3 + $0xb8] sm:$0xff]
      %v4930 = vld [vmem:[%s3 + $0xc0] sm:$0xff]
      %v4931 = vld [vmem:[%s3 + $0xc8] sm:$0xff]
      %v4932 = vld [vmem:[%s3 + $0xd0] sm:$0xff]
      %v4933 = vld [vmem:[%s3 + $0xd8] sm:$0xff]
      %v4934 = vld [vmem:[%s3 + $0xe0] sm:$0xff]
      %v4935 = vld [vmem:[%s3 + $0xe8] sm:$0xff]
      %v4936 = vld [vmem:[%s3 + $0xf0] sm:$0xff]
      %v4937 = vld [vmem:[%s3 + $0xf8] sm:$0xff]
      %v4938 = vld [vmem:[%s3 + $0x100] sm:$0xff]
      %v4939 = vld [vmem:[%s3 + $0x108] sm:$0xff]
      %v4940 = vld [vmem:[%s3 + $0x110] sm:$0xff]
      %v4941 = vld [vmem:[%s3 + $0x118] sm:$0xff]
      %v4942 = vld [vmem:[%s3 + $0x120] sm:$0xff]
      %v4943 = vld [vmem:[%s3 + $0x128] sm:$0xff]
      %v4944 = vld [vmem:[%s3 + $0x130] sm:$0xff]
      %v4945 = vld [vmem:[%s3 + $0x138] sm:$0xff]
      %v4946 = vld [vmem:[%s3 + $0x140] sm:$0xff]
      %v4947 = vld [vmem:[%s3 + $0x148] sm:$0xff]
      %v4948 = vld [vmem:[%s3 + $0x150] sm:$0xff]
      %v4949 = vld [vmem:[%s3 + $0x158] sm:$0xff]
      %v4950 = vld [vmem:[%s3 + $0x160] sm:$0xff]
      %v4951 = vld [vmem:[%s3 + $0x168] sm:$0xff]
      %v4952 = vld [vmem:[%s3 + $0x170] sm:$0xff]
      %v4953 = vld [vmem:[%s3 + $0x178] sm:$0xff]
      %v4954 = vld [vmem:[%s3 + $0x180] sm:$0xff]
      %v4955 = vld [vmem:[%s3 + $0x188] sm:$0xff]
      %v4956 = vld [vmem:[%s3 + $0x190] sm:$0xff]
      %v4957 = vld [vmem:[%s3 + $0x198] sm:$0xff]
      %v4958 = vld [vmem:[%s3 + $0x1a0] sm:$0xff]
      %v4959 = vld [vmem:[%s3 + $0x1a8] sm:$0xff]
      %v4960 = vld [vmem:[%s3 + $0x1b0] sm:$0xff]
      %v4961 = vld [vmem:[%s3 + $0x1b8] sm:$0xff]
      %v4962 = vld [vmem:[%s3 + $0x1c0] sm:$0xff]
      %v4963 = vld [vmem:[%s3 + $0x1c8] sm:$0xff]
      %v4964 = vld [vmem:[%s3 + $0x1d0] sm:$0xff]
      %v4965 = vld [vmem:[%s3 + $0x1d8] sm:$0xff]
      %v4966 = vld [vmem:[%s3 + $0x1e0] sm:$0xff]
      %v4967 = vld [vmem:[%s3 + $0x1e8] sm:$0xff]
      %v4968 = vld [vmem:[%s3 + $0x1f0] sm:$0xff]
      %v4969 = vld [vmem:[%s3 + $0x1f8] sm:$0xff]
      %v4970 = vld [vmem:[%s3 + $0x200] sm:$0xff]
      %v4971 = vld [vmem:[%s3 + $0x208] sm:$0xff]
      %v4972 = vld [vmem:[%s3 + $0x210] sm:$0xff]
      %v4973 = vld [vmem:[%s3 + $0x218] sm:$0xff]
      %v4974 = vld [vmem:[%s3 + $0x220] sm:$0xff]
      %v4975 = vld [vmem:[%s3 + $0x228] sm:$0xff]
      %v4976 = vld [vmem:[%s3 + $0x230] sm:$0xff]
      %v4977 = vld [vmem:[%s3 + $0x238] sm:$0xff]
      %v4978 = vld [vmem:[%s4] sm:$0x1]
      %v4980 = vlaneseq
      %v4981 = vshrl.u32 %v4980, 7
      %v4982 = vsub.s32 0, %v4981
      %v4983 = vrot.slane %v4978, %v4982
      %v4986 = vsel %vm3862, %v4234, 0
      %v4989 = vsel %vm3862, %v4235, 0
      %v4992 = vsel %vm3862, %v4236, 0
      %v4995 = vsel %vm3862, %v4237, 0
      %v4998 = vsel %vm3862, %v4238, 0
      %v5001 = vsel %vm3862, %v4239, 0
      %v5004 = vsel %vm3862, %v4240, 0
      %v5007 = vsel %vm3862, %v4241, 0
      %v5010 = vsel %vm3862, %v4242, 0
      %v5013 = vsel %vm3862, %v4243, 0
      %v5016 = vsel %vm3862, %v4244, 0
      %v5019 = vsel %vm3862, %v4245, 0
      %v5022 = vsel %vm3862, %v4246, 0
      %v5025 = vsel %vm3862, %v4247, 0
      %v5028 = vsel %vm3862, %v4248, 0
      %v5031 = vsel %vm3862, %v4249, 0
      %v5034 = vsel %vm3862, %v4250, 0
      %v5037 = vsel %vm3862, %v4251, 0
      %v5040 = vsel %vm3862, %v4252, 0
      %v5043 = vsel %vm3862, %v4253, 0
      %v5046 = vsel %vm3862, %v4254, 0
      %v5049 = vsel %vm3862, %v4255, 0
      %v5052 = vsel %vm3862, %v4256, 0
      %v5055 = vsel %vm3862, %v4257, 0
      %v5058 = vsel %vm3862, %v4258, 0
      %v5061 = vsel %vm3862, %v4259, 0
      %v5064 = vsel %vm3862, %v4260, 0
      %v5067 = vsel %vm3862, %v4261, 0
      %v5070 = vsel %vm3862, %v4262, 0
      %v5073 = vsel %vm3862, %v4263, 0
      %v5076 = vsel %vm3862, %v4264, 0
      %v5079 = vsel %vm3862, %v4265, 0
      %5081 = vmatprep.subr.mxu0 0.0
      %5082 = vmatpush1.msra.mxu0 %v4906
      %5083 = vmatprep.subr.mxu0 0.0
      %5084 = vmatpush1.msra.mxu0 %v4907
      %5085 = vmatprep.subr.mxu0 0.0
      %5086 = vmatpush1.msra.mxu0 %v4908
      %5087 = vmatprep.subr.mxu0 0.0
      %5088 = vmatpush1.msra.mxu0 %v4909
      %5089 = vmatprep.subr.mxu0 0.0
      %5090 = vmatpush1.msra.mxu0 %v4910
      %5091 = vmatprep.subr.mxu0 0.0
      %5092 = vmatpush1.msra.mxu0 %v4911
      %5093 = vmatprep.subr.mxu0 0.0
      %5094 = vmatpush1.msra.mxu0 %v4912
      %5095 = vmatprep.subr.mxu0 0.0
      %5096 = vmatpush1.msra.mxu0 %v4913
      %5097 = vmatprep.subr.mxu0 0.0
      %5098 = vmatpush1.msra.mxu0 %v4914
      %5099 = vmatprep.subr.mxu0 0.0
      %5100 = vmatpush1.msra.mxu0 %v4915
      %5101 = vmatprep.subr.mxu0 0.0
      %5102 = vmatpush1.msra.mxu0 %v4916
      %5103 = vmatprep.subr.mxu0 0.0
      %5104 = vmatpush1.msra.mxu0 %v4917
      %5105 = vmatprep.subr.mxu0 0.0
      %5106 = vmatpush1.msra.mxu0 %v4918
      %5107 = vmatprep.subr.mxu0 0.0
      %5108 = vmatpush1.msra.mxu0 %v4919
      %5109 = vmatprep.subr.mxu0 0.0
      %5110 = vmatpush1.msra.mxu0 %v4920
      %5111 = vmatprep.subr.mxu0 0.0
      %5112 = vmatpush1.msra.mxu0 %v4921
      %5113 = vmatprep.subr.mxu0 0.0
      %5114 = vmatpush1.msra.mxu0 %v4922
      %5115 = vmatprep.subr.mxu0 0.0
      %5116 = vmatpush1.msra.mxu0 %v4923
      %5117 = vmatprep.subr.mxu0 0.0
      %5118 = vmatpush1.msra.mxu0 %v4924
      %5119 = vmatprep.subr.mxu0 0.0
      %5120 = vmatpush1.msra.mxu0 %v4925
      %5121 = vmatprep.subr.mxu0 0.0
      %5122 = vmatpush1.msra.mxu0 %v4926
      %5123 = vmatprep.subr.mxu0 0.0
      %5124 = vmatpush1.msra.mxu0 %v4927
      %5125 = vmatprep.subr.mxu0 0.0
      %5126 = vmatpush1.msra.mxu0 %v4928
      %5127 = vmatprep.subr.mxu0 0.0
      %5128 = vmatpush1.msra.mxu0 %v4929
      %5129 = vmatprep.subr.mxu0 0.0
      %5130 = vmatpush1.msra.mxu0 %v4930
      %5131 = vmatprep.subr.mxu0 0.0
      %5132 = vmatpush1.msra.mxu0 %v4931
      %5133 = vmatprep.subr.mxu0 0.0
      %5134 = vmatpush1.msra.mxu0 %v4932
      %5135 = vmatprep.subr.mxu0 0.0
      %5136 = vmatpush1.msra.mxu0 %v4933
      %5137 = vmatprep.subr.mxu0 0.0
      %5138 = vmatpush1.msra.mxu0 %v4934
      %5139 = vmatprep.subr.mxu0 0.0
      %5140 = vmatpush1.msra.mxu0 %v4935
      %5141 = vmatprep.subr.mxu0 0.0
      %5142 = vmatpush1.msra.mxu0 %v4936
      %5143 = vmatprep.subr.mxu0 0.0
      %5144 = vmatpush1.msra.mxu0 %v4937
      %5145 = vmatprep.mubr.f32.mxu0 %v4810
      %5146 = vmatmul.mubr.f32.gmra.mrb[0].mxu0 %v4778
      %v5147 = vpop.f32.mrb[0].mxu0
      %v5148 = vadd.f32 %v4983, %v5147
      %v5149 = vpop.f32.mrb[0].mxu0
      %5150 = vmatprep.mubr.f32.mxu0 %v4811
      %5151 = vmatmul.mubr.f32.gmra.mrb[0].mxu0 %v4779
      %v5152 = vpop.f32.mrb[0].mxu0
      %v5153 = vadd.f32 %v4983, %v5152
      %v5154 = vpop.f32.mrb[0].mxu0
      %5155 = vmatprep.mubr.f32.mxu0 %v4812
      %5156 = vmatmul.mubr.f32.gmra.mrb[0].mxu0 %v4780
      %v5157 = vpop.f32.mrb[0].mxu0
      %v5158 = vadd.f32 %v4983, %v5157
      %v5159 = vpop.f32.mrb[0].mxu0
      %5160 = vmatprep.mubr.f32.mxu0 %v4813
      %5161 = vmatmul.mubr.f32.gmra.mrb[0].mxu0 %v4781
      %v5162 = vpop.f32.mrb[0].mxu0
      %v5163 = vadd.f32 %v4983, %v5162
      %v5164 = vpop.f32.mrb[0].mxu0
      %5165 = vmatprep.mubr.f32.mxu0 %v4814
      %5166 = vmatmul.mubr.f32.gmra.mrb[0].mxu0 %v4782
      %v5167 = vpop.f32.mrb[0].mxu0
      %v5168 = vadd.f32 %v4983, %v5167
      %v5169 = vpop.f32.mrb[0].mxu0
      %5170 = vmatprep.mubr.f32.mxu0 %v4815
      %5171 = vmatmul.mubr.f32.gmra.mrb[0].mxu0 %v4783
      %v5172 = vpop.f32.mrb[0].mxu0
      %v5173 = vadd.f32 %v4983, %v5172
      %v5174 = vpop.f32.mrb[0].mxu0
      %5175 = vmatprep.mubr.f32.mxu0 %v4816
      %5176 = vmatmul.mubr.f32.gmra.mrb[0].mxu0 %v4784
      %v5177 = vpop.f32.mrb[0].mxu0
      %v5178 = vadd.f32 %v4983, %v5177
      %v5179 = vpop.f32.mrb[0].mxu0
      %5180 = vmatprep.mubr.f32.mxu0 %v4817
      %5181 = vmatmul.mubr.f32.gmra.mrb[0].mxu0 %v4785
      %v5182 = vpop.f32.mrb[0].mxu0
      %v5183 = vadd.f32 %v4983, %v5182
      %v5184 = vpop.f32.mrb[0].mxu0
      %5185 = vmatprep.mubr.f32.mxu0 %v4818
      %5186 = vmatmul.mubr.f32.gmra.mrb[0].mxu0 %v4786
      %v5187 = vpop.f32.mrb[0].mxu0
      %v5188 = vadd.f32 %v4983, %v5187
      %v5189 = vpop.f32.mrb[0].mxu0
      %5190 = vmatprep.mubr.f32.mxu0 %v4819
      %5191 = vmatmul.mubr.f32.gmra.mrb[0].mxu0 %v4787
      %v5192 = vpop.f32.mrb[0].mxu0
      %v5193 = vadd.f32 %v4983, %v5192
      %v5194 = vpop.f32.mrb[0].mxu0
      %5195 = vmatprep.mubr.f32.mxu0 %v4820
      %5196 = vmatmul.mubr.f32.gmra.mrb[0].mxu0 %v4788
      %v5197 = vpop.f32.mrb[0].mxu0
      %v5198 = vadd.f32 %v4983, %v5197
      %v5199 = vpop.f32.mrb[0].mxu0
      %5200 = vmatprep.mubr.f32.mxu0 %v4821
      %5201 = vmatmul.mubr.f32.gmra.mrb[0].mxu0 %v4789
      %v5202 = vpop.f32.mrb[0].mxu0
      %v5203 = vadd.f32 %v4983, %v5202
      %v5204 = vpop.f32.mrb[0].mxu0
      %5205 = vmatprep.mubr.f32.mxu0 %v4822
      %5206 = vmatmul.mubr.f32.gmra.mrb[0].mxu0 %v4790
      %v5207 = vpop.f32.mrb[0].mxu0
      %v5208 = vadd.f32 %v4983, %v5207
      %v5209 = vpop.f32.mrb[0].mxu0
      %5210 = vmatprep.mubr.f32.mxu0 %v4823
      %5211 = vmatmul.mubr.f32.gmra.mrb[0].mxu0 %v4791
      %v5212 = vpop.f32.mrb[0].mxu0
      %v5213 = vadd.f32 %v4983, %v5212
      %v5214 = vpop.f32.mrb[0].mxu0
      %5215 = vmatprep.mubr.f32.mxu0 %v4824
      %5216 = vmatmul.mubr.f32.gmra.mrb[0].mxu0 %v4792
      %v5217 = vpop.f32.mrb[0].mxu0
      %v5218 = vadd.f32 %v4983, %v5217
      %v5219 = vpop.f32.mrb[0].mxu0
      %5220 = vmatprep.mubr.f32.mxu0 %v4825
      %5221 = vmatmul.mubr.f32.gmra.mrb[0].mxu0 %v4793
      %v5222 = vpop.f32.mrb[0].mxu0
      %v5223 = vadd.f32 %v4983, %v5222
      %v5224 = vpop.f32.mrb[0].mxu0
      %5225 = vmatprep.mubr.f32.mxu0 %v4826
      %5226 = vmatmul.mubr.f32.gmra.mrb[0].mxu0 %v4794
      %v5227 = vpop.f32.mrb[0].mxu0
      %v5228 = vadd.f32 %v4983, %v5227
      %v5229 = vpop.f32.mrb[0].mxu0
      %5230 = vmatprep.mubr.f32.mxu0 %v4827
      %5231 = vmatmul.mubr.f32.gmra.mrb[0].mxu0 %v4795
      %v5232 = vpop.f32.mrb[0].mxu0
      %v5233 = vadd.f32 %v4983, %v5232
      %v5234 = vpop.f32.mrb[0].mxu0
      %5235 = vmatprep.mubr.f32.mxu0 %v4828
      %5236 = vmatmul.mubr.f32.gmra.mrb[0].mxu0 %v4796
      %v5237 = vpop.f32.mrb[0].mxu0
      %v5238 = vadd.f32 %v4983, %v5237
      %v5239 = vpop.f32.mrb[0].mxu0
      %5240 = vmatprep.mubr.f32.mxu0 %v4829
      %5241 = vmatmul.mubr.f32.gmra.mrb[0].mxu0 %v4797
      %v5242 = vpop.f32.mrb[0].mxu0
      %v5243 = vadd.f32 %v4983, %v5242
      %v5244 = vpop.f32.mrb[0].mxu0
      %5245 = vmatprep.mubr.f32.mxu0 %v4830
      %5246 = vmatmul.mubr.f32.gmra.mrb[0].mxu0 %v4798
      %v5247 = vpop.f32.mrb[0].mxu0
      %v5248 = vadd.f32 %v4983, %v5247
      %v5249 = vpop.f32.mrb[0].mxu0
      %5250 = vmatprep.mubr.f32.mxu0 %v4831
      %5251 = vmatmul.mubr.f32.gmra.mrb[0].mxu0 %v4799
      %v5252 = vpop.f32.mrb[0].mxu0
      %v5253 = vadd.f32 %v4983, %v5252
      %v5254 = vpop.f32.mrb[0].mxu0
      %5255 = vmatprep.mubr.f32.mxu0 %v4832
      %5256 = vmatmul.mubr.f32.gmra.mrb[0].mxu0 %v4800
      %v5257 = vpop.f32.mrb[0].mxu0
      %v5258 = vadd.f32 %v4983, %v5257
      %v5259 = vpop.f32.mrb[0].mxu0
      %5260 = vmatprep.mubr.f32.mxu0 %v4833
      %5261 = vmatmul.mubr.f32.gmra.mrb[0].mxu0 %v4801
      %v5262 = vpop.f32.mrb[0].mxu0
      %v5263 = vadd.f32 %v4983, %v5262
      %v5264 = vpop.f32.mrb[0].mxu0
      %5265 = vmatprep.mubr.f32.mxu0 %v4834
      %5266 = vmatmul.mubr.f32.gmra.mrb[0].mxu0 %v4802
      %v5267 = vpop.f32.mrb[0].mxu0
      %v5268 = vadd.f32 %v4983, %v5267
      %v5269 = vpop.f32.mrb[0].mxu0
      %5270 = vmatprep.mubr.f32.mxu0 %v4835
      %5271 = vmatmul.mubr.f32.gmra.mrb[0].mxu0 %v4803
      %v5272 = vpop.f32.mrb[0].mxu0
      %v5273 = vadd.f32 %v4983, %v5272
      %v5274 = vpop.f32.mrb[0].mxu0
      %5275 = vmatprep.mubr.f32.mxu0 %v4836
      %5276 = vmatmul.mubr.f32.gmra.mrb[0].mxu0 %v4804
      %v5277 = vpop.f32.mrb[0].mxu0
      %v5278 = vadd.f32 %v4983, %v5277
      %v5279 = vpop.f32.mrb[0].mxu0
      %5280 = vmatprep.mubr.f32.mxu0 %v4837
      %5281 = vmatmul.mubr.f32.gmra.mrb[0].mxu0 %v4805
      %v5282 = vpop.f32.mrb[0].mxu0
      %v5283 = vadd.f32 %v4983, %v5282
      %v5284 = vpop.f32.mrb[0].mxu0
      %5285 = vmatprep.mubr.f32.mxu0 %v4838
      %5286 = vmatmul.mubr.f32.gmra.mrb[0].mxu0 %v4806
      %v5287 = vpop.f32.mrb[0].mxu0
      %v5288 = vadd.f32 %v4983, %v5287
      %v5289 = vpop.f32.mrb[0].mxu0
      %5290 = vmatprep.mubr.f32.mxu0 %v4839
      %5291 = vmatmul.mubr.f32.gmra.mrb[0].mxu0 %v4807
      %v5292 = vpop.f32.mrb[0].mxu0
      %v5293 = vadd.f32 %v4983, %v5292
      %v5294 = vpop.f32.mrb[0].mxu0
      %5295 = vmatprep.mubr.f32.mxu0 %v4840
      %5296 = vmatmul.mubr.f32.gmra.mrb[0].mxu0 %v4808
      %v5297 = vpop.f32.mrb[0].mxu0
      %v5298 = vadd.f32 %v4983, %v5297
      %v5299 = vpop.f32.mrb[0].mxu0
      %5300 = vmatprep.mubr.f32.mxu0 %v4841
      %5301 = vmatmul.mubr.f32.gmra.mrb[0].mxu0 %v4809
      %v5302 = vpop.f32.mrb[0].mxu0
      %v5303 = vadd.f32 %v4983, %v5302
      %v5304 = vpop.f32.mrb[0].mxu0
      %5305 = vdwg.mxu0
      %5306 = vmatprep.subr.mxu0 0.0
      %5307 = vmatpush1.msra.mxu0 %v4938
      %5308 = vmatprep.subr.mxu0 0.0
      %5309 = vmatpush1.msra.mxu0 %v4939
      %5310 = vmatprep.subr.mxu0 0.0
      %5311 = vmatpush1.msra.mxu0 %v4940
      %5312 = vmatprep.subr.mxu0 0.0
      %5313 = vmatpush1.msra.mxu0 %v4941
      %5314 = vmatprep.subr.mxu0 0.0
      %5315 = vmatpush1.msra.mxu0 %v4942
      %5316 = vmatprep.subr.mxu0 0.0
      %5317 = vmatpush1.msra.mxu0 %v4943
      %5318 = vmatprep.subr.mxu0 0.0
      %5319 = vmatpush1.msra.mxu0 %v4944
      %5320 = vmatprep.subr.mxu0 0.0
      %5321 = vmatpush1.msra.mxu0 %v4945
      %5322 = vmatprep.subr.mxu0 0.0
      %5323 = vmatpush1.msra.mxu0 %v4946
      %5324 = vmatprep.subr.mxu0 0.0
      %5325 = vmatpush1.msra.mxu0 %v4947
      %5326 = vmatprep.subr.mxu0 0.0
      %5327 = vmatpush1.msra.mxu0 %v4948
      %5328 = vmatprep.subr.mxu0 0.0
      %5329 = vmatpush1.msra.mxu0 %v4949
      %5330 = vmatprep.subr.mxu0 0.0
      %5331 = vmatpush1.msra.mxu0 %v4950
      %5332 = vmatprep.subr.mxu0 0.0
      %5333 = vmatpush1.msra.mxu0 %v4951
      %5334 = vmatprep.subr.mxu0 0.0
      %5335 = vmatpush1.msra.mxu0 %v4952
      %5336 = vmatprep.subr.mxu0 0.0
      %5337 = vmatpush1.msra.mxu0 %v4953
      %5338 = vmatprep.subr.mxu0 0.0
      %5339 = vmatpush1.msra.mxu0 %v4954
      %5340 = vmatprep.subr.mxu0 0.0
      %5341 = vmatpush1.msra.mxu0 %v4955
      %5342 = vmatprep.subr.mxu0 0.0
      %5343 = vmatpush1.msra.mxu0 %v4956
      %5344 = vmatprep.subr.mxu0 0.0
      %5345 = vmatpush1.msra.mxu0 %v4957
      %5346 = vmatprep.subr.mxu0 0.0
      %5347 = vmatpush1.msra.mxu0 %v4958
      %5348 = vmatprep.subr.mxu0 0.0
      %5349 = vmatpush1.msra.mxu0 %v4959
      %5350 = vmatprep.subr.mxu0 0.0
      %5351 = vmatpush1.msra.mxu0 %v4960
      %5352 = vmatprep.subr.mxu0 0.0
      %5353 = vmatpush1.msra.mxu0 %v4961
      %5354 = vmatprep.subr.mxu0 0.0
      %5355 = vmatpush1.msra.mxu0 %v4962
      %5356 = vmatprep.subr.mxu0 0.0
      %5357 = vmatpush1.msra.mxu0 %v4963
      %5358 = vmatprep.subr.mxu0 0.0
      %5359 = vmatpush1.msra.mxu0 %v4964
      %5360 = vmatprep.subr.mxu0 0.0
      %5361 = vmatpush1.msra.mxu0 %v4965
      %5362 = vmatprep.subr.mxu0 0.0
      %5363 = vmatpush1.msra.mxu0 %v4966
      %5364 = vmatprep.subr.mxu0 0.0
      %5365 = vmatpush1.msra.mxu0 %v4967
      %5366 = vmatprep.subr.mxu0 0.0
      %5367 = vmatpush1.msra.mxu0 %v4968
      %5368 = vmatprep.subr.mxu0 0.0
      %5369 = vmatpush1.msra.mxu0 %v4969
      %5370 = vmatprep.mubr.f32.mxu0 %v4874
      %5371 = vmatmul.mubr.f32.gmra.mrb[0].mxu0 %v4842
      %v5372 = vpop.f32.mrb[0].mxu0
      %v5373 = vadd.f32 %v5148, %v5372
      %v5374 = vpop.f32.mrb[0].mxu0
      %5375 = vmatprep.mubr.f32.mxu0 %v4875
      %5376 = vmatmul.mubr.f32.gmra.mrb[0].mxu0 %v4843
      %v5377 = vpop.f32.mrb[0].mxu0
      %v5378 = vadd.f32 %v5153, %v5377
      %v5379 = vpop.f32.mrb[0].mxu0
      %5380 = vmatprep.mubr.f32.mxu0 %v4876
      %5381 = vmatmul.mubr.f32.gmra.mrb[0].mxu0 %v4844
      %v5382 = vpop.f32.mrb[0].mxu0
      %v5383 = vadd.f32 %v5158, %v5382
      %v5384 = vpop.f32.mrb[0].mxu0
      %5385 = vmatprep.mubr.f32.mxu0 %v4877
      %5386 = vmatmul.mubr.f32.gmra.mrb[0].mxu0 %v4845
      %v5387 = vpop.f32.mrb[0].mxu0
      %v5388 = vadd.f32 %v5163, %v5387
      %v5389 = vpop.f32.mrb[0].mxu0
      %5390 = vmatprep.mubr.f32.mxu0 %v4878
      %5391 = vmatmul.mubr.f32.gmra.mrb[0].mxu0 %v4846
      %v5392 = vpop.f32.mrb[0].mxu0
      %v5393 = vadd.f32 %v5168, %v5392
      %v5394 = vpop.f32.mrb[0].mxu0
      %5395 = vmatprep.mubr.f32.mxu0 %v4879
      %5396 = vmatmul.mubr.f32.gmra.mrb[0].mxu0 %v4847
      %v5397 = vpop.f32.mrb[0].mxu0
      %v5398 = vadd.f32 %v5173, %v5397
      %v5399 = vpop.f32.mrb[0].mxu0
      %5400 = vmatprep.mubr.f32.mxu0 %v4880
      %5401 = vmatmul.mubr.f32.gmra.mrb[0].mxu0 %v4848
      %v5402 = vpop.f32.mrb[0].mxu0
      %v5403 = vadd.f32 %v5178, %v5402
      %v5404 = vpop.f32.mrb[0].mxu0
      %5405 = vmatprep.mubr.f32.mxu0 %v4881
      %5406 = vmatmul.mubr.f32.gmra.mrb[0].mxu0 %v4849
      %v5407 = vpop.f32.mrb[0].mxu0
      %v5408 = vadd.f32 %v5183, %v5407
      %v5409 = vpop.f32.mrb[0].mxu0
      %5410 = vmatprep.mubr.f32.mxu0 %v4882
      %5411 = vmatmul.mubr.f32.gmra.mrb[0].mxu0 %v4850
      %v5412 = vpop.f32.mrb[0].mxu0
      %v5413 = vadd.f32 %v5188, %v5412
      %v5414 = vpop.f32.mrb[0].mxu0
      %5415 = vmatprep.mubr.f32.mxu0 %v4883
      %5416 = vmatmul.mubr.f32.gmra.mrb[0].mxu0 %v4851
      %v5417 = vpop.f32.mrb[0].mxu0
      %v5418 = vadd.f32 %v5193, %v5417
      %v5419 = vpop.f32.mrb[0].mxu0
      %5420 = vmatprep.mubr.f32.mxu0 %v4884
      %5421 = vmatmul.mubr.f32.gmra.mrb[0].mxu0 %v4852
      %v5422 = vpop.f32.mrb[0].mxu0
      %v5423 = vadd.f32 %v5198, %v5422
      %v5424 = vpop.f32.mrb[0].mxu0
      %5425 = vmatprep.mubr.f32.mxu0 %v4885
      %5426 = vmatmul.mubr.f32.gmra.mrb[0].mxu0 %v4853
      %v5427 = vpop.f32.mrb[0].mxu0
      %v5428 = vadd.f32 %v5203, %v5427
      %v5429 = vpop.f32.mrb[0].mxu0
      %5430 = vmatprep.mubr.f32.mxu0 %v4886
      %5431 = vmatmul.mubr.f32.gmra.mrb[0].mxu0 %v4854
      %v5432 = vpop.f32.mrb[0].mxu0
      %v5433 = vadd.f32 %v5208, %v5432
      %v5434 = vpop.f32.mrb[0].mxu0
      %5435 = vmatprep.mubr.f32.mxu0 %v4887
      %5436 = vmatmul.mubr.f32.gmra.mrb[0].mxu0 %v4855
      %v5437 = vpop.f32.mrb[0].mxu0
      %v5438 = vadd.f32 %v5213, %v5437
      %v5439 = vpop.f32.mrb[0].mxu0
      %5440 = vmatprep.mubr.f32.mxu0 %v4888
      %5441 = vmatmul.mubr.f32.gmra.mrb[0].mxu0 %v4856
      %v5442 = vpop.f32.mrb[0].mxu0
      %v5443 = vadd.f32 %v5218, %v5442
      %v5444 = vpop.f32.mrb[0].mxu0
      %5445 = vmatprep.mubr.f32.mxu0 %v4889
      %5446 = vmatmul.mubr.f32.gmra.mrb[0].mxu0 %v4857
      %v5447 = vpop.f32.mrb[0].mxu0
      %v5448 = vadd.f32 %v5223, %v5447
      %v5449 = vpop.f32.mrb[0].mxu0
      %5450 = vmatprep.mubr.f32.mxu0 %v4890
      %5451 = vmatmul.mubr.f32.gmra.mrb[0].mxu0 %v4858
      %v5452 = vpop.f32.mrb[0].mxu0
      %v5453 = vadd.f32 %v5228, %v5452
      %v5454 = vpop.f32.mrb[0].mxu0
      %5455 = vmatprep.mubr.f32.mxu0 %v4891
      %5456 = vmatmul.mubr.f32.gmra.mrb[0].mxu0 %v4859
      %v5457 = vpop.f32.mrb[0].mxu0
      %v5458 = vadd.f32 %v5233, %v5457
      %v5459 = vpop.f32.mrb[0].mxu0
      %5460 = vmatprep.mubr.f32.mxu0 %v4892
      %5461 = vmatmul.mubr.f32.gmra.mrb[0].mxu0 %v4860
      %v5462 = vpop.f32.mrb[0].mxu0
      %v5463 = vadd.f32 %v5238, %v5462
      %v5464 = vpop.f32.mrb[0].mxu0
      %5465 = vmatprep.mubr.f32.mxu0 %v4893
      %5466 = vmatmul.mubr.f32.gmra.mrb[0].mxu0 %v4861
      %v5467 = vpop.f32.mrb[0].mxu0
      %v5468 = vadd.f32 %v5243, %v5467
      %v5469 = vpop.f32.mrb[0].mxu0
      %5470 = vmatprep.mubr.f32.mxu0 %v4894
      %5471 = vmatmul.mubr.f32.gmra.mrb[0].mxu0 %v4862
      %v5472 = vpop.f32.mrb[0].mxu0
      %v5473 = vadd.f32 %v5248, %v5472
      %v5474 = vpop.f32.mrb[0].mxu0
      %5475 = vmatprep.mubr.f32.mxu0 %v4895
      %5476 = vmatmul.mubr.f32.gmra.mrb[0].mxu0 %v4863
      %v5477 = vpop.f32.mrb[0].mxu0
      %v5478 = vadd.f32 %v5253, %v5477
      %v5479 = vpop.f32.mrb[0].mxu0
      %5480 = vmatprep.mubr.f32.mxu0 %v4896
      %5481 = vmatmul.mubr.f32.gmra.mrb[0].mxu0 %v4864
      %v5482 = vpop.f32.mrb[0].mxu0
      %v5483 = vadd.f32 %v5258, %v5482
      %v5484 = vpop.f32.mrb[0].mxu0
      %5485 = vmatprep.mubr.f32.mxu0 %v4897
      %5486 = vmatmul.mubr.f32.gmra.mrb[0].mxu0 %v4865
      %v5487 = vpop.f32.mrb[0].mxu0
      %v5488 = vadd.f32 %v5263, %v5487
      %v5489 = vpop.f32.mrb[0].mxu0
      %5490 = vmatprep.mubr.f32.mxu0 %v4898
      %5491 = vmatmul.mubr.f32.gmra.mrb[0].mxu0 %v4866
      %v5492 = vpop.f32.mrb[0].mxu0
      %v5493 = vadd.f32 %v5268, %v5492
      %v5494 = vpop.f32.mrb[0].mxu0
      %5495 = vmatprep.mubr.f32.mxu0 %v4899
      %5496 = vmatmul.mubr.f32.gmra.mrb[0].mxu0 %v4867
      %v5497 = vpop.f32.mrb[0].mxu0
      %v5498 = vadd.f32 %v5273, %v5497
      %v5499 = vpop.f32.mrb[0].mxu0
      %5500 = vmatprep.mubr.f32.mxu0 %v4900
      %5501 = vmatmul.mubr.f32.gmra.mrb[0].mxu0 %v4868
      %v5502 = vpop.f32.mrb[0].mxu0
      %v5503 = vadd.f32 %v5278, %v5502
      %v5504 = vpop.f32.mrb[0].mxu0
      %5505 = vmatprep.mubr.f32.mxu0 %v4901
      %5506 = vmatmul.mubr.f32.gmra.mrb[0].mxu0 %v4869
      %v5507 = vpop.f32.mrb[0].mxu0
      %v5508 = vadd.f32 %v5283, %v5507
      %v5509 = vpop.f32.mrb[0].mxu0
      %5510 = vmatprep.mubr.f32.mxu0 %v4902
      %5511 = vmatmul.mubr.f32.gmra.mrb[0].mxu0 %v4870
      %v5512 = vpop.f32.mrb[0].mxu0
      %v5513 = vadd.f32 %v5288, %v5512
      %v5514 = vpop.f32.mrb[0].mxu0
      %5515 = vmatprep.mubr.f32.mxu0 %v4903
      %5516 = vmatmul.mubr.f32.gmra.mrb[0].mxu0 %v4871
      %v5517 = vpop.f32.mrb[0].mxu0
      %v5518 = vadd.f32 %v5293, %v5517
      %v5519 = vpop.f32.mrb[0].mxu0
      %5520 = vmatprep.mubr.f32.mxu0 %v4904
      %5521 = vmatmul.mubr.f32.gmra.mrb[0].mxu0 %v4872
      %v5522 = vpop.f32.mrb[0].mxu0
      %v5523 = vadd.f32 %v5298, %v5522
      %v5524 = vpop.f32.mrb[0].mxu0
      %5525 = vmatprep.mubr.f32.mxu0 %v4905
      %5526 = vmatmul.mubr.f32.gmra.mrb[0].mxu0 %v4873
      %v5527 = vpop.f32.mrb[0].mxu0
      %v5528 = vadd.f32 %v5303, %v5527
      %v5529 = vpop.f32.mrb[0].mxu0
      %5530 = vdwg.mxu0
      %5531 = vmatprep.subr.mxu0 0.0
      %5532 = vmatpush1.msra.mxu0 %v4970
      %5533 = vmatprep.subr.mxu0 0.0
      %5534 = vmatpush1.msra.mxu0 %v4971
      %5535 = vmatprep.subr.mxu0 0.0
      %5536 = vmatpush1.msra.mxu0 %v4972
      %5537 = vmatprep.subr.mxu0 0.0
      %5538 = vmatpush1.msra.mxu0 %v4973
      %5539 = vmatprep.subr.mxu0 0.0
      %5540 = vmatpush1.msra.mxu0 %v4974
      %5541 = vmatprep.subr.mxu0 0.0
      %5542 = vmatpush1.msra.mxu0 %v4975
      %5543 = vmatprep.subr.mxu0 0.0
      %5544 = vmatpush1.msra.mxu0 %v4976
      %5545 = vmatprep.subr.mxu0 0.0
      %5546 = vmatpush1.msra.mxu0 %v4977
      %5547 = vmatprep.subr.mxu0 0.0
      %5548 = vmatpush1.msra.mxu0 0.0
      %5549 = vmatprep.subr.mxu0 0.0
      %5550 = vmatpush1.msra.mxu0 0.0
      %5551 = vmatprep.subr.mxu0 0.0
      %5552 = vmatpush1.msra.mxu0 0.0
      %5553 = vmatprep.subr.mxu0 0.0
      %5554 = vmatpush1.msra.mxu0 0.0
      %5555 = vmatprep.subr.mxu0 0.0
      %5556 = vmatpush1.msra.mxu0 0.0
      %5557 = vmatprep.subr.mxu0 0.0
      %5558 = vmatpush1.msra.mxu0 0.0
      %5559 = vmatprep.subr.mxu0 0.0
      %5560 = vmatpush1.msra.mxu0 0.0
      %5561 = vmatprep.subr.mxu0 0.0
      %5562 = vmatpush1.msra.mxu0 0.0
      %5563 = vmatprep.subr.mxu0 0.0
      %5564 = vmatpush1.msra.mxu0 0.0
      %5565 = vmatprep.subr.mxu0 0.0
      %5566 = vmatpush1.msra.mxu0 0.0
      %5567 = vmatprep.subr.mxu0 0.0
      %5568 = vmatpush1.msra.mxu0 0.0
      %5569 = vmatprep.subr.mxu0 0.0
      %5570 = vmatpush1.msra.mxu0 0.0
      %5571 = vmatprep.subr.mxu0 0.0
      %5572 = vmatpush1.msra.mxu0 0.0
      %5573 = vmatprep.subr.mxu0 0.0
      %5574 = vmatpush1.msra.mxu0 0.0
      %5575 = vmatprep.subr.mxu0 0.0
      %5576 = vmatpush1.msra.mxu0 0.0
      %5577 = vmatprep.subr.mxu0 0.0
      %5578 = vmatpush1.msra.mxu0 0.0
      %5579 = vmatprep.subr.mxu0 0.0
      %5580 = vmatpush1.msra.mxu0 0.0
      %5581 = vmatprep.subr.mxu0 0.0
      %5582 = vmatpush1.msra.mxu0 0.0
      %5583 = vmatprep.subr.mxu0 0.0
      %5584 = vmatpush1.msra.mxu0 0.0
      %5585 = vmatprep.subr.mxu0 0.0
      %5586 = vmatpush1.msra.mxu0 0.0
      %5587 = vmatprep.subr.mxu0 0.0
      %5588 = vmatpush1.msra.mxu0 0.0
      %5589 = vmatprep.subr.mxu0 0.0
      %5590 = vmatpush1.msra.mxu0 0.0
      %5591 = vmatprep.subr.mxu0 0.0
      %5592 = vmatpush1.msra.mxu0 0.0
      %5593 = vmatprep.subr.mxu0 0.0
      %5594 = vmatpush1.msra.mxu0 0.0
      %5595 = vmatprep.mubr.f32.mxu0 0.0
      %5596 = vmatmul.mubr.f32.gmra.mrb[0].mxu0 %v4986
      %v5597 = vpop.f32.mrb[0].mxu0
      %v5598 = vadd.f32 %v5373, %v5597
      %v5599 = vpop.f32.mrb[0].mxu0
      %5600 = vmatprep.mubr.f32.mxu0 0.0
      %5601 = vmatmul.mubr.f32.gmra.mrb[0].mxu0 %v4989
      %v5602 = vpop.f32.mrb[0].mxu0
      %v5603 = vadd.f32 %v5378, %v5602
      %v5604 = vpop.f32.mrb[0].mxu0
      %5605 = vmatprep.mubr.f32.mxu0 0.0
      %5606 = vmatmul.mubr.f32.gmra.mrb[0].mxu0 %v4992
      %v5607 = vpop.f32.mrb[0].mxu0
      %v5608 = vadd.f32 %v5383, %v5607
      %v5609 = vpop.f32.mrb[0].mxu0
      %5610 = vmatprep.mubr.f32.mxu0 0.0
      %5611 = vmatmul.mubr.f32.gmra.mrb[0].mxu0 %v4995
      %v5612 = vpop.f32.mrb[0].mxu0
      %v5613 = vadd.f32 %v5388, %v5612
      %v5614 = vpop.f32.mrb[0].mxu0
      %5615 = vmatprep.mubr.f32.mxu0 0.0
      %5616 = vmatmul.mubr.f32.gmra.mrb[0].mxu0 %v4998
      %v5617 = vpop.f32.mrb[0].mxu0
      %v5618 = vadd.f32 %v5393, %v5617
      %v5619 = vpop.f32.mrb[0].mxu0
      %5620 = vmatprep.mubr.f32.mxu0 0.0
      %5621 = vmatmul.mubr.f32.gmra.mrb[0].mxu0 %v5001
      %v5622 = vpop.f32.mrb[0].mxu0
      %v5623 = vadd.f32 %v5398, %v5622
      %v5624 = vpop.f32.mrb[0].mxu0
      %5625 = vmatprep.mubr.f32.mxu0 0.0
      %5626 = vmatmul.mubr.f32.gmra.mrb[0].mxu0 %v5004
      %v5627 = vpop.f32.mrb[0].mxu0
      %v5628 = vadd.f32 %v5403, %v5627
      %v5629 = vpop.f32.mrb[0].mxu0
      %5630 = vmatprep.mubr.f32.mxu0 0.0
      %5631 = vmatmul.mubr.f32.gmra.mrb[0].mxu0 %v5007
      %v5632 = vpop.f32.mrb[0].mxu0
      %v5633 = vadd.f32 %v5408, %v5632
      %v5634 = vpop.f32.mrb[0].mxu0
      %5635 = vmatprep.mubr.f32.mxu0 0.0
      %5636 = vmatmul.mubr.f32.gmra.mrb[0].mxu0 %v5010
      %v5637 = vpop.f32.mrb[0].mxu0
      %v5638 = vadd.f32 %v5413, %v5637
      %v5639 = vpop.f32.mrb[0].mxu0
      %5640 = vmatprep.mubr.f32.mxu0 0.0
      %5641 = vmatmul.mubr.f32.gmra.mrb[0].mxu0 %v5013
      %v5642 = vpop.f32.mrb[0].mxu0
      %v5643 = vadd.f32 %v5418, %v5642
      %v5644 = vpop.f32.mrb[0].mxu0
      %5645 = vmatprep.mubr.f32.mxu0 0.0
      %5646 = vmatmul.mubr.f32.gmra.mrb[0].mxu0 %v5016
      %v5647 = vpop.f32.mrb[0].mxu0
      %v5648 = vadd.f32 %v5423, %v5647
      %v5649 = vpop.f32.mrb[0].mxu0
      %5650 = vmatprep.mubr.f32.mxu0 0.0
      %5651 = vmatmul.mubr.f32.gmra.mrb[0].mxu0 %v5019
      %v5652 = vpop.f32.mrb[0].mxu0
      %v5653 = vadd.f32 %v5428, %v5652
      %v5654 = vpop.f32.mrb[0].mxu0
      %5655 = vmatprep.mubr.f32.mxu0 0.0
      %5656 = vmatmul.mubr.f32.gmra.mrb[0].mxu0 %v5022
      %v5657 = vpop.f32.mrb[0].mxu0
      %v5658 = vadd.f32 %v5433, %v5657
      %v5659 = vpop.f32.mrb[0].mxu0
      %5660 = vmatprep.mubr.f32.mxu0 0.0
      %5661 = vmatmul.mubr.f32.gmra.mrb[0].mxu0 %v5025
      %v5662 = vpop.f32.mrb[0].mxu0
      %v5663 = vadd.f32 %v5438, %v5662
      %v5664 = vpop.f32.mrb[0].mxu0
      %5665 = vmatprep.mubr.f32.mxu0 0.0
      %5666 = vmatmul.mubr.f32.gmra.mrb[0].mxu0 %v5028
      %v5667 = vpop.f32.mrb[0].mxu0
      %v5668 = vadd.f32 %v5443, %v5667
      %v5669 = vpop.f32.mrb[0].mxu0
      %5670 = vmatprep.mubr.f32.mxu0 0.0
      %5671 = vmatmul.mubr.f32.gmra.mrb[0].mxu0 %v5031
      %v5672 = vpop.f32.mrb[0].mxu0
      %v5673 = vadd.f32 %v5448, %v5672
      %v5674 = vpop.f32.mrb[0].mxu0
      %5675 = vmatprep.mubr.f32.mxu0 0.0
      %5676 = vmatmul.mubr.f32.gmra.mrb[0].mxu0 %v5034
      %v5677 = vpop.f32.mrb[0].mxu0
      %v5678 = vadd.f32 %v5453, %v5677
      %v5679 = vpop.f32.mrb[0].mxu0
      %5680 = vmatprep.mubr.f32.mxu0 0.0
      %5681 = vmatmul.mubr.f32.gmra.mrb[0].mxu0 %v5037
      %v5682 = vpop.f32.mrb[0].mxu0
      %v5683 = vadd.f32 %v5458, %v5682
      %v5684 = vpop.f32.mrb[0].mxu0
      %5685 = vmatprep.mubr.f32.mxu0 0.0
      %5686 = vmatmul.mubr.f32.gmra.mrb[0].mxu0 %v5040
      %v5687 = vpop.f32.mrb[0].mxu0
      %v5688 = vadd.f32 %v5463, %v5687
      %v5689 = vpop.f32.mrb[0].mxu0
      %5690 = vmatprep.mubr.f32.mxu0 0.0
      %5691 = vmatmul.mubr.f32.gmra.mrb[0].mxu0 %v5043
      %v5692 = vpop.f32.mrb[0].mxu0
      %v5693 = vadd.f32 %v5468, %v5692
      %v5694 = vpop.f32.mrb[0].mxu0
      %5695 = vmatprep.mubr.f32.mxu0 0.0
      %5696 = vmatmul.mubr.f32.gmra.mrb[0].mxu0 %v5046
      %v5697 = vpop.f32.mrb[0].mxu0
      %v5698 = vadd.f32 %v5473, %v5697
      %v5699 = vpop.f32.mrb[0].mxu0
      %5700 = vmatprep.mubr.f32.mxu0 0.0
      %5701 = vmatmul.mubr.f32.gmra.mrb[0].mxu0 %v5049
      %v5702 = vpop.f32.mrb[0].mxu0
      %v5703 = vadd.f32 %v5478, %v5702
      %v5704 = vpop.f32.mrb[0].mxu0
      %5705 = vmatprep.mubr.f32.mxu0 0.0
      %5706 = vmatmul.mubr.f32.gmra.mrb[0].mxu0 %v5052
      %v5707 = vpop.f32.mrb[0].mxu0
      %v5708 = vadd.f32 %v5483, %v5707
      %v5709 = vpop.f32.mrb[0].mxu0
      %5710 = vmatprep.mubr.f32.mxu0 0.0
      %5711 = vmatmul.mubr.f32.gmra.mrb[0].mxu0 %v5055
      %v5712 = vpop.f32.mrb[0].mxu0
      %v5713 = vadd.f32 %v5488, %v5712
      %v5714 = vpop.f32.mrb[0].mxu0
      %5715 = vmatprep.mubr.f32.mxu0 0.0
      %5716 = vmatmul.mubr.f32.gmra.mrb[0].mxu0 %v5058
      %v5717 = vpop.f32.mrb[0].mxu0
      %v5718 = vadd.f32 %v5493, %v5717
      %v5719 = vpop.f32.mrb[0].mxu0
      %5720 = vmatprep.mubr.f32.mxu0 0.0
      %5721 = vmatmul.mubr.f32.gmra.mrb[0].mxu0 %v5061
      %v5722 = vpop.f32.mrb[0].mxu0
      %v5723 = vadd.f32 %v5498, %v5722
      %v5724 = vpop.f32.mrb[0].mxu0
      %5725 = vmatprep.mubr.f32.mxu0 0.0
      %5726 = vmatmul.mubr.f32.gmra.mrb[0].mxu0 %v5064
      %v5727 = vpop.f32.mrb[0].mxu0
      %v5728 = vadd.f32 %v5503, %v5727
      %v5729 = vpop.f32.mrb[0].mxu0
      %5730 = vmatprep.mubr.f32.mxu0 0.0
      %5731 = vmatmul.mubr.f32.gmra.mrb[0].mxu0 %v5067
      %v5732 = vpop.f32.mrb[0].mxu0
      %v5733 = vadd.f32 %v5508, %v5732
      %v5734 = vpop.f32.mrb[0].mxu0
      %5735 = vmatprep.mubr.f32.mxu0 0.0
      %5736 = vmatmul.mubr.f32.gmra.mrb[0].mxu0 %v5070
      %v5737 = vpop.f32.mrb[0].mxu0
      %v5738 = vadd.f32 %v5513, %v5737
      %v5739 = vpop.f32.mrb[0].mxu0
      %5740 = vmatprep.mubr.f32.mxu0 0.0
      %5741 = vmatmul.mubr.f32.gmra.mrb[0].mxu0 %v5073
      %v5742 = vpop.f32.mrb[0].mxu0
      %v5743 = vadd.f32 %v5518, %v5742
      %v5744 = vpop.f32.mrb[0].mxu0
      %5745 = vmatprep.mubr.f32.mxu0 0.0
      %5746 = vmatmul.mubr.f32.gmra.mrb[0].mxu0 %v5076
      %v5747 = vpop.f32.mrb[0].mxu0
      %v5748 = vadd.f32 %v5523, %v5747
      %v5749 = vpop.f32.mrb[0].mxu0
      %5750 = vmatprep.mubr.f32.mxu0 0.0
      %5751 = vmatmul.mubr.f32.gmra.mrb[0].mxu0 %v5079
      %v5752 = vpop.f32.mrb[0].mxu0
      %v5753 = vadd.f32 %v5528, %v5752
      %v5754 = vpop.f32.mrb[0].mxu0
      %5755 = vdwg.mxu0
      %5756 = vxpose.xlu0.b32.start [1/16] %v5598, 128
      %5757 = vxpose.xlu0.b32.cont [2/16] %v5603, 128
      %5758 = vxpose.xlu0.b32.cont [3/16] %v5608, 128
      %5759 = vxpose.xlu0.b32.cont [4/16] %v5613, 128
      %5760 = vxpose.xlu0.b32.cont [5/16] %v5618, 128
      %5761 = vxpose.xlu0.b32.cont [6/16] %v5623, 128
      %5762 = vxpose.xlu0.b32.cont [7/16] %v5628, 128
      %5763 = vxpose.xlu0.b32.cont [8/16] %v5633, 128
      %5764 = vxpose.xlu0.b32.cont [9/16] %v5638, 128
      %5765 = vxpose.xlu0.b32.cont [10/16] %v5643, 128
      %5766 = vxpose.xlu0.b32.cont [11/16] %v5648, 128
      %5767 = vxpose.xlu0.b32.cont [12/16] %v5653, 128
      %5768 = vxpose.xlu0.b32.cont [13/16] %v5658, 128
      %5769 = vxpose.xlu0.b32.cont [14/16] %v5663, 128
      %5770 = vxpose.xlu0.b32.cont [15/16] %v5668, 128
      %5771 = vxpose.xlu0.b32.end [16/16] %v5673, 128
      %v5772 = vpop.trf.xlu0
      %v5773 = vpop.trf.xlu0
      %v5774 = vpop.trf.xlu0
      %v5775 = vpop.trf.xlu0
      %v5776 = vpop.trf.xlu0
      %v5777 = vpop.trf.xlu0
      %v5778 = vpop.trf.xlu0
      %v5779 = vpop.trf.xlu0
      %v5780 = vpop.trf.xlu0
      %v5781 = vpop.trf.xlu0
      %v5782 = vpop.trf.xlu0
      %v5783 = vpop.trf.xlu0
      %v5784 = vpop.trf.xlu0
      %v5785 = vpop.trf.xlu0
      %v5786 = vpop.trf.xlu0
      %v5787 = vpop.trf.xlu0
      %5788 = vxpose.xlu0.b32.start [1/16] %v5678, 128
      %5789 = vxpose.xlu0.b32.cont [2/16] %v5683, 128
      %5790 = vxpose.xlu0.b32.cont [3/16] %v5688, 128
      %5791 = vxpose.xlu0.b32.cont [4/16] %v5693, 128
      %5792 = vxpose.xlu0.b32.cont [5/16] %v5698, 128
      %5793 = vxpose.xlu0.b32.cont [6/16] %v5703, 128
      %5794 = vxpose.xlu0.b32.cont [7/16] %v5708, 128
      %5795 = vxpose.xlu0.b32.cont [8/16] %v5713, 128
      %5796 = vxpose.xlu0.b32.cont [9/16] %v5718, 128
      %5797 = vxpose.xlu0.b32.cont [10/16] %v5723, 128
      %5798 = vxpose.xlu0.b32.cont [11/16] %v5728, 128
      %5799 = vxpose.xlu0.b32.cont [12/16] %v5733, 128
      %5800 = vxpose.xlu0.b32.cont [13/16] %v5738, 128
      %5801 = vxpose.xlu0.b32.cont [14/16] %v5743, 128
      %5802 = vxpose.xlu0.b32.cont [15/16] %v5748, 128
      %5803 = vxpose.xlu0.b32.end [16/16] %v5753, 128
      %v5804 = vpop.trf.xlu0
      %v5805 = vpop.trf.xlu0
      %v5806 = vpop.trf.xlu0
      %v5807 = vpop.trf.xlu0
      %v5808 = vpop.trf.xlu0
      %v5809 = vpop.trf.xlu0
      %v5810 = vpop.trf.xlu0
      %v5811 = vpop.trf.xlu0
      %v5812 = vpop.trf.xlu0
      %v5813 = vpop.trf.xlu0
      %v5814 = vpop.trf.xlu0
      %v5815 = vpop.trf.xlu0
      %v5816 = vpop.trf.xlu0
      %v5817 = vpop.trf.xlu0
      %v5818 = vpop.trf.xlu0
      %v5819 = vpop.trf.xlu0
      %5820 = vst [vmem:[%s229] sm:$0xff] %v5772
      %5821 = vst [vmem:[%s229 + $0x8] sm:$0xff] %v5804
      %5822 = vst [vmem:[%s229 + $0x10] sm:$0xff] %v5773
      %5823 = vst [vmem:[%s229 + $0x18] sm:$0xff] %v5805
      %p5824 = scmp.lt.s32.totalorder %s16, 1
      %s5825 = scalar_select %p5824, %s16, 1
      %s5826 = smul.addr %s5825, 4
      %s5827 = smul.addr %s5826, 8
      %s5828 = scalar_lea.vmem %s5, %s5827
      // Predicated region
      $region41: #{decoder_forward.1} parent=39 // pred_check
        %p5829 = pneg %p144
      $region42: #{decoder_forward.1} parent=39 // pred_check_branch
        %5831 = sbr.rel (%p5829) target = $region44
      $region43: #{decoder_forward.1} parent=39 // pred_region
        _
      $region44: #{decoder_forward.1} parent=39 // pred_fallthru
        _
    $region40: #{decoder_forward.1} parent=5 // pred_fallthru
      _
    %p5832 = scmp.le.s32.totalorder 2, %s11
    // Predicated region
    $region45: #{decoder_forward.1} parent=5 // pred_check
      %p5833 = pneg %p5832
    $region46: #{decoder_forward.1} parent=5 // pred_check_branch
      %5835 = sbr.rel (%p5833) target = $region48
    $region47: #{decoder_forward.1} parent=5 // pred_region
      %s5836 = ssub.s32 %s11, 2
      // Predicated region
      $region49: #{decoder_forward.1} parent=47 // pred_check
        %p5837 = pneg %p150
      $region50: #{decoder_forward.1} parent=47 // pred_check_branch
        %5839 = sbr.rel (%p5837) target = $region52
      $region51: #{decoder_forward.1} parent=47 // pred_region
        %p5840 = scmp.lt.s32.totalorder %s17, 1
        %s5841 = scalar_select %p5840, %s17, 1
        %s5842 = smul.addr %s5841, 4
        %s5843 = smul.addr %s5842, 8
        %s5844 = scalar_lea.vmem %s5, %s5843
      $region52: #{decoder_forward.1} parent=47 // pred_fallthru
        _
    $region48: #{decoder_forward.1} parent=5 // pred_fallthru
      _
  $region6: #{decoder_forward.1} parent=0 // loop_footer
    %s15 = sadd.s32 1, %s11
  $region7: #{decoder_forward.1} parent=0 // loop_footer_branch
    %10 = sbr.rel target = $region3
  $region8: #{decoder_forward.1} parent=0 // loop_exit
    _

</llo_original>
